<compile_context>
chip_gen: v6e
topology: v6e:2x2x1
jax: 0.10.0
libtpu: 0.0.40
codegen_flags: <defaults>
</compile_context>

<pallas_src>
import functools

import jax
import jax.numpy as jnp
import numpy as np
from jax import lax
from jax.experimental import pallas as pl
from jax.experimental.pallas import tpu as pltpu

BF16 = jnp.bfloat16
F32 = jnp.float32


# --------------------------- token-tiled matmul kernels ----------------------

def _cv1_qkv_kernel(x_ref, w_cv1_ref, b_cv1_ref, w_qkv_ref, b_qkv_ref,
                    ab_ref, qkv_ref, *, c):
    # ab = silu(x @ Wcv1 + b)            (a | b channel split kept packed, 2c wide)
    # qkv = b-half @ Wqkv + b            (per-head [q|k|v] column layout)
    y = jnp.dot(x_ref[...], w_cv1_ref[...],
                preferred_element_type=F32) + b_cv1_ref[...]
    y = jax.nn.silu(y)
    ab_ref[...] = y.astype(BF16)
    qkv = jnp.dot(y[:, c:].astype(BF16), w_qkv_ref[...],
                  preferred_element_type=F32) + b_qkv_ref[...]
    qkv_ref[...] = qkv.astype(BF16)


def _tail_kernel(ab_ref, ope_ref,
                 w_proj_ref, b_proj_ref, w_f1_ref, b_f1_ref,
                 w_f2_ref, b_f2_ref, w_cv2_ref, b_cv2_ref, out_ref, *, c):
    # Fused: b1 = b + proj(o+pe);  b2 = b1 + ffn2(silu(ffn1(b1)));
    #        out = silu(cv2(cat(a, b2)))    (concat is a VMEM lane join)
    ab = ab_ref[...]                                   # (tm, 2c) bf16
    a = ab[:, :c]
    b = ab[:, c:].astype(F32)
    b1 = b + jnp.dot(ope_ref[...], w_proj_ref[...],
                     preferred_element_type=F32) + b_proj_ref[...]
    f1 = jax.nn.silu(jnp.dot(b1.astype(BF16), w_f1_ref[...],
                             preferred_element_type=F32) + b_f1_ref[...])
    b2 = b1 + jnp.dot(f1.astype(BF16), w_f2_ref[...],
                      preferred_element_type=F32) + b_f2_ref[...]
    ab2 = jnp.concatenate([a, b2.astype(BF16)], axis=-1)    # (tm, 2c) bf16
    y = jax.nn.silu(jnp.dot(ab2, w_cv2_ref[...],
                            preferred_element_type=F32) + b_cv2_ref[...])
    out_ref[...] = y.astype(out_ref.dtype)


def _tile_m(m, max_tm=1024, min_steps=4):
    """Largest token tile that divides M, is a multiple of 8, gives >= min_steps
    grid steps (so v7x's two TensorCores each see >= 2 pipelined steps) and is
    <= max_tm.  Falls back to a single full-M block for awkward M."""
    cap = min(max_tm, m)
    if m // min_steps >= 8:
        cap = min(cap, m // min_steps)
    cap -= cap % 8
    for tm in range(cap, 7, -8):
        if m % tm == 0:
            return tm
    return m


def _tiled_tokens(kernel, tok_inputs, const_inputs, outs, *, max_tm=1024):
    """Run `kernel` tiled over the token (M) axis; weights/biases stay resident."""
    m = tok_inputs[0].shape[0]
    tm = _tile_m(m, max_tm)
    grid = (m // tm,)
    in_specs = ([pl.BlockSpec((tm, t.shape[1]), lambda i: (i, 0)) for t in tok_inputs]
                + [pl.BlockSpec(cst.shape, lambda i: (0, 0)) for cst in const_inputs])
    out_specs = [pl.BlockSpec((tm, co), lambda i: (i, 0)) for co, _ in outs]
    out_shape = [jax.ShapeDtypeStruct((m, co), dt) for co, dt in outs]
    flops = 2 * m * int(sum(int(np.prod(cst.shape)) for cst in const_inputs
                            if cst.shape[0] > 1))
    bytes_acc = int(sum(int(t.size) * t.dtype.itemsize for t in tok_inputs)
                    + sum(int(cst.size) * cst.dtype.itemsize for cst in const_inputs)
                    + m * sum(co * jnp.dtype(dt).itemsize for co, dt in outs))
    return pl.pallas_call(
        kernel,
        grid=grid,
        in_specs=in_specs,
        out_specs=out_specs,
        out_shape=out_shape,
        compiler_params=pltpu.CompilerParams(dimension_semantics=("parallel",)),
        cost_estimate=pl.CostEstimate(flops=flops, transcendentals=0,
                                      bytes_accessed=bytes_acc),
    )(*tok_inputs, *const_inputs)


# --------------------------- attention + pe kernel ---------------------------

def _attn_pe_kernel(kv_ref, w_pe_ref, b_pe_ref, o_ref, pe_ref, pad_ref,
                    *, kd, hd, H, W, Tq, scale):
    # kv_ref : (1, N, 2*kd+hd) bf16, this (batch, head)'s [q|k|v] block
    # w_pe_ref: (1, 9, hd)  b_pe_ref: (1, 1, hd)  o_ref: (1, 1, Tq, hd)
    # pe_ref : (N, hd) f32 VMEM scratch (persists across query tiles)
    # pad_ref: (H+2, W+2, hd) f32 VMEM scratch (zero-padded v image)
    qi = pl.program_id(2)
    kvt = kv_ref[0]                       # (N, hp) bf16
    k = kvt[:, kd:2 * kd]
    v = kvt[:, 2 * kd:]

    # ---- positional encoding (depthwise 3x3 on v), once per (head, batch) ----
    @pl.when(qi == 0)
    def _():
        pad_ref[...] = jnp.zeros_like(pad_ref)
        pad_ref[1:H + 1, 1:W + 1, :] = v.astype(F32).reshape(H, W, hd)
        w = w_pe_ref[0].astype(F32)                         # (9, hd)
        acc = jnp.zeros((H, W, hd), F32) + b_pe_ref[0]
        for t in range(9):
            kh, kw = t // 3, t % 3
            acc = acc + pad_ref[kh:kh + H, kw:kw + W, :] * w[t]
        pe_ref[...] = acc.reshape(H * W, hd)

    # ---- attention for this query tile (softmax is exact: all keys resident) --
    start = qi * Tq
    if Tq % 8 == 0:
        start = pl.multiple_of(start, 8)
    qrows = kv_ref[0, pl.ds(start, Tq), :]                  # (Tq, hp) bf16
    q = (qrows[:, :kd].astype(F32) * scale).astype(BF16)    # scale folded into q
    s = lax.dot_general(q, k, (((1,), (1,)), ((), ())),
                        preferred_element_type=F32)         # (Tq, N)
    s = s - jnp.max(s, axis=-1, keepdims=True)
    p = jnp.exp(s)
    p = p * pl.reciprocal(jnp.sum(p, axis=-1, keepdims=True), approx=True)
    o = jnp.dot(p.astype(BF16), v, preferred_element_type=F32)   # (Tq, hd)
    o_ref[0, 0] = (o + pe_ref[pl.ds(start, Tq), :]).astype(o_ref.dtype)


def _pick_tq(H, W, budget_elems=1 << 19):
    """Query-tile rows (multiple of W, divides N) keeping the (Tq, N) f32 score
    block ~<= 2 MiB so the kernel fits v5e's 16 MiB / v7x's 32 MiB scoped VMEM."""
    N = H * W
    cap = max(W, budget_elems // N)
    best = W
    for k in range(1, H + 1):
        if H % k == 0 and k * W <= cap:
            best = k * W
    return best


def attention_pe(qkv3, w_pe_h, b_pe_h, *, B, H, W, num_heads, kd, hd):
    """qkv3: (B, N, nh*(2kd+hd)) bf16 -> (nh, B, N, hd) bf16 holding (o + pe)."""
    N = H * W
    hp = 2 * kd + hd
    nh = num_heads
    Tq = _pick_tq(H, W)
    nq = N // Tq
    kern = functools.partial(_attn_pe_kernel, kd=kd, hd=hd, H=H, W=W, Tq=Tq,
                             scale=float(kd) ** -0.5)
    cost = pl.CostEstimate(
        flops=2 * B * nh * N * N * (kd + hd) + 2 * 9 * B * N * nh * hd,
        transcendentals=B * nh * N * N,
        bytes_accessed=2 * (B * N * nh * hp + B * N * nh * hd))
    return pl.pallas_call(
        kern,
        grid=(nh, B, nq),
        in_specs=[
            pl.BlockSpec((1, N, hp), lambda h, b, q: (b, 0, h)),
            pl.BlockSpec((1, 9, hd), lambda h, b, q: (h, 0, 0)),
            pl.BlockSpec((1, 1, hd), lambda h, b, q: (h, 0, 0)),
        ],
        out_specs=pl.BlockSpec((1, 1, Tq, hd), lambda h, b, q: (h, b, q, 0)),
        out_shape=jax.ShapeDtypeStruct((nh, B, N, hd), BF16),
        scratch_shapes=[pltpu.VMEM((N, hd), F32),
                        pltpu.VMEM((H + 2, W + 2, hd), F32)],
        compiler_params=pltpu.CompilerParams(
            dimension_semantics=("parallel", "parallel", "arbitrary")),
        cost_estimate=cost,
    )(qkv3, w_pe_h, b_pe_h)


# --------------------------- PSA forward -------------------------------------

def psa_forward(x, params, c, num_heads):
    """x: (B, C1, H, W) NCHW (matches PyTorch). Returns (B, C1, H, W) f32."""
    B, C1, H, W = x.shape
    N = H * W
    M = B * N
    hd = c // num_heads
    kd = hd // 2                          # attn_ratio = 0.5
    h_qkv = num_heads * (2 * kd + hd)

    # fold/cast params once (tiny; matmul weights bf16, biases + pe stay f32)
    w_cv1 = params["w_cv1"].astype(BF16);  b_cv1 = params["b_cv1"].reshape(1, -1)
    w_qkv = params["w_qkv"].astype(BF16);  b_qkv = params["b_qkv"].reshape(1, -1)
    w_proj = params["w_proj"].astype(BF16); b_proj = params["b_proj"].reshape(1, -1)
    w_ffn1 = params["w_ffn1"].astype(BF16); b_ffn1 = params["b_ffn1"].reshape(1, -1)
    w_ffn2 = params["w_ffn2"].astype(BF16); b_ffn2 = params["b_ffn2"].reshape(1, -1)
    w_cv2 = params["w_cv2"].astype(BF16);  b_cv2 = params["b_cv2"].reshape(1, -1)
    w_pe_h = jnp.transpose(params["w_pe"].reshape(9, num_heads, hd), (1, 0, 2))
    b_pe_h = params["b_pe"].reshape(num_heads, 1, hd)

    x_tok = jnp.transpose(x, (0, 2, 3, 1)).reshape(M, C1).astype(BF16)

    # --- kernel A: cv1 (+SiLU, split kept packed) + qkv projection, fused -----
    ab, qkv = _tiled_tokens(
        functools.partial(_cv1_qkv_kernel, c=c),
        [x_tok], [w_cv1, b_cv1, w_qkv, b_qkv],
        [(2 * c, BF16), (h_qkv, BF16)])

    # --- kernel B: attention + depthwise-3x3 pe, per (head, batch, q-tile) ----
    qkv3 = qkv.reshape(B, N, h_qkv)
    ope = attention_pe(qkv3, w_pe_h, b_pe_h, B=B, H=H, W=W,
                       num_heads=num_heads, kd=kd, hd=hd)
    if num_heads == 1:
        ope_tok = ope.reshape(M, c)                       # free reshape
    else:
        ope_tok = jnp.transpose(ope, (1, 2, 0, 3)).reshape(M, c)

    # --- kernel C: proj(+adds) + ffn(+residual) + cv2 on VMEM concat, fused ---
    (out_tok,) = _tiled_tokens(
        functools.partial(_tail_kernel, c=c),
        [ab, ope_tok],
        [w_proj, b_proj, w_ffn1, b_ffn1, w_ffn2, b_ffn2, w_cv2, b_cv2],
        [(C1, F32)])

    return jnp.transpose(out_tok.reshape(B, H, W, C1), (0, 3, 1, 2))   # NCHW


# --------------------------- pure-JAX reference ------------------------------

def psa_reference(x, params, c, num_heads):
    B, C1, H, W = x.shape
    N = H * W
    M = B * N
    hd = c // num_heads
    kd = hd // 2
    scale = float(kd) ** -0.5

    def lin(t, w, b, act=False):
        y = jnp.dot(t.astype(BF16), w.astype(BF16),
                    preferred_element_type=F32) + b
        return jax.nn.silu(y) if act else y

    x_tok = jnp.transpose(x, (0, 2, 3, 1)).reshape(M, C1)
    y = lin(x_tok, params["w_cv1"], params["b_cv1"], act=True)
    ab = y.astype(BF16)                                  # mirrors bf16 HBM boundary
    a_tok, b_tok = ab[:, :c], ab[:, c:]

    qkv = lin(b_tok, params["w_qkv"], params["b_qkv"]).astype(BF16)
    qkv = qkv.reshape(B, N, num_heads, 2 * kd + hd)
    q, k, v = qkv[..., :kd], qkv[..., kd:2 * kd], qkv[..., 2 * kd:]
    qs = (q.astype(F32) * scale).astype(BF16)
    s = jnp.einsum('bnhd,bmhd->bhnm', qs, k, preferred_element_type=F32)
    s = s - jnp.max(s, axis=-1, keepdims=True)
    p = jnp.exp(s)
    p = p / jnp.sum(p, axis=-1, keepdims=True)
    o = jnp.einsum('bhnm,bmhd->bnhd', p.astype(BF16), v,
                   preferred_element_type=F32)
    o_tok = o.reshape(M, c)

    v_nchw = jnp.transpose(v.reshape(B, H, W, c).astype(F32), (0, 3, 1, 2))
    w_oihw = jnp.transpose(params["w_pe"], (2, 0, 1))[:, None]   # (c,1,3,3)
    pe = lax.conv_general_dilated(
        v_nchw, w_oihw, (1, 1), ((1, 1), (1, 1)),
        feature_group_count=c, dimension_numbers=('NCHW', 'OIHW', 'NCHW'))
    pe = pe + params["b_pe"][None, :, None, None]
    pe_tok = jnp.transpose(pe, (0, 2, 3, 1)).reshape(M, c)

    ope = (o_tok + pe_tok).astype(BF16)                  # mirrors bf16 HBM boundary
    b1 = b_tok.astype(F32) + lin(ope, params["w_proj"], params["b_proj"])
    f1 = lin(b1, params["w_ffn1"], params["b_ffn1"], act=True)
    b2 = b1 + lin(f1, params["w_ffn2"], params["b_ffn2"])
    out = lin(jnp.concatenate([a_tok, b2.astype(BF16)], axis=1),
              params["w_cv2"], params["b_cv2"], act=True)
    return jnp.transpose(out.reshape(B, H, W, C1), (0, 3, 1, 2))


# ------------------------------------------------------------------------------

if __name__ == "__main__":
    c1 = 128                      # PSA requires c1*e to be a multiple of 64
    B, H, W = 2, 16, 16
    c = c1 // 2                   # e = 0.5
    num_heads = c // 64           # = 1

    key = jax.random.PRNGKey(0)
    ks = jax.random.split(key, 15)

    def rnd(k, shape, s=0.05):
        return jax.random.normal(k, shape, jnp.float32) * s

    params = {
        # folded Conv+BN weights: 1x1 convs as (Cin, Cout) matmul weights + bias
        "w_cv1": rnd(ks[0], (c1, 2 * c)),   "b_cv1": rnd(ks[1], (2 * c,)),
        "w_qkv": rnd(ks[2], (c, 2 * c)),    "b_qkv": rnd(ks[3], (2 * c,)),
        "w_pe":  rnd(ks[4], (3, 3, c)),     "b_pe":  rnd(ks[5], (c,)),
        "w_proj": rnd(ks[6], (c, c)),       "b_proj": rnd(ks[7], (c,)),
        "w_ffn1": rnd(ks[8], (c, 2 * c)),   "b_ffn1": rnd(ks[9], (2 * c,)),
        "w_ffn2": rnd(ks[10], (2 * c, c)),  "b_ffn2": rnd(ks[11], (c,)),
        "w_cv2": rnd(ks[12], (2 * c, c1)),  "b_cv2": rnd(ks[13], (c1,)),
    }
    x = jax.random.normal(ks[14], (B, c1, H, W), jnp.float32)

    fwd = jax.jit(functools.partial(psa_forward, c=c, num_heads=num_heads))
    out = jax.block_until_ready(fwd(x, params))
    assert out.shape == (B, c1, H, W)

    ref = psa_reference(x, params, c, num_heads)
    np.testing.assert_allclose(np.asarray(out), np.asarray(ref),
                               atol=1e-2, rtol=1e-2)
    print("KERNEL_OK")
</pallas_src>

<mosaic_0001>
module attributes {stable_mosaic.version = 11 : i64} {
  func.func @_cv1_qkv_kernel(%arg0: i32, %arg1: memref<128x128xbf16, #tpu.memory_space<vmem>>, %arg2: memref<128x128xbf16, #tpu.memory_space<vmem>>, %arg3: memref<1x128xf32, #tpu.memory_space<vmem>>, %arg4: memref<64x128xbf16, #tpu.memory_space<vmem>>, %arg5: memref<1x128xf32, #tpu.memory_space<vmem>>, %arg6: memref<128x128xbf16, #tpu.memory_space<vmem>>, %arg7: memref<128x128xbf16, #tpu.memory_space<vmem>>) attributes {dimension_semantics = [#tpu.dimension_semantics<parallel>], iteration_bounds = array<i64: 4>, scalar_prefetch = 0 : i64, scratch_operands = 0 : i64, tpu.core_type = #tpu.core_type<tc>, window_params = [{transform_indices = @transform_0, window_bounds = array<i64: 128, 128>}, {pipeline_mode = #tpu.pipeline_mode<synchronous>, transform_indices = @transform_1, window_bounds = array<i64: 128, 128>}, {pipeline_mode = #tpu.pipeline_mode<synchronous>, transform_indices = @transform_2, window_bounds = array<i64: 1, 128>}, {pipeline_mode = #tpu.pipeline_mode<synchronous>, transform_indices = @transform_3, window_bounds = array<i64: 64, 128>}, {pipeline_mode = #tpu.pipeline_mode<synchronous>, transform_indices = @transform_4, window_bounds = array<i64: 1, 128>}, {transform_indices = @transform_5, window_bounds = array<i64: 128, 128>}, {transform_indices = @transform_6, window_bounds = array<i64: 128, 128>}]} {
    %c0 = arith.constant 0 : index
    %c0_0 = arith.constant 0 : index
    %0 = vector.load %arg1[%c0, %c0_0] : memref<128x128xbf16, #tpu.memory_space<vmem>>, vector<128x128xbf16>
    %c0_1 = arith.constant 0 : index
    %c0_2 = arith.constant 0 : index
    %1 = vector.load %arg2[%c0_1, %c0_2] : memref<128x128xbf16, #tpu.memory_space<vmem>>, vector<128x128xbf16>
    %cst = arith.constant dense<0.000000e+00> : vector<128x128xf32>
    %2 = tpu.matmul %0, %1, %cst {dimension_numbers = #tpu.dot_dimension_numbers<[1], [0], [0], [1], [0, 0, 1, 1], [], []>} : vector<128x128xbf16>, vector<128x128xbf16>, vector<128x128xf32> -> vector<128x128xf32>
    %c0_3 = arith.constant 0 : index
    %c0_4 = arith.constant 0 : index
    %3 = vector.load %arg3[%c0_3, %c0_4] : memref<1x128xf32, #tpu.memory_space<vmem>>, vector<1x128xf32>
    %4 = vector.broadcast %3 : vector<1x128xf32> to vector<128x128xf32>
    %5 = arith.addf %2, %4 : vector<128x128xf32>
    %6 = arith.negf %5 : vector<128x128xf32>
    %7 = math.exp %6 : vector<128x128xf32>
    %cst_5 = arith.constant 1.000000e+00 : f32
    %8 = vector.broadcast %cst_5 : f32 to vector<128x128xf32>
    %9 = arith.addf %8, %7 : vector<128x128xf32>
    %10 = arith.divf %8, %9 : vector<128x128xf32>
    %11 = arith.mulf %5, %10 : vector<128x128xf32>
    %12 = arith.truncf %11 : vector<128x128xf32> to vector<128x128xbf16>
    %c0_6 = arith.constant 0 : index
    %c0_7 = arith.constant 0 : index
    %13 = vector.load %arg6[%c0_6, %c0_7] : memref<128x128xbf16, #tpu.memory_space<vmem>>, vector<128x128xbf16>
    tpu.vector_store %arg6[%c0_6, %c0_7], %12 {strides = array<i32>} : memref<128x128xbf16, #tpu.memory_space<vmem>>, vector<128x128xbf16>,
    %14 = vector.extract_strided_slice %11 {offsets = [0, 64], sizes = [128, 64], strides = [1, 1]} : vector<128x128xf32> to vector<128x64xf32>
    %15 = arith.truncf %14 : vector<128x64xf32> to vector<128x64xbf16>
    %c0_8 = arith.constant 0 : index
    %c0_9 = arith.constant 0 : index
    %16 = vector.load %arg4[%c0_8, %c0_9] : memref<64x128xbf16, #tpu.memory_space<vmem>>, vector<64x128xbf16>
    %cst_10 = arith.constant dense<0.000000e+00> : vector<128x128xf32>
    %17 = tpu.matmul %15, %16, %cst_10 {dimension_numbers = #tpu.dot_dimension_numbers<[1], [0], [0], [1], [0, 0, 1, 1], [], []>} : vector<128x64xbf16>, vector<64x128xbf16>, vector<128x128xf32> -> vector<128x128xf32>
    %c0_11 = arith.constant 0 : index
    %c0_12 = arith.constant 0 : index
    %18 = vector.load %arg5[%c0_11, %c0_12] : memref<1x128xf32, #tpu.memory_space<vmem>>, vector<1x128xf32>
    %19 = vector.broadcast %18 : vector<1x128xf32> to vector<128x128xf32>
    %20 = arith.addf %17, %19 : vector<128x128xf32>
    %21 = arith.truncf %20 : vector<128x128xf32> to vector<128x128xbf16>
    %c0_13 = arith.constant 0 : index
    %c0_14 = arith.constant 0 : index
    %22 = vector.load %arg7[%c0_13, %c0_14] : memref<128x128xbf16, #tpu.memory_space<vmem>>, vector<128x128xbf16>
    tpu.vector_store %arg7[%c0_13, %c0_14], %21 {strides = array<i32>} : memref<128x128xbf16, #tpu.memory_space<vmem>>, vector<128x128xbf16>,
    return
  }
  func.func @transform_0(%arg0: i32) -> (i32, i32) {
    %c0_i32 = arith.constant 0 : i32
    %c0_i32_0 = arith.constant 0 : i32
    return %arg0, %c0_i32 : i32, i32
  }
  func.func @transform_1(%arg0: i32) -> (i32, i32) {
    %c0_i32 = arith.constant 0 : i32
    %c0_i32_0 = arith.constant 0 : i32
    %c0_i32_1 = arith.constant 0 : i32
    return %c0_i32, %c0_i32_0 : i32, i32
  }
  func.func @transform_2(%arg0: i32) -> (i32, i32) {
    %c0_i32 = arith.constant 0 : i32
    %c0_i32_0 = arith.constant 0 : i32
    %c0_i32_1 = arith.constant 0 : i32
    return %c0_i32, %c0_i32_0 : i32, i32
  }
  func.func @transform_3(%arg0: i32) -> (i32, i32) {
    %c0_i32 = arith.constant 0 : i32
    %c0_i32_0 = arith.constant 0 : i32
    %c0_i32_1 = arith.constant 0 : i32
    return %c0_i32, %c0_i32_0 : i32, i32
  }
  func.func @transform_4(%arg0: i32) -> (i32, i32) {
    %c0_i32 = arith.constant 0 : i32
    %c0_i32_0 = arith.constant 0 : i32
    %c0_i32_1 = arith.constant 0 : i32
    return %c0_i32, %c0_i32_0 : i32, i32
  }
  func.func @transform_5(%arg0: i32) -> (i32, i32) {
    %c0_i32 = arith.constant 0 : i32
    %c0_i32_0 = arith.constant 0 : i32
    return %arg0, %c0_i32 : i32, i32
  }
  func.func @transform_6(%arg0: i32) -> (i32, i32) {
    %c0_i32 = arith.constant 0 : i32
    %c0_i32_0 = arith.constant 0 : i32
    return %arg0, %c0_i32 : i32, i32
  }
}

module attributes {stable_mosaic.version = 11 : i64} {
  func.func @_attn_pe_kernel(%arg0: i32, %arg1: i32, %arg2: i32, %arg3: memref<1x256x128xbf16, #tpu.memory_space<vmem>>, %arg4: memref<1x9x64xf32, #tpu.memory_space<vmem>>, %arg5: memref<1x1x64xf32, #tpu.memory_space<vmem>>, %arg6: memref<1x1x256x64xbf16, #tpu.memory_space<vmem>>, %arg7: memref<256x64xf32, #tpu.memory_space<vmem>>, %arg8: memref<18x18x64xf32, #tpu.memory_space<vmem>>) attributes {dimension_semantics = [#tpu.dimension_semantics<parallel>, #tpu.dimension_semantics<parallel>, #tpu.dimension_semantics<arbitrary>], iteration_bounds = array<i64: 1, 2, 1>, scalar_prefetch = 0 : i64, scratch_operands = 2 : i64, tpu.core_type = #tpu.core_type<tc>, window_params = [{transform_indices = @transform_0, window_bounds = array<i64: 1, 256, 128>}, {transform_indices = @transform_1, window_bounds = array<i64: 1, 9, 64>}, {transform_indices = @transform_2, window_bounds = array<i64: 1, 1, 64>}, {transform_indices = @transform_3, window_bounds = array<i64: 1, 1, 256, 64>}]} {
    %c0 = arith.constant 0 : index
    %c0_0 = arith.constant 0 : index
    %c0_1 = arith.constant 0 : index
    %0 = vector.load %arg3[%c0, %c0_0, %c0_1] : memref<1x256x128xbf16, #tpu.memory_space<vmem>>, vector<1x256x128xbf16>
    %1 = vector.shape_cast %0 : vector<1x256x128xbf16> to vector<256x128xbf16>
    %2 = vector.extract_strided_slice %1 {offsets = [0, 32], sizes = [256, 32], strides = [1, 1]} : vector<256x128xbf16> to vector<256x32xbf16>
    %3 = vector.extract_strided_slice %1 {offsets = [0, 64], sizes = [256, 64], strides = [1, 1]} : vector<256x128xbf16> to vector<256x64xbf16>
    %c0_i32 = arith.constant 0 : i32
    %4 = arith.cmpi eq, %arg2, %c0_i32 : i32
    %5 = arith.extui %4 : i1 to i32
    %c0_i32_2 = arith.constant 0 : i32
    %6 = arith.cmpi ne, %5, %c0_i32_2 : i32
    scf.if %6 {
      %cst_14 = arith.constant 0.000000e+00 : f32
      %37 = vector.broadcast %cst_14 : f32 to vector<18x18x64xf32>
      %c0_15 = arith.constant 0 : index
      %c0_16 = arith.constant 0 : index
      %c0_17 = arith.constant 0 : index
      %38 = vector.load %arg8[%c0_15, %c0_16, %c0_17] : memref<18x18x64xf32, #tpu.memory_space<vmem>>, vector<18x18x64xf32>
      tpu.vector_store %arg8[%c0_15, %c0_16, %c0_17], %37 {strides = array<i32>} : memref<18x18x64xf32, #tpu.memory_space<vmem>>, vector<18x18x64xf32>,
      %39 = arith.extf %3 : vector<256x64xbf16> to vector<256x64xf32>
      %40 = vector.shape_cast %39 : vector<256x64xf32> to vector<16x16x64xf32>
      %c1 = arith.constant 1 : index
      %c1_18 = arith.constant 1 : index
      %c0_19 = arith.constant 0 : index
      %41 = vector.load %arg8[%c1, %c1_18, %c0_19] : memref<18x18x64xf32, #tpu.memory_space<vmem>>, vector<16x16x64xf32>
      tpu.vector_store %arg8[%c1, %c1_18, %c0_19], %40 {strides = array<i32>} : memref<18x18x64xf32, #tpu.memory_space<vmem>>, vector<16x16x64xf32>,
      %c0_20 = arith.constant 0 : index
      %c0_21 = arith.constant 0 : index
      %c0_22 = arith.constant 0 : index
      %42 = vector.load %arg4[%c0_20, %c0_21, %c0_22] : memref<1x9x64xf32, #tpu.memory_space<vmem>>, vector<1x9x64xf32>
      %43 = vector.shape_cast %42 : vector<1x9x64xf32> to vector<9x64xf32>
      %cst_23 = arith.constant 0.000000e+00 : f32
      %44 = vector.broadcast %cst_23 : f32 to vector<16x16x64xf32>
      %c0_24 = arith.constant 0 : index
      %c0_25 = arith.constant 0 : index
      %c0_26 = arith.constant 0 : index
      %45 = vector.load %arg5[%c0_24, %c0_25, %c0_26] : memref<1x1x64xf32, #tpu.memory_space<vmem>>, vector<1x1x64xf32>
      %46 = vector.shape_cast %45 : vector<1x1x64xf32> to vector<1x64xf32>
      %47 = vector.shape_cast %46 : vector<1x64xf32> to vector<1x1x64xf32>
      %48 = vector.broadcast %47 : vector<1x1x64xf32> to vector<16x16x64xf32>
      %49 = arith.addf %44, %48 : vector<16x16x64xf32>
      %c0_27 = arith.constant 0 : index
      %c0_28 = arith.constant 0 : index
      %c0_29 = arith.constant 0 : index
      %50 = vector.load %arg8[%c0_27, %c0_28, %c0_29] : memref<18x18x64xf32, #tpu.memory_space<vmem>>, vector<16x16x64xf32>
      %51 = vector.extract_strided_slice %43 {offsets = [0, 0], sizes = [1, 64], strides = [1, 1]} : vector<9x64xf32> to vector<1x64xf32>
      %52 = vector.shape_cast %51 : vector<1x64xf32> to vector<64xf32>
      %53 = vector.shape_cast %52 : vector<64xf32> to vector<1x1x64xf32>
      %54 = vector.broadcast %53 : vector<1x1x64xf32> to vector<16x16x64xf32>
      %55 = arith.mulf %50, %54 : vector<16x16x64xf32>
      %56 = arith.addf %49, %55 : vector<16x16x64xf32>
      %c0_30 = arith.constant 0 : index
      %c1_31 = arith.constant 1 : index
      %c0_32 = arith.constant 0 : index
      %57 = vector.load %arg8[%c0_30, %c1_31, %c0_32] : memref<18x18x64xf32, #tpu.memory_space<vmem>>, vector<16x16x64xf32>
      %58 = vector.extract_strided_slice %43 {offsets = [1, 0], sizes = [1, 64], strides = [1, 1]} : vector<9x64xf32> to vector<1x64xf32>
      %59 = vector.shape_cast %58 : vector<1x64xf32> to vector<64xf32>
      %60 = vector.shape_cast %59 : vector<64xf32> to vector<1x1x64xf32>
      %61 = vector.broadcast %60 : vector<1x1x64xf32> to vector<16x16x64xf32>
      %62 = arith.mulf %57, %61 : vector<16x16x64xf32>
      %63 = arith.addf %56, %62 : vector<16x16x64xf32>
      %c0_33 = arith.constant 0 : index
      %c2 = arith.constant 2 : index
      %c0_34 = arith.constant 0 : index
      %64 = vector.load %arg8[%c0_33, %c2, %c0_34] : memref<18x18x64xf32, #tpu.memory_space<vmem>>, vector<16x16x64xf32>
      %65 = vector.extract_strided_slice %43 {offsets = [2, 0], sizes = [1, 64], strides = [1, 1]} : vector<9x64xf32> to vector<1x64xf32>
      %66 = vector.shape_cast %65 : vector<1x64xf32> to vector<64xf32>
      %67 = vector.shape_cast %66 : vector<64xf32> to vector<1x1x64xf32>
      %68 = vector.broadcast %67 : vector<1x1x64xf32> to vector<16x16x64xf32>
      %69 = arith.mulf %64, %68 : vector<16x16x64xf32>
      %70 = arith.addf %63, %69 : vector<16x16x64xf32>
      %c1_35 = arith.constant 1 : index
      %c0_36 = arith.constant 0 : index
      %c0_37 = arith.constant 0 : index
      %71 = vector.load %arg8[%c1_35, %c0_36, %c0_37] : memref<18x18x64xf32, #tpu.memory_space<vmem>>, vector<16x16x64xf32>
      %72 = vector.extract_strided_slice %43 {offsets = [3, 0], sizes = [1, 64], strides = [1, 1]} : vector<9x64xf32> to vector<1x64xf32>
      %73 = vector.shape_cast %72 : vector<1x64xf32> to vector<64xf32>
      %74 = vector.shape_cast %73 : vector<64xf32> to vector<1x1x64xf32>
      %75 = vector.broadcast %74 : vector<1x1x64xf32> to vector<16x16x64xf32>
      %76 = arith.mulf %71, %75 : vector<16x16x64xf32>
      %77 = arith.addf %70, %76 : vector<16x16x64xf32>
      %c1_38 = arith.constant 1 : index
      %c1_39 = arith.constant 1 : index
      %c0_40 = arith.constant 0 : index
      %78 = vector.load %arg8[%c1_38, %c1_39, %c0_40] : memref<18x18x64xf32, #tpu.memory_space<vmem>>, vector<16x16x64xf32>
      %79 = vector.extract_strided_slice %43 {offsets = [4, 0], sizes = [1, 64], strides = [1, 1]} : vector<9x64xf32> to vector<1x64xf32>
      %80 = vector.shape_cast %79 : vector<1x64xf32> to vector<64xf32>
      %81 = vector.shape_cast %80 : vector<64xf32> to vector<1x1x64xf32>
      %82 = vector.broadcast %81 : vector<1x1x64xf32> to vector<16x16x64xf32>
      %83 = arith.mulf %78, %82 : vector<16x16x64xf32>
      %84 = arith.addf %77, %83 : vector<16x16x64xf32>
      %c1_41 = arith.constant 1 : index
      %c2_42 = arith.constant 2 : index
      %c0_43 = arith.constant 0 : index
      %85 = vector.load %arg8[%c1_41, %c2_42, %c0_43] : memref<18x18x64xf32, #tpu.memory_space<vmem>>, vector<16x16x64xf32>
      %86 = vector.extract_strided_slice %43 {offsets = [5, 0], sizes = [1, 64], strides = [1, 1]} : vector<9x64xf32> to vector<1x64xf32>
      %87 = vector.shape_cast %86 : vector<1x64xf32> to vector<64xf32>
      %88 = vector.shape_cast %87 : vector<64xf32> to vector<1x1x64xf32>
      %89 = vector.broadcast %88 : vector<1x1x64xf32> to vector<16x16x64xf32>
      %90 = arith.mulf %85, %89 : vector<16x16x64xf32>
      %91 = arith.addf %84, %90 : vector<16x16x64xf32>
      %c2_44 = arith.constant 2 : index
      %c0_45 = arith.constant 0 : index
      %c0_46 = arith.constant 0 : index
      %92 = vector.load %arg8[%c2_44, %c0_45, %c0_46] : memref<18x18x64xf32, #tpu.memory_space<vmem>>, vector<16x16x64xf32>
      %93 = vector.extract_strided_slice %43 {offsets = [6, 0], sizes = [1, 64], strides = [1, 1]} : vector<9x64xf32> to vector<1x64xf32>
      %94 = vector.shape_cast %93 : vector<1x64xf32> to vector<64xf32>
      %95 = vector.shape_cast %94 : vector<64xf32> to vector<1x1x64xf32>
      %96 = vector.broadcast %95 : vector<1x1x64xf32> to vector<16x16x64xf32>
      %97 = arith.mulf %92, %96 : vector<16x16x64xf32>
      %98 = arith.addf %91, %97 : vector<16x16x64xf32>
      %c2_47 = arith.constant 2 : index
      %c1_48 = arith.constant 1 : index
      %c0_49 = arith.constant 0 : index
      %99 = vector.load %arg8[%c2_47, %c1_48, %c0_49] : memref<18x18x64xf32, #tpu.memory_space<vmem>>, vector<16x16x64xf32>
      %100 = vector.extract_strided_slice %43 {offsets = [7, 0], sizes = [1, 64], strides = [1, 1]} : vector<9x64xf32> to vector<1x64xf32>
      %101 = vector.shape_cast %100 : vector<1x64xf32> to vector<64xf32>
      %102 = vector.shape_cast %101 : vector<64xf32> to vector<1x1x64xf32>
      %103 = vector.broadcast %102 : vector<1x1x64xf32> to vector<16x16x64xf32>
      %104 = arith.mulf %99, %103 : vector<16x16x64xf32>
      %105 = arith.addf %98, %104 : vector<16x16x64xf32>
      %c2_50 = arith.constant 2 : index
      %c2_51 = arith.constant 2 : index
      %c0_52 = arith.constant 0 : index
      %106 = vector.load %arg8[%c2_50, %c2_51, %c0_52] : memref<18x18x64xf32, #tpu.memory_space<vmem>>, vector<16x16x64xf32>
      %107 = vector.extract_strided_slice %43 {offsets = [8, 0], sizes = [1, 64], strides = [1, 1]} : vector<9x64xf32> to vector<1x64xf32>
      %108 = vector.shape_cast %107 : vector<1x64xf32> to vector<64xf32>
      %109 = vector.shape_cast %108 : vector<64xf32> to vector<1x1x64xf32>
      %110 = vector.broadcast %109 : vector<1x1x64xf32> to vector<16x16x64xf32>
      %111 = arith.mulf %106, %110 : vector<16x16x64xf32>
      %112 = arith.addf %105, %111 : vector<16x16x64xf32>
      %113 = vector.shape_cast %112 : vector<16x16x64xf32> to vector<256x64xf32>
      %c0_53 = arith.constant 0 : index
      %c0_54 = arith.constant 0 : index
      %114 = vector.load %arg7[%c0_53, %c0_54] : memref<256x64xf32, #tpu.memory_space<vmem>>, vector<256x64xf32>
      tpu.vector_store %arg7[%c0_53, %c0_54], %113 {strides = array<i32>} : memref<256x64xf32, #tpu.memory_space<vmem>>, vector<256x64xf32>,
    } else {
    }
    %c256_i32 = arith.constant 256 : i32
    %7 = arith.muli %arg2, %c256_i32 : i32
    %8 = tpu.assume_multiple %7, 8 : i32
    %c0_3 = arith.constant 0 : index
    %9 = arith.index_cast %8 : i32 to index
    %c0_4 = arith.constant 0 : index
    %10 = vector.load %arg3[%c0_3, %9, %c0_4] : memref<1x256x128xbf16, #tpu.memory_space<vmem>>, vector<1x256x128xbf16>
    %11 = vector.shape_cast %10 : vector<1x256x128xbf16> to vector<256x128xbf16>
    %12 = vector.extract_strided_slice %11 {offsets = [0, 0], sizes = [256, 32], strides = [1, 1]} : vector<256x128xbf16> to vector<256x32xbf16>
    %13 = arith.extf %12 : vector<256x32xbf16> to vector<256x32xf32>
    %cst = arith.constant 0.176776692 : f32
    %14 = vector.broadcast %cst : f32 to vector<256x32xf32>
    %15 = arith.mulf %13, %14 : vector<256x32xf32>
    %16 = arith.truncf %15 : vector<256x32xf32> to vector<256x32xbf16>
    %cst_5 = arith.constant dense<0.000000e+00> : vector<256x256xf32>
    %17 = tpu.matmul %16, %2, %cst_5 {dimension_numbers = #tpu.dot_dimension_numbers<[1], [1], [0], [0], [0, 0, 1, 0], [], []>} : vector<256x32xbf16>, vector<256x32xbf16>, vector<256x256xf32> -> vector<256x256xf32>
    %cst_6 = arith.constant dense<0xFF800000> : vector<256xf32>
    %18 = vector.multi_reduction <maximumf>, %17, %cst_6 [1] : vector<256x256xf32> to vector<256xf32>
    %19 = vector.shape_cast %18 : vector<256xf32> to vector<256x1xf32>
    %20 = vector.broadcast %19 : vector<256x1xf32> to vector<256x256xf32>
    %21 = arith.subf %17, %20 : vector<256x256xf32>
    %22 = math.exp %21 : vector<256x256xf32>
    %cst_7 = arith.constant dense<0.000000e+00> : vector<256xf32>
    %23 = vector.multi_reduction <add>, %22, %cst_7 [1] : vector<256x256xf32> to vector<256xf32>
    %24 = vector.shape_cast %23 : vector<256xf32> to vector<256x1xf32>
    %25 = tpu.reciprocal %24 {approx = true} : vector<256x1xf32> -> vector<256x1xf32>
    %26 = vector.broadcast %25 : vector<256x1xf32> to vector<256x256xf32>
    %27 = arith.mulf %22, %26 : vector<256x256xf32>
    %28 = arith.truncf %27 : vector<256x256xf32> to vector<256x256xbf16>
    %cst_8 = arith.constant dense<0.000000e+00> : vector<256x64xf32>
    %29 = tpu.matmul %28, %3, %cst_8 {dimension_numbers = #tpu.dot_dimension_numbers<[1], [0], [0], [1], [0, 0, 1, 1], [], []>} : vector<256x256xbf16>, vector<256x64xbf16>, vector<256x64xf32> -> vector<256x64xf32>
    %30 = arith.index_cast %8 : i32 to index
    %c0_9 = arith.constant 0 : index
    %31 = vector.load %arg7[%30, %c0_9] : memref<256x64xf32, #tpu.memory_space<vmem>>, vector<256x64xf32>
    %32 = arith.addf %29, %31 : vector<256x64xf32>
    %33 = arith.truncf %32 : vector<256x64xf32> to vector<256x64xbf16>
    %c0_10 = arith.constant 0 : index
    %c0_11 = arith.constant 0 : index
    %c0_12 = arith.constant 0 : index
    %c0_13 = arith.constant 0 : index
    %34 = vector.load %arg6[%c0_10, %c0_11, %c0_12, %c0_13] : memref<1x1x256x64xbf16, #tpu.memory_space<vmem>>, vector<1x1x256x64xbf16>
    %35 = vector.shape_cast %34 : vector<1x1x256x64xbf16> to vector<256x64xbf16>
    %36 = vector.shape_cast %33 : vector<256x64xbf16> to vector<1x1x256x64xbf16>
    tpu.vector_store %arg6[%c0_10, %c0_11, %c0_12, %c0_13], %36 {strides = array<i32>} : memref<1x1x256x64xbf16, #tpu.memory_space<vmem>>, vector<1x1x256x64xbf16>,
    return
  }
  func.func @transform_0(%arg0: i32, %arg1: i32, %arg2: i32) -> (i32, i32, i32) {
    %c0_i32 = arith.constant 0 : i32
    %c0_i32_0 = arith.constant 0 : i32
    return %arg1, %c0_i32, %arg0 : i32, i32, i32
  }
  func.func @transform_1(%arg0: i32, %arg1: i32, %arg2: i32) -> (i32, i32, i32) {
    %c0_i32 = arith.constant 0 : i32
    %c0_i32_0 = arith.constant 0 : i32
    %c0_i32_1 = arith.constant 0 : i32
    return %arg0, %c0_i32, %c0_i32_0 : i32, i32, i32
  }
  func.func @transform_2(%arg0: i32, %arg1: i32, %arg2: i32) -> (i32, i32, i32) {
    %c0_i32 = arith.constant 0 : i32
    %c0_i32_0 = arith.constant 0 : i32
    %c0_i32_1 = arith.constant 0 : i32
    return %arg0, %c0_i32, %c0_i32_0 : i32, i32, i32
  }
  func.func @transform_3(%arg0: i32, %arg1: i32, %arg2: i32) -> (i32, i32, i32, i32) {
    %c0_i32 = arith.constant 0 : i32
    %c0_i32_0 = arith.constant 0 : i32
    return %arg0, %arg1, %arg2, %c0_i32 : i32, i32, i32, i32
  }
}

module attributes {stable_mosaic.version = 11 : i64} {
  func.func @_tail_kernel(%arg0: i32, %arg1: memref<128x128xbf16, #tpu.memory_space<vmem>>, %arg2: memref<128x64xbf16, #tpu.memory_space<vmem>>, %arg3: memref<64x64xbf16, #tpu.memory_space<vmem>>, %arg4: memref<1x64xf32, #tpu.memory_space<vmem>>, %arg5: memref<64x128xbf16, #tpu.memory_space<vmem>>, %arg6: memref<1x128xf32, #tpu.memory_space<vmem>>, %arg7: memref<128x64xbf16, #tpu.memory_space<vmem>>, %arg8: memref<1x64xf32, #tpu.memory_space<vmem>>, %arg9: memref<128x128xbf16, #tpu.memory_space<vmem>>, %arg10: memref<1x128xf32, #tpu.memory_space<vmem>>, %arg11: memref<128x128xf32, #tpu.memory_space<vmem>>) attributes {dimension_semantics = [#tpu.dimension_semantics<parallel>], iteration_bounds = array<i64: 4>, scalar_prefetch = 0 : i64, scratch_operands = 0 : i64, tpu.core_type = #tpu.core_type<tc>, window_params = [{transform_indices = @transform_0, window_bounds = array<i64: 128, 128>}, {transform_indices = @transform_1, window_bounds = array<i64: 128, 64>}, {pipeline_mode = #tpu.pipeline_mode<synchronous>, transform_indices = @transform_2, window_bounds = array<i64: 64, 64>}, {pipeline_mode = #tpu.pipeline_mode<synchronous>, transform_indices = @transform_3, window_bounds = array<i64: 1, 64>}, {pipeline_mode = #tpu.pipeline_mode<synchronous>, transform_indices = @transform_4, window_bounds = array<i64: 64, 128>}, {pipeline_mode = #tpu.pipeline_mode<synchronous>, transform_indices = @transform_5, window_bounds = array<i64: 1, 128>}, {pipeline_mode = #tpu.pipeline_mode<synchronous>, transform_indices = @transform_6, window_bounds = array<i64: 128, 64>}, {pipeline_mode = #tpu.pipeline_mode<synchronous>, transform_indices = @transform_7, window_bounds = array<i64: 1, 64>}, {pipeline_mode = #tpu.pipeline_mode<synchronous>, transform_indices = @transform_8, window_bounds = array<i64: 128, 128>}, {pipeline_mode = #tpu.pipeline_mode<synchronous>, transform_indices = @transform_9, window_bounds = array<i64: 1, 128>}, {transform_indices = @transform_10, window_bounds = array<i64: 128, 128>}]} {
    %c0 = arith.constant 0 : index
    %c0_0 = arith.constant 0 : index
    %0 = vector.load %arg1[%c0, %c0_0] : memref<128x128xbf16, #tpu.memory_space<vmem>>, vector<128x128xbf16>
    %1 = vector.extract_strided_slice %0 {offsets = [0, 0], sizes = [128, 64], strides = [1, 1]} : vector<128x128xbf16> to vector<128x64xbf16>
    %2 = vector.extract_strided_slice %0 {offsets = [0, 64], sizes = [128, 64], strides = [1, 1]} : vector<128x128xbf16> to vector<128x64xbf16>
    %3 = arith.extf %2 : vector<128x64xbf16> to vector<128x64xf32>
    %c0_1 = arith.constant 0 : index
    %c0_2 = arith.constant 0 : index
    %4 = vector.load %arg2[%c0_1, %c0_2] : memref<128x64xbf16, #tpu.memory_space<vmem>>, vector<128x64xbf16>
    %c0_3 = arith.constant 0 : index
    %c0_4 = arith.constant 0 : index
    %5 = vector.load %arg3[%c0_3, %c0_4] : memref<64x64xbf16, #tpu.memory_space<vmem>>, vector<64x64xbf16>
    %cst = arith.constant dense<0.000000e+00> : vector<128x64xf32>
    %6 = tpu.matmul %4, %5, %cst {dimension_numbers = #tpu.dot_dimension_numbers<[1], [0], [0], [1], [0, 0, 1, 1], [], []>} : vector<128x64xbf16>, vector<64x64xbf16>, vector<128x64xf32> -> vector<128x64xf32>
    %7 = arith.addf %3, %6 : vector<128x64xf32>
    %c0_5 = arith.constant 0 : index
    %c0_6 = arith.constant 0 : index
    %8 = vector.load %arg4[%c0_5, %c0_6] : memref<1x64xf32, #tpu.memory_space<vmem>>, vector<1x64xf32>
    %9 = vector.broadcast %8 : vector<1x64xf32> to vector<128x64xf32>
    %10 = arith.addf %7, %9 : vector<128x64xf32>
    %11 = arith.truncf %10 : vector<128x64xf32> to vector<128x64xbf16>
    %c0_7 = arith.constant 0 : index
    %c0_8 = arith.constant 0 : index
    %12 = vector.load %arg5[%c0_7, %c0_8] : memref<64x128xbf16, #tpu.memory_space<vmem>>, vector<64x128xbf16>
    %cst_9 = arith.constant dense<0.000000e+00> : vector<128x128xf32>
    %13 = tpu.matmul %11, %12, %cst_9 {dimension_numbers = #tpu.dot_dimension_numbers<[1], [0], [0], [1], [0, 0, 1, 1], [], []>} : vector<128x64xbf16>, vector<64x128xbf16>, vector<128x128xf32> -> vector<128x128xf32>
    %c0_10 = arith.constant 0 : index
    %c0_11 = arith.constant 0 : index
    %14 = vector.load %arg6[%c0_10, %c0_11] : memref<1x128xf32, #tpu.memory_space<vmem>>, vector<1x128xf32>
    %15 = vector.broadcast %14 : vector<1x128xf32> to vector<128x128xf32>
    %16 = arith.addf %13, %15 : vector<128x128xf32>
    %17 = arith.negf %16 : vector<128x128xf32>
    %18 = math.exp %17 : vector<128x128xf32>
    %cst_12 = arith.constant 1.000000e+00 : f32
    %19 = vector.broadcast %cst_12 : f32 to vector<128x128xf32>
    %20 = arith.addf %19, %18 : vector<128x128xf32>
    %21 = arith.divf %19, %20 : vector<128x128xf32>
    %22 = arith.mulf %16, %21 : vector<128x128xf32>
    %23 = arith.truncf %22 : vector<128x128xf32> to vector<128x128xbf16>
    %c0_13 = arith.constant 0 : index
    %c0_14 = arith.constant 0 : index
    %24 = vector.load %arg7[%c0_13, %c0_14] : memref<128x64xbf16, #tpu.memory_space<vmem>>, vector<128x64xbf16>
    %cst_15 = arith.constant dense<0.000000e+00> : vector<128x64xf32>
    %25 = tpu.matmul %23, %24, %cst_15 {dimension_numbers = #tpu.dot_dimension_numbers<[1], [0], [0], [1], [0, 0, 1, 1], [], []>} : vector<128x128xbf16>, vector<128x64xbf16>, vector<128x64xf32> -> vector<128x64xf32>
    %26 = arith.addf %10, %25 : vector<128x64xf32>
    %c0_16 = arith.constant 0 : index
    %c0_17 = arith.constant 0 : index
    %27 = vector.load %arg8[%c0_16, %c0_17] : memref<1x64xf32, #tpu.memory_space<vmem>>, vector<1x64xf32>
    %28 = vector.broadcast %27 : vector<1x64xf32> to vector<128x64xf32>
    %29 = arith.addf %26, %28 : vector<128x64xf32>
    %30 = arith.truncf %29 : vector<128x64xf32> to vector<128x64xbf16>
    %31 = tpu.concatenate %1, %30 in 1 : vector<128x64xbf16>, vector<128x64xbf16> -> vector<128x128xbf16>
    %c0_18 = arith.constant 0 : index
    %c0_19 = arith.constant 0 : index
    %32 = vector.load %arg9[%c0_18, %c0_19] : memref<128x128xbf16, #tpu.memory_space<vmem>>, vector<128x128xbf16>
    %cst_20 = arith.constant dense<0.000000e+00> : vector<128x128xf32>
    %33 = tpu.matmul %31, %32, %cst_20 {dimension_numbers = #tpu.dot_dimension_numbers<[1], [0], [0], [1], [0, 0, 1, 1], [], []>} : vector<128x128xbf16>, vector<128x128xbf16>, vector<128x128xf32> -> vector<128x128xf32>
    %c0_21 = arith.constant 0 : index
    %c0_22 = arith.constant 0 : index
    %34 = vector.load %arg10[%c0_21, %c0_22] : memref<1x128xf32, #tpu.memory_space<vmem>>, vector<1x128xf32>
    %35 = vector.broadcast %34 : vector<1x128xf32> to vector<128x128xf32>
    %36 = arith.addf %33, %35 : vector<128x128xf32>
    %37 = arith.negf %36 : vector<128x128xf32>
    %38 = math.exp %37 : vector<128x128xf32>
    %cst_23 = arith.constant 1.000000e+00 : f32
    %39 = vector.broadcast %cst_23 : f32 to vector<128x128xf32>
    %40 = arith.addf %39, %38 : vector<128x128xf32>
    %41 = arith.divf %39, %40 : vector<128x128xf32>
    %42 = arith.mulf %36, %41 : vector<128x128xf32>
    %c0_24 = arith.constant 0 : index
    %c0_25 = arith.constant 0 : index
    %43 = vector.load %arg11[%c0_24, %c0_25] : memref<128x128xf32, #tpu.memory_space<vmem>>, vector<128x128xf32>
    tpu.vector_store %arg11[%c0_24, %c0_25], %42 {strides = array<i32>} : memref<128x128xf32, #tpu.memory_space<vmem>>, vector<128x128xf32>,
    return
  }
  func.func @transform_0(%arg0: i32) -> (i32, i32) {
    %c0_i32 = arith.constant 0 : i32
    %c0_i32_0 = arith.constant 0 : i32
    return %arg0, %c0_i32 : i32, i32
  }
  func.func @transform_1(%arg0: i32) -> (i32, i32) {
    %c0_i32 = arith.constant 0 : i32
    %c0_i32_0 = arith.constant 0 : i32
    return %arg0, %c0_i32 : i32, i32
  }
  func.func @transform_2(%arg0: i32) -> (i32, i32) {
    %c0_i32 = arith.constant 0 : i32
    %c0_i32_0 = arith.constant 0 : i32
    %c0_i32_1 = arith.constant 0 : i32
    return %c0_i32, %c0_i32_0 : i32, i32
  }
  func.func @transform_3(%arg0: i32) -> (i32, i32) {
    %c0_i32 = arith.constant 0 : i32
    %c0_i32_0 = arith.constant 0 : i32
    %c0_i32_1 = arith.constant 0 : i32
    return %c0_i32, %c0_i32_0 : i32, i32
  }
  func.func @transform_4(%arg0: i32) -> (i32, i32) {
    %c0_i32 = arith.constant 0 : i32
    %c0_i32_0 = arith.constant 0 : i32
    %c0_i32_1 = arith.constant 0 : i32
    return %c0_i32, %c0_i32_0 : i32, i32
  }
  func.func @transform_5(%arg0: i32) -> (i32, i32) {
    %c0_i32 = arith.constant 0 : i32
    %c0_i32_0 = arith.constant 0 : i32
    %c0_i32_1 = arith.constant 0 : i32
    return %c0_i32, %c0_i32_0 : i32, i32
  }
  func.func @transform_6(%arg0: i32) -> (i32, i32) {
    %c0_i32 = arith.constant 0 : i32
    %c0_i32_0 = arith.constant 0 : i32
    %c0_i32_1 = arith.constant 0 : i32
    return %c0_i32, %c0_i32_0 : i32, i32
  }
  func.func @transform_7(%arg0: i32) -> (i32, i32) {
    %c0_i32 = arith.constant 0 : i32
    %c0_i32_0 = arith.constant 0 : i32
    %c0_i32_1 = arith.constant 0 : i32
    return %c0_i32, %c0_i32_0 : i32, i32
  }
  func.func @transform_8(%arg0: i32) -> (i32, i32) {
    %c0_i32 = arith.constant 0 : i32
    %c0_i32_0 = arith.constant 0 : i32
    %c0_i32_1 = arith.constant 0 : i32
    return %c0_i32, %c0_i32_0 : i32, i32
  }
  func.func @transform_9(%arg0: i32) -> (i32, i32) {
    %c0_i32 = arith.constant 0 : i32
    %c0_i32_0 = arith.constant 0 : i32
    %c0_i32_1 = arith.constant 0 : i32
    return %c0_i32, %c0_i32_0 : i32, i32
  }
  func.func @transform_10(%arg0: i32) -> (i32, i32) {
    %c0_i32 = arith.constant 0 : i32
    %c0_i32_0 = arith.constant 0 : i32
    return %arg0, %c0_i32 : i32, i32
  }
}

</mosaic_0001>

<llo_original>
// kernel: psa_forward.3
$region0: #{psa_forward.3}
  #allocation0 [shape = 'u32[]', space=smem, size = 0x4, offset = 0x4, fixed_abs, tag = 'smem constant byte address 0x4 - core index']
  #allocation1 [shape = 'u32[144,128]{1,0:T(1,128)}', space=vmem, size = 0x12000, scoped, tag = 'internal scratch']
  %s0 = inlined_call_operand.vmem [shape: bf16[512,128], index: 0, kind: input, shape index: {}]
  %s1 = inlined_call_operand.vmem [shape: bf16[128,128], index: 1, kind: input, shape index: {}]
  %s2 = inlined_call_operand.vmem [shape: f32[1,128], index: 2, kind: input, shape index: {}]
  %s3 = inlined_call_operand.vmem [shape: bf16[64,128], index: 3, kind: input, shape index: {}]
  %s4 = inlined_call_operand.vmem [shape: f32[1,128], index: 4, kind: input, shape index: {}]
  %s5 = inlined_call_operand.vmem [shape: bf16[512,128], index: 5, kind: output, shape index: {0}]
  %s6 = inlined_call_operand.vmem [shape: bf16[512,128], index: 6, kind: output, shape index: {1}]
  %7 = xla_tuple %s5, %s6
  %s8 = sld [smem:[#allocation0]]
  $region61: #{psa_forward.3} parent=0
    _
  %s10 = ssub.s32 1, %s8
  %s11 = scalar_select 0, %s10, %s8
  loop: start=0, step=1, limit=6
  $region2: #{psa_forward.3} parent=0 // loop_pre_header
    _
  $region3: #{psa_forward.3} parent=0 // loop_header
    %s13 = sphi 0, %s17
    %p14 = scmp.ge.s32.totalorder %s13, 6
    %s23 = sphi 0, %s25
    %s26 = sphi 0, %s23
    %s27 = sphi 0, %s26
    %s43 = sphi 0, %s27
    %s47 = sphi 0, %s47
    %s49 = sphi 0, %s47
    %s50 = sphi 0, %s49
    %s64 = sphi 0, %s50
    %s68 = sphi 0, %s68
    %s70 = sphi 0, %s68
    %s71 = sphi 0, %s70
    %s85 = sphi 0, %s71
    %s89 = sphi 0, %s89
    %s91 = sphi 0, %s89
    %s92 = sphi 0, %s91
    %s106 = sphi 0, %s92
    %s110 = sphi 0, %s110
    %s112 = sphi 0, %s110
    %s113 = sphi 0, %s112
    %s127 = sphi 0, %s113
    %s133 = sphi 0, %s135
    %s136 = sphi 0, %s133
    %s137 = sphi 0, %s136
    %s153 = sphi 0, %s137
    %s159 = sphi 0, %s161
    %s162 = sphi 0, %s159
    %s163 = sphi 0, %s162
    %s179 = sphi 0, %s163
  $region4: #{psa_forward.3} parent=0 // loop_header_branch
    %16 = sbr.rel (%p14) target = $region8
  $region5: #{psa_forward.3} parent=0 // loop_body
    %s18 = ssub.s32 %s13, 1
    %s19 = ssub.s32 %s13, 2
    %s20 = sadd.s32 %s13, 1
    %s21 = ssub.s32 %s13, %s20
    %p22 = scmp.eq.s32.totalorder %s21, 0
    %s24 = sadd.s32 %s23, 1
    %s25 = scalar_select %p22, %s23, %s24
    %p28 = pneg %p22
    %p29 = scmp.eq.s32.totalorder %s13, 3
    %p30 = por %p28, %p29
    %p31 = scmp.ne.s32.totalorder %s23, %s26
    %p32 = scmp.eq.s32.totalorder %s13, 0
    %p33 = por %p31, %p32
    %p34 = scmp.ne.s32.totalorder %s23, %s26
    %p35 = scmp.eq.s32.totalorder %s18, 3
    %p36 = por %p34, %p35
    %p37 = scmp.ne.s32.totalorder %s26, %s27
    %p38 = scmp.eq.s32.totalorder %s18, 0
    %p39 = por %p37, %p38
    %p40 = scmp.ne.s32.totalorder %s26, %s27
    %p41 = scmp.eq.s32.totalorder %s19, 3
    %p42 = por %p40, %p41
    %p44 = scmp.ne.s32.totalorder %s27, %s43
    %p45 = scmp.eq.s32.totalorder %s19, 0
    %p46 = por %p44, %p45
    %s48 = sadd.s32 %s47, 1
    %p51 = scmp.eq.s32.totalorder %s13, 3
    %p52 = scmp.ne.s32.totalorder %s47, %s49
    %p53 = scmp.eq.s32.totalorder %s13, 0
    %p54 = por %p52, %p53
    %p55 = scmp.ne.s32.totalorder %s47, %s49
    %p56 = scmp.eq.s32.totalorder %s18, 3
    %p57 = por %p55, %p56
    %p58 = scmp.ne.s32.totalorder %s49, %s50
    %p59 = scmp.eq.s32.totalorder %s18, 0
    %p60 = por %p58, %p59
    %p61 = scmp.ne.s32.totalorder %s49, %s50
    %p62 = scmp.eq.s32.totalorder %s19, 3
    %p63 = por %p61, %p62
    %p65 = scmp.ne.s32.totalorder %s50, %s64
    %p66 = scmp.eq.s32.totalorder %s19, 0
    %p67 = por %p65, %p66
    %s69 = sadd.s32 %s68, 1
    %p72 = scmp.eq.s32.totalorder %s13, 3
    %p73 = scmp.ne.s32.totalorder %s68, %s70
    %p74 = scmp.eq.s32.totalorder %s13, 0
    %p75 = por %p73, %p74
    %p76 = scmp.ne.s32.totalorder %s68, %s70
    %p77 = scmp.eq.s32.totalorder %s18, 3
    %p78 = por %p76, %p77
    %p79 = scmp.ne.s32.totalorder %s70, %s71
    %p80 = scmp.eq.s32.totalorder %s18, 0
    %p81 = por %p79, %p80
    %p82 = scmp.ne.s32.totalorder %s70, %s71
    %p83 = scmp.eq.s32.totalorder %s19, 3
    %p84 = por %p82, %p83
    %p86 = scmp.ne.s32.totalorder %s71, %s85
    %p87 = scmp.eq.s32.totalorder %s19, 0
    %p88 = por %p86, %p87
    %s90 = sadd.s32 %s89, 1
    %p93 = scmp.eq.s32.totalorder %s13, 3
    %p94 = scmp.ne.s32.totalorder %s89, %s91
    %p95 = scmp.eq.s32.totalorder %s13, 0
    %p96 = por %p94, %p95
    %p97 = scmp.ne.s32.totalorder %s89, %s91
    %p98 = scmp.eq.s32.totalorder %s18, 3
    %p99 = por %p97, %p98
    %p100 = scmp.ne.s32.totalorder %s91, %s92
    %p101 = scmp.eq.s32.totalorder %s18, 0
    %p102 = por %p100, %p101
    %p103 = scmp.ne.s32.totalorder %s91, %s92
    %p104 = scmp.eq.s32.totalorder %s19, 3
    %p105 = por %p103, %p104
    %p107 = scmp.ne.s32.totalorder %s92, %s106
    %p108 = scmp.eq.s32.totalorder %s19, 0
    %p109 = por %p107, %p108
    %s111 = sadd.s32 %s110, 1
    %p114 = scmp.eq.s32.totalorder %s13, 3
    %p115 = scmp.ne.s32.totalorder %s110, %s112
    %p116 = scmp.eq.s32.totalorder %s13, 0
    %p117 = por %p115, %p116
    %p118 = scmp.ne.s32.totalorder %s110, %s112
    %p119 = scmp.eq.s32.totalorder %s18, 3
    %p120 = por %p118, %p119
    %p121 = scmp.ne.s32.totalorder %s112, %s113
    %p122 = scmp.eq.s32.totalorder %s18, 0
    %p123 = por %p121, %p122
    %p124 = scmp.ne.s32.totalorder %s112, %s113
    %p125 = scmp.eq.s32.totalorder %s19, 3
    %p126 = por %p124, %p125
    %p128 = scmp.ne.s32.totalorder %s113, %s127
    %p129 = scmp.eq.s32.totalorder %s19, 0
    %p130 = por %p128, %p129
    %s131 = ssub.s32 %s13, %s20
    %p132 = scmp.eq.s32.totalorder %s131, 0
    %s134 = sadd.s32 %s133, 1
    %s135 = scalar_select %p132, %s133, %s134
    %p138 = pneg %p132
    %p139 = scmp.eq.s32.totalorder %s13, 3
    %p140 = por %p138, %p139
    %p141 = scmp.ne.s32.totalorder %s133, %s136
    %p142 = scmp.eq.s32.totalorder %s13, 0
    %p143 = por %p141, %p142
    %p144 = scmp.ne.s32.totalorder %s133, %s136
    %p145 = scmp.eq.s32.totalorder %s18, 3
    %p146 = por %p144, %p145
    %p147 = scmp.ne.s32.totalorder %s136, %s137
    %p148 = scmp.eq.s32.totalorder %s18, 0
    %p149 = por %p147, %p148
    %p150 = scmp.ne.s32.totalorder %s136, %s137
    %p151 = scmp.eq.s32.totalorder %s19, 3
    %p152 = por %p150, %p151
    %p154 = scmp.ne.s32.totalorder %s137, %s153
    %p155 = scmp.eq.s32.totalorder %s19, 0
    %p156 = por %p154, %p155
    %s157 = ssub.s32 %s13, %s20
    %p158 = scmp.eq.s32.totalorder %s157, 0
    %s160 = sadd.s32 %s159, 1
    %s161 = scalar_select %p158, %s159, %s160
    %p164 = pneg %p158
    %p165 = scmp.eq.s32.totalorder %s13, 3
    %p166 = por %p164, %p165
    %p167 = scmp.ne.s32.totalorder %s159, %s162
    %p168 = scmp.eq.s32.totalorder %s13, 0
    %p169 = por %p167, %p168
    %p170 = scmp.ne.s32.totalorder %s159, %s162
    %p171 = scmp.eq.s32.totalorder %s18, 3
    %p172 = por %p170, %p171
    %p173 = scmp.ne.s32.totalorder %s162, %s163
    %p174 = scmp.eq.s32.totalorder %s18, 0
    %p175 = por %p173, %p174
    %p176 = scmp.ne.s32.totalorder %s162, %s163
    %p177 = scmp.eq.s32.totalorder %s19, 3
    %p178 = por %p176, %p177
    %p180 = scmp.ne.s32.totalorder %s163, %s179
    %p181 = scmp.eq.s32.totalorder %s19, 0
    %p182 = por %p180, %p181
    %p183 = scmp.le.s32.totalorder 1, %s13
    %p184 = scmp.lt.s32.totalorder %s13, 5
    %p185 = pnand %p183, %p184
    %p186 = pneg %p185
    // Predicated region
    $region9: #{psa_forward.3} parent=5 // pred_check
      _
    $region10: #{psa_forward.3} parent=5 // pred_check_branch
      %188 = sbr.rel (%p185) target = $region12
    $region11: #{psa_forward.3} parent=5 // pred_region
      %s189 = ssub.s32 %s13, 1
      // Predicated region
      $region13: #{psa_forward.3} parent=11 // pred_check
        %p190 = pneg %p60
      $region14: #{psa_forward.3} parent=11 // pred_check_branch
        %192 = sbr.rel (%p190) target = $region16
      $region15: #{psa_forward.3} parent=11 // pred_region
        _
      $region16: #{psa_forward.3} parent=11 // pred_fallthru
        _
      // Predicated region
      $region17: #{psa_forward.3} parent=11 // pred_check
        %p193 = pneg %p81
      $region18: #{psa_forward.3} parent=11 // pred_check_branch
        %195 = sbr.rel (%p193) target = $region20
      $region19: #{psa_forward.3} parent=11 // pred_region
        _
      $region20: #{psa_forward.3} parent=11 // pred_fallthru
        _
      // Predicated region
      $region21: #{psa_forward.3} parent=11 // pred_check
        %p196 = pneg %p102
      $region22: #{psa_forward.3} parent=11 // pred_check_branch
        %198 = sbr.rel (%p196) target = $region24
      $region23: #{psa_forward.3} parent=11 // pred_region
        _
      $region24: #{psa_forward.3} parent=11 // pred_fallthru
        _
      // Predicated region
      $region25: #{psa_forward.3} parent=11 // pred_check
        %p199 = pneg %p123
      $region26: #{psa_forward.3} parent=11 // pred_check_branch
        %201 = sbr.rel (%p199) target = $region28
      $region27: #{psa_forward.3} parent=11 // pred_region
        _
      $region28: #{psa_forward.3} parent=11 // pred_fallthru
        _
    $region12: #{psa_forward.3} parent=5 // pred_fallthru
      _
    %p202 = scmp.lt.s32.totalorder %s13, 4
    // Predicated region
    $region29: #{psa_forward.3} parent=5 // pred_check
      %p203 = pneg %p202
    $region30: #{psa_forward.3} parent=5 // pred_check_branch
      %205 = sbr.rel (%p203) target = $region32
    $region31: #{psa_forward.3} parent=5 // pred_region
      // Predicated region
      $region33: #{psa_forward.3} parent=31 // pred_check
        %p206 = pneg %p33
      $region34: #{psa_forward.3} parent=31 // pred_check_branch
        %208 = sbr.rel (%p206) target = $region36
      $region35: #{psa_forward.3} parent=31 // pred_region
        %s209 = smul.u32 16, %s13
        %p210 = scmp.lt.s32.totalorder %s209, 63
        %s211 = scalar_select %p210, %s209, 63
        %s212 = smul.addr %s211, 4
        %s213 = scalar_lea.vmem %s0, %s212
        %s214 = smul.u32 16, %s13
      $region36: #{psa_forward.3} parent=31 // pred_fallthru
        _
    $region32: #{psa_forward.3} parent=5 // pred_fallthru
      _
    %p215 = scmp.le.s32.totalorder 1, %s13
    %p216 = scmp.lt.s32.totalorder %s13, 5
    %p217 = pnand %p215, %p216
    %p218 = pneg %p217
    // Predicated region
    $region37: #{psa_forward.3} parent=5 // pred_check
      _
    $region38: #{psa_forward.3} parent=5 // pred_check_branch
      %220 = sbr.rel (%p217) target = $region40
    $region39: #{psa_forward.3} parent=5 // pred_region
      %s221 = ssub.s32 %s13, 1
      %s222 = smul.u32 16, %s18
      %p223 = scmp.lt.s32.totalorder %s222, 63
      %s224 = scalar_select %p223, %s222, 63
      %s225 = smul.addr %s224, 4
      %s226 = scalar_lea.vmem %s0, %s225
      %p227 = pneg %p39
      %p228 = pneg %p36
      %p229 = pneg %p60
      %p230 = pneg %p57
      %p231 = pneg %p81
      %p232 = pneg %p78
      %p233 = pneg %p102
      %p234 = pneg %p99
      %p235 = pneg %p123
      %p236 = pneg %p120
      %p237 = pneg %p149
      %p238 = pneg %p146
      %s239 = smul.u32 16, %s18
      %p240 = scmp.lt.s32.totalorder %s239, 63
      %s241 = scalar_select %p240, %s239, 63
      %s242 = smul.addr %s241, 4
      %s243 = scalar_lea.vmem %s5, %s242
      %p244 = pneg %p175
      %p245 = pneg %p172
      %s246 = smul.u32 16, %s18
      %p247 = scmp.lt.s32.totalorder %s246, 63
      %s248 = scalar_select %p247, %s246, 63
      %s249 = smul.addr %s248, 4
      %s250 = scalar_lea.vmem %s6, %s249
      %s251 = smul.u32 16, %s18
      %p252 = scmp.lt.s32.totalorder %s251, 63
      %s253 = scalar_select %p252, %s251, 63
      %s254 = smul.addr %s253, 4
      %s255 = scalar_lea.vmem %s0, %s254
      %s256 = smul.u32 16, %s18
      %s257 = smul.u32 16, %s18
      %p258 = scmp.lt.s32.totalorder %s257, 63
      %s259 = scalar_select %p258, %s257, 63
      %s260 = smul.addr %s259, 4
      %s261 = scalar_lea.vmem %s5, %s260
      %s262 = smul.u32 16, %s18
      %s263 = smul.u32 16, %s18
      %p264 = scmp.lt.s32.totalorder %s263, 63
      %s265 = scalar_select %p264, %s263, 63
      %s266 = smul.addr %s265, 4
      %s267 = scalar_lea.vmem %s6, %s266
      %s268 = smul.u32 16, %s18
      %v270 = vld [vmem:[%s255] sm:$0xf]
      %v271 = vld [vmem:[%s255 + $0x4] sm:$0xf]
      %v272 = vld [vmem:[%s255 + $0x8] sm:$0xf]
      %v273 = vld [vmem:[%s255 + $0xc] sm:$0xf]
      %v274 = vld [vmem:[%s255 + $0x10] sm:$0xf]
      %v275 = vld [vmem:[%s255 + $0x14] sm:$0xf]
      %v276 = vld [vmem:[%s255 + $0x18] sm:$0xf]
      %v277 = vld [vmem:[%s255 + $0x1c] sm:$0xf]
      %v278 = vld [vmem:[%s255 + $0x20] sm:$0xf]
      %v279 = vld [vmem:[%s255 + $0x24] sm:$0xf]
      %v280 = vld [vmem:[%s255 + $0x28] sm:$0xf]
      %v281 = vld [vmem:[%s255 + $0x2c] sm:$0xf]
      %v282 = vld [vmem:[%s255 + $0x30] sm:$0xf]
      %v283 = vld [vmem:[%s255 + $0x34] sm:$0xf]
      %v284 = vld [vmem:[%s255 + $0x38] sm:$0xf]
      %v285 = vld [vmem:[%s255 + $0x3c] sm:$0xf]
      %v286 = vld [vmem:[%s1] sm:$0xf]
      %v287 = vld [vmem:[%s1 + $0x4] sm:$0xf]
      %v288 = vld [vmem:[%s1 + $0x8] sm:$0xf]
      %v289 = vld [vmem:[%s1 + $0xc] sm:$0xf]
      %v290 = vld [vmem:[%s1 + $0x10] sm:$0xf]
      %v291 = vld [vmem:[%s1 + $0x14] sm:$0xf]
      %v292 = vld [vmem:[%s1 + $0x18] sm:$0xf]
      %v293 = vld [vmem:[%s1 + $0x1c] sm:$0xf]
      %v294 = vld [vmem:[%s1 + $0x20] sm:$0xf]
      %v295 = vld [vmem:[%s1 + $0x24] sm:$0xf]
      %v296 = vld [vmem:[%s1 + $0x28] sm:$0xf]
      %v297 = vld [vmem:[%s1 + $0x2c] sm:$0xf]
      %v298 = vld [vmem:[%s1 + $0x30] sm:$0xf]
      %v299 = vld [vmem:[%s1 + $0x34] sm:$0xf]
      %v300 = vld [vmem:[%s1 + $0x38] sm:$0xf]
      %v301 = vld [vmem:[%s1 + $0x3c] sm:$0xf]
      %v302 = vld [vmem:[%s2] sm:$0x1]
      %v304 = vlaneseq
      %v305 = vshrl.u32 %v304, 7
      %v306 = vsub.s32 0, %v305
      %v307 = vrot.slane %v302, %v306
      %v325 = vunpack.c.l.b16 %v270
      %v326 = vunpack.c.l.b16 %v271
      %v327 = vunpack.c.l.b16 %v272
      %v328 = vunpack.c.l.b16 %v273
      %v329 = vunpack.c.l.b16 %v274
      %v330 = vunpack.c.l.b16 %v275
      %v331 = vunpack.c.l.b16 %v276
      %v332 = vunpack.c.l.b16 %v277
      %v333 = vunpack.c.l.b16 %v278
      %v334 = vunpack.c.l.b16 %v279
      %v335 = vunpack.c.l.b16 %v280
      %v336 = vunpack.c.l.b16 %v281
      %v337 = vunpack.c.l.b16 %v282
      %v338 = vunpack.c.l.b16 %v283
      %v339 = vunpack.c.l.b16 %v284
      %v340 = vunpack.c.l.b16 %v285
      %v341 = vpack.c.b16 %v326, %v325
      %v342 = vpack.c.b16 %v328, %v327
      %v343 = vpack.c.b16 %v330, %v329
      %v344 = vpack.c.b16 %v332, %v331
      %v345 = vpack.c.b16 %v334, %v333
      %v346 = vpack.c.b16 %v336, %v335
      %v347 = vpack.c.b16 %v338, %v337
      %v348 = vpack.c.b16 %v340, %v339
      %v373 = vunpack.c.l.b16 %v286
      %v374 = vunpack.c.l.b16 %v287
      %v375 = vunpack.c.l.b16 %v288
      %v376 = vunpack.c.l.b16 %v289
      %v377 = vunpack.c.l.b16 %v290
      %v378 = vunpack.c.l.b16 %v291
      %v379 = vunpack.c.l.b16 %v292
      %v380 = vunpack.c.l.b16 %v293
      %v381 = vunpack.c.l.b16 %v294
      %v382 = vunpack.c.l.b16 %v295
      %v383 = vunpack.c.l.b16 %v296
      %v384 = vunpack.c.l.b16 %v297
      %v385 = vunpack.c.l.b16 %v298
      %v386 = vunpack.c.l.b16 %v299
      %v387 = vunpack.c.l.b16 %v300
      %v388 = vunpack.c.l.b16 %v301
      %v389 = vpack.c.b16 %v374, %v373
      %v390 = vpack.c.b16 %v376, %v375
      %v391 = vpack.c.b16 %v378, %v377
      %v392 = vpack.c.b16 %v380, %v379
      %v393 = vpack.c.b16 %v382, %v381
      %v394 = vpack.c.b16 %v384, %v383
      %v395 = vpack.c.b16 %v386, %v385
      %v396 = vpack.c.b16 %v388, %v387
      %405 = vmatprep.subr.bf16.mxu0 0
      %406 = vmatpush1.bf16.msra.mxu0 %v396
      %407 = vmatprep.subr.bf16.mxu0 0
      %408 = vmatpush1.bf16.msra.mxu0 %v395
      %409 = vmatprep.subr.bf16.mxu0 0
      %410 = vmatpush1.bf16.msra.mxu0 %v394
      %411 = vmatprep.subr.bf16.mxu0 0
      %412 = vmatpush1.bf16.msra.mxu0 %v393
      %413 = vmatprep.subr.bf16.mxu0 0
      %414 = vmatpush1.bf16.msra.mxu0 %v392
      %415 = vmatprep.subr.bf16.mxu0 0
      %416 = vmatpush1.bf16.msra.mxu0 %v391
      %417 = vmatprep.subr.bf16.mxu0 0
      %418 = vmatpush1.bf16.msra.mxu0 %v390
      %419 = vmatprep.subr.bf16.mxu0 0
      %420 = vmatpush1.bf16.msra.mxu0 %v389
      %421 = vmatprep.subr.bf16.mxu0 0
      %422 = vmatpush2.bf16.msra.mxu0 0
      %423 = vmatprep.subr.bf16.mxu0 0
      %424 = vmatpush2.bf16.msra.mxu0 0
      %425 = vmatprep.subr.bf16.mxu0 0
      %426 = vmatpush2.bf16.msra.mxu0 0
      %427 = vmatprep.subr.bf16.mxu0 0
      %428 = vmatpush2.bf16.msra.mxu0 0
      %429 = vmatprep.subr.bf16.mxu0 0
      %430 = vmatpush2.bf16.msra.mxu0 0
      %431 = vmatprep.subr.bf16.mxu0 0
      %432 = vmatpush2.bf16.msra.mxu0 0
      %433 = vmatprep.subr.bf16.mxu0 0
      %434 = vmatpush2.bf16.msra.mxu0 0
      %435 = vmatprep.subr.bf16.mxu0 0
      %436 = vmatpush2.bf16.msra.mxu0 0
      %437 = vmatprep.mubr.bf16.mxu0 0
      %438 = vmatmul.mubr.bf16.gmra.mxu0 %v341
      %v439 = vpop.f32.mrf.mxu0
      %v440 = vadd.f32 %v307, %v439
      %v441 = vpop.f32.mrf.mxu0
      %v442 = vpop.f32.mrf.mxu0
      %v443 = vadd.f32 %v307, %v442
      %v444 = vpop.f32.mrf.mxu0
      %445 = vmatprep.mubr.bf16.mxu0 0
      %446 = vmatmul.mubr.bf16.gmra.mxu0 %v342
      %v447 = vpop.f32.mrf.mxu0
      %v448 = vadd.f32 %v307, %v447
      %v449 = vpop.f32.mrf.mxu0
      %v450 = vpop.f32.mrf.mxu0
      %v451 = vadd.f32 %v307, %v450
      %v452 = vpop.f32.mrf.mxu0
      %453 = vmatprep.mubr.bf16.mxu0 0
      %454 = vmatmul.mubr.bf16.gmra.mxu0 %v343
      %v455 = vpop.f32.mrf.mxu0
      %v456 = vadd.f32 %v307, %v455
      %v457 = vpop.f32.mrf.mxu0
      %v458 = vpop.f32.mrf.mxu0
      %v459 = vadd.f32 %v307, %v458
      %v460 = vpop.f32.mrf.mxu0
      %461 = vmatprep.mubr.bf16.mxu0 0
      %462 = vmatmul.mubr.bf16.gmra.mxu0 %v344
      %v463 = vpop.f32.mrf.mxu0
      %v464 = vadd.f32 %v307, %v463
      %v465 = vpop.f32.mrf.mxu0
      %v466 = vpop.f32.mrf.mxu0
      %v467 = vadd.f32 %v307, %v466
      %v468 = vpop.f32.mrf.mxu0
      %469 = vmatprep.mubr.bf16.mxu0 0
      %470 = vmatmul.mubr.bf16.gmra.mxu0 %v345
      %v471 = vpop.f32.mrf.mxu0
      %v472 = vadd.f32 %v307, %v471
      %v473 = vpop.f32.mrf.mxu0
      %v474 = vpop.f32.mrf.mxu0
      %v475 = vadd.f32 %v307, %v474
      %v476 = vpop.f32.mrf.mxu0
      %477 = vmatprep.mubr.bf16.mxu0 0
      %478 = vmatmul.mubr.bf16.gmra.mxu0 %v346
      %v479 = vpop.f32.mrf.mxu0
      %v480 = vadd.f32 %v307, %v479
      %v481 = vpop.f32.mrf.mxu0
      %v482 = vpop.f32.mrf.mxu0
      %v483 = vadd.f32 %v307, %v482
      %v484 = vpop.f32.mrf.mxu0
      %485 = vmatprep.mubr.bf16.mxu0 0
      %486 = vmatmul.mubr.bf16.gmra.mxu0 %v347
      %v487 = vpop.f32.mrf.mxu0
      %v488 = vadd.f32 %v307, %v487
      %v489 = vpop.f32.mrf.mxu0
      %v490 = vpop.f32.mrf.mxu0
      %v491 = vadd.f32 %v307, %v490
      %v492 = vpop.f32.mrf.mxu0
      %493 = vmatprep.mubr.bf16.mxu0 0
      %494 = vmatmul.mubr.bf16.gmra.mxu0 %v348
      %v495 = vpop.f32.mrf.mxu0
      %v496 = vadd.f32 %v307, %v495
      %v497 = vpop.f32.mrf.mxu0
      %v498 = vpop.f32.mrf.mxu0
      %v499 = vadd.f32 %v307, %v498
      %v500 = vpop.f32.mrf.mxu0
      %501 = vdwg.mxu0
      %v502 = vxor.u32 %v440, 2147483648
      %v503 = vxor.u32 %v443, 2147483648
      %v504 = vxor.u32 %v448, 2147483648
      %v505 = vxor.u32 %v451, 2147483648
      %v506 = vxor.u32 %v456, 2147483648
      %v507 = vxor.u32 %v459, 2147483648
      %v508 = vxor.u32 %v464, 2147483648
      %v509 = vxor.u32 %v467, 2147483648
      %v510 = vxor.u32 %v472, 2147483648
      %v511 = vxor.u32 %v475, 2147483648
      %v512 = vxor.u32 %v480, 2147483648
      %v513 = vxor.u32 %v483, 2147483648
      %v514 = vxor.u32 %v488, 2147483648
      %v515 = vxor.u32 %v491, 2147483648
      %v516 = vxor.u32 %v496, 2147483648
      %v517 = vxor.u32 %v499, 2147483648
      %v518 = vmul.f32 %v502, 1.442695
      %v519 = vpow.pop %v518
      %v520 = vmul.f32 %v503, 1.442695
      %v521 = vpow.pop %v520
      %v522 = vmul.f32 %v504, 1.442695
      %v523 = vpow.pop %v522
      %v524 = vmul.f32 %v505, 1.442695
      %v525 = vpow.pop %v524
      %v526 = vmul.f32 %v506, 1.442695
      %v527 = vpow.pop %v526
      %v528 = vmul.f32 %v507, 1.442695
      %v529 = vpow.pop %v528
      %v530 = vmul.f32 %v508, 1.442695
      %v531 = vpow.pop %v530
      %v532 = vmul.f32 %v509, 1.442695
      %v533 = vpow.pop %v532
      %v534 = vmul.f32 %v510, 1.442695
      %v535 = vpow.pop %v534
      %v536 = vmul.f32 %v511, 1.442695
      %v537 = vpow.pop %v536
      %v538 = vmul.f32 %v512, 1.442695
      %v539 = vpow.pop %v538
      %v540 = vmul.f32 %v513, 1.442695
      %v541 = vpow.pop %v540
      %v542 = vmul.f32 %v514, 1.442695
      %v543 = vpow.pop %v542
      %v544 = vmul.f32 %v515, 1.442695
      %v545 = vpow.pop %v544
      %v546 = vmul.f32 %v516, 1.442695
      %v547 = vpow.pop %v546
      %v548 = vmul.f32 %v517, 1.442695
      %v549 = vpow.pop %v548
      %v550 = vadd.f32 %v519, 1.0
      %v551 = vadd.f32 %v521, 1.0
      %v552 = vadd.f32 %v523, 1.0
      %v553 = vadd.f32 %v525, 1.0
      %v554 = vadd.f32 %v527, 1.0
      %v555 = vadd.f32 %v529, 1.0
      %v556 = vadd.f32 %v531, 1.0
      %v557 = vadd.f32 %v533, 1.0
      %v558 = vadd.f32 %v535, 1.0
      %v559 = vadd.f32 %v537, 1.0
      %v560 = vadd.f32 %v539, 1.0
      %v561 = vadd.f32 %v541, 1.0
      %v562 = vadd.f32 %v543, 1.0
      %v563 = vadd.f32 %v545, 1.0
      %v564 = vadd.f32 %v547, 1.0
      %v565 = vadd.f32 %v549, 1.0
      %v566 = vrcp.pop %v550
      %v567 = vmul.f32 1.0, %v566
      %v568 = vrcp.pop %v551
      %v569 = vmul.f32 1.0, %v568
      %v570 = vrcp.pop %v552
      %v571 = vmul.f32 1.0, %v570
      %v572 = vrcp.pop %v553
      %v573 = vmul.f32 1.0, %v572
      %v574 = vrcp.pop %v554
      %v575 = vmul.f32 1.0, %v574
      %v576 = vrcp.pop %v555
      %v577 = vmul.f32 1.0, %v576
      %v578 = vrcp.pop %v556
      %v579 = vmul.f32 1.0, %v578
      %v580 = vrcp.pop %v557
      %v581 = vmul.f32 1.0, %v580
      %v582 = vrcp.pop %v558
      %v583 = vmul.f32 1.0, %v582
      %v584 = vrcp.pop %v559
      %v585 = vmul.f32 1.0, %v584
      %v586 = vrcp.pop %v560
      %v587 = vmul.f32 1.0, %v586
      %v588 = vrcp.pop %v561
      %v589 = vmul.f32 1.0, %v588
      %v590 = vrcp.pop %v562
      %v591 = vmul.f32 1.0, %v590
      %v592 = vrcp.pop %v563
      %v593 = vmul.f32 1.0, %v592
      %v594 = vrcp.pop %v564
      %v595 = vmul.f32 1.0, %v594
      %v596 = vrcp.pop %v565
      %v597 = vmul.f32 1.0, %v596
      %v598 = vmul.f32 %v440, %v567
      %v599 = vmul.f32 %v443, %v569
      %v600 = vmul.f32 %v448, %v571
      %v601 = vmul.f32 %v451, %v573
      %v602 = vmul.f32 %v456, %v575
      %v603 = vmul.f32 %v459, %v577
      %v604 = vmul.f32 %v464, %v579
      %v605 = vmul.f32 %v467, %v581
      %v606 = vmul.f32 %v472, %v583
      %v607 = vmul.f32 %v475, %v585
      %v608 = vmul.f32 %v480, %v587
      %v609 = vmul.f32 %v483, %v589
      %v610 = vmul.f32 %v488, %v591
      %v611 = vmul.f32 %v491, %v593
      %v612 = vmul.f32 %v496, %v595
      %v613 = vmul.f32 %v499, %v597
      %v614 = vpack.c.bf16 %v599, %v598
      %v615 = vpack.c.bf16 %v601, %v600
      %v616 = vpack.c.bf16 %v603, %v602
      %v617 = vpack.c.bf16 %v605, %v604
      %v618 = vpack.c.bf16 %v607, %v606
      %v619 = vpack.c.bf16 %v609, %v608
      %v620 = vpack.c.bf16 %v611, %v610
      %v621 = vpack.c.bf16 %v613, %v612
      %v630 = vunpack.c.l.b16 %v614
      %v631 = vunpack.c.h.b16 %v614
      %v632 = vunpack.c.l.b16 %v615
      %v633 = vunpack.c.h.b16 %v615
      %v634 = vunpack.c.l.b16 %v616
      %v635 = vunpack.c.h.b16 %v616
      %v636 = vunpack.c.l.b16 %v617
      %v637 = vunpack.c.h.b16 %v617
      %v638 = vunpack.c.l.b16 %v618
      %v639 = vunpack.c.h.b16 %v618
      %v640 = vunpack.c.l.b16 %v619
      %v641 = vunpack.c.h.b16 %v619
      %v642 = vunpack.c.l.b16 %v620
      %v643 = vunpack.c.h.b16 %v620
      %v644 = vunpack.c.l.b16 %v621
      %v645 = vunpack.c.h.b16 %v621
      %v646 = vpack.c.b16 %v630, %v630
      %v647 = vpack.c.b16 %v631, %v631
      %v648 = vpack.c.b16 %v632, %v632
      %v649 = vpack.c.b16 %v633, %v633
      %v650 = vpack.c.b16 %v634, %v634
      %v651 = vpack.c.b16 %v635, %v635
      %v652 = vpack.c.b16 %v636, %v636
      %v653 = vpack.c.b16 %v637, %v637
      %v654 = vpack.c.b16 %v638, %v638
      %v655 = vpack.c.b16 %v639, %v639
      %v656 = vpack.c.b16 %v640, %v640
      %v657 = vpack.c.b16 %v641, %v641
      %v658 = vpack.c.b16 %v642, %v642
      %v659 = vpack.c.b16 %v643, %v643
      %v660 = vpack.c.b16 %v644, %v644
      %v661 = vpack.c.b16 %v645, %v645
      %678 = vst [vmem:[%s261] sm:$0xf] %v646
      %679 = vst [vmem:[%s261 + $0x4] sm:$0xf] %v647
      %680 = vst [vmem:[%s261 + $0x8] sm:$0xf] %v648
      %681 = vst [vmem:[%s261 + $0xc] sm:$0xf] %v649
      %682 = vst [vmem:[%s261 + $0x10] sm:$0xf] %v650
      %683 = vst [vmem:[%s261 + $0x14] sm:$0xf] %v651
      %684 = vst [vmem:[%s261 + $0x18] sm:$0xf] %v652
      %685 = vst [vmem:[%s261 + $0x1c] sm:$0xf] %v653
      %686 = vst [vmem:[%s261 + $0x20] sm:$0xf] %v654
      %687 = vst [vmem:[%s261 + $0x24] sm:$0xf] %v655
      %688 = vst [vmem:[%s261 + $0x28] sm:$0xf] %v656
      %689 = vst [vmem:[%s261 + $0x2c] sm:$0xf] %v657
      %690 = vst [vmem:[%s261 + $0x30] sm:$0xf] %v658
      %691 = vst [vmem:[%s261 + $0x34] sm:$0xf] %v659
      %692 = vst [vmem:[%s261 + $0x38] sm:$0xf] %v660
      %693 = vst [vmem:[%s261 + $0x3c] sm:$0xf] %v661
      %v694 = vld [vmem:[%s3] sm:$0xf]
      %v695 = vld [vmem:[%s3 + $0x4] sm:$0xf]
      %v696 = vld [vmem:[%s3 + $0x8] sm:$0xf]
      %v697 = vld [vmem:[%s3 + $0xc] sm:$0xf]
      %v698 = vld [vmem:[%s3 + $0x10] sm:$0xf]
      %v699 = vld [vmem:[%s3 + $0x14] sm:$0xf]
      %v700 = vld [vmem:[%s3 + $0x18] sm:$0xf]
      %v701 = vld [vmem:[%s3 + $0x1c] sm:$0xf]
      %v702 = vld [vmem:[%s4] sm:$0x1]
      %v704 = vlaneseq
      %v705 = vshrl.u32 %v704, 7
      %v706 = vsub.s32 0, %v705
      %v707 = vrot.slane %v702, %v706
      %709 = vrot.lane.b32.xlu0 %v614, 64
      %v710 = vpop.permute.xlu0 %709
      %711 = vrot.lane.b32.xlu0 %v615, 64
      %v712 = vpop.permute.xlu0 %711
      %713 = vrot.lane.b32.xlu0 %v616, 64
      %v714 = vpop.permute.xlu0 %713
      %715 = vrot.lane.b32.xlu0 %v617, 64
      %v716 = vpop.permute.xlu0 %715
      %717 = vrot.lane.b32.xlu0 %v618, 64
      %v718 = vpop.permute.xlu0 %717
      %719 = vrot.lane.b32.xlu0 %v619, 64
      %v720 = vpop.permute.xlu0 %719
      %721 = vrot.lane.b32.xlu0 %v620, 64
      %v722 = vpop.permute.xlu0 %721
      %723 = vrot.lane.b32.xlu0 %v621, 64
      %v724 = vpop.permute.xlu0 %723
      %v733 = vunpack.c.l.b16 %v694
      %v734 = vunpack.c.l.b16 %v695
      %v735 = vunpack.c.l.b16 %v696
      %v736 = vunpack.c.l.b16 %v697
      %v737 = vunpack.c.l.b16 %v698
      %v738 = vunpack.c.l.b16 %v699
      %v739 = vunpack.c.l.b16 %v700
      %v740 = vunpack.c.l.b16 %v701
      %v741 = vpack.c.b16 %v734, %v733
      %v742 = vpack.c.b16 %v736, %v735
      %v743 = vpack.c.b16 %v738, %v737
      %v744 = vpack.c.b16 %v740, %v739
      %vm749 = vcmask 523264
      %v751 = vsel %vm749, %v710, 0
      %v754 = vsel %vm749, %v712, 0
      %v757 = vsel %vm749, %v714, 0
      %v760 = vsel %vm749, %v716, 0
      %v763 = vsel %vm749, %v718, 0
      %v766 = vsel %vm749, %v720, 0
      %v769 = vsel %vm749, %v722, 0
      %v772 = vsel %vm749, %v724, 0
      %774 = vmatprep.subr.bf16.mxu0 0
      %775 = vmatpush1.bf16.msra.mxu0 0
      %776 = vmatprep.subr.bf16.mxu0 0
      %777 = vmatpush1.bf16.msra.mxu0 0
      %778 = vmatprep.subr.bf16.mxu0 0
      %779 = vmatpush1.bf16.msra.mxu0 0
      %780 = vmatprep.subr.bf16.mxu0 0
      %781 = vmatpush1.bf16.msra.mxu0 0
      %782 = vmatprep.subr.bf16.mxu0 0
      %783 = vmatpush1.bf16.msra.mxu0 %v744
      %784 = vmatprep.subr.bf16.mxu0 0
      %785 = vmatpush1.bf16.msra.mxu0 %v743
      %786 = vmatprep.subr.bf16.mxu0 0
      %787 = vmatpush1.bf16.msra.mxu0 %v742
      %788 = vmatprep.subr.bf16.mxu0 0
      %789 = vmatpush1.bf16.msra.mxu0 %v741
      %790 = vmatprep.subr.bf16.mxu0 0
      %791 = vmatpush2.bf16.msra.mxu0 0
      %792 = vmatprep.subr.bf16.mxu0 0
      %793 = vmatpush2.bf16.msra.mxu0 0
      %794 = vmatprep.subr.bf16.mxu0 0
      %795 = vmatpush2.bf16.msra.mxu0 0
      %796 = vmatprep.subr.bf16.mxu0 0
      %797 = vmatpush2.bf16.msra.mxu0 0
      %798 = vmatprep.subr.bf16.mxu0 0
      %799 = vmatpush2.bf16.msra.mxu0 0
      %800 = vmatprep.subr.bf16.mxu0 0
      %801 = vmatpush2.bf16.msra.mxu0 0
      %802 = vmatprep.subr.bf16.mxu0 0
      %803 = vmatpush2.bf16.msra.mxu0 0
      %804 = vmatprep.subr.bf16.mxu0 0
      %805 = vmatpush2.bf16.msra.mxu0 0
      %806 = vmatprep.mubr.bf16.mxu0 0
      %807 = vmatmul.mubr.bf16.gmra.mxu0 %v751
      %v808 = vpop.f32.mrf.mxu0
      %v809 = vadd.f32 %v707, %v808
      %v810 = vpop.f32.mrf.mxu0
      %v811 = vpop.f32.mrf.mxu0
      %v812 = vadd.f32 %v707, %v811
      %v813 = vpop.f32.mrf.mxu0
      %814 = vmatprep.mubr.bf16.mxu0 0
      %815 = vmatmul.mubr.bf16.gmra.mxu0 %v754
      %v816 = vpop.f32.mrf.mxu0
      %v817 = vadd.f32 %v707, %v816
      %v818 = vpop.f32.mrf.mxu0
      %v819 = vpop.f32.mrf.mxu0
      %v820 = vadd.f32 %v707, %v819
      %v821 = vpop.f32.mrf.mxu0
      %822 = vmatprep.mubr.bf16.mxu0 0
      %823 = vmatmul.mubr.bf16.gmra.mxu0 %v757
      %v824 = vpop.f32.mrf.mxu0
      %v825 = vadd.f32 %v707, %v824
      %v826 = vpop.f32.mrf.mxu0
      %v827 = vpop.f32.mrf.mxu0
      %v828 = vadd.f32 %v707, %v827
      %v829 = vpop.f32.mrf.mxu0
      %830 = vmatprep.mubr.bf16.mxu0 0
      %831 = vmatmul.mubr.bf16.gmra.mxu0 %v760
      %v832 = vpop.f32.mrf.mxu0
      %v833 = vadd.f32 %v707, %v832
      %v834 = vpop.f32.mrf.mxu0
      %v835 = vpop.f32.mrf.mxu0
      %v836 = vadd.f32 %v707, %v835
      %v837 = vpop.f32.mrf.mxu0
      %838 = vmatprep.mubr.bf16.mxu0 0
      %839 = vmatmul.mubr.bf16.gmra.mxu0 %v763
      %v840 = vpop.f32.mrf.mxu0
      %v841 = vadd.f32 %v707, %v840
      %v842 = vpop.f32.mrf.mxu0
      %v843 = vpop.f32.mrf.mxu0
      %v844 = vadd.f32 %v707, %v843
      %v845 = vpop.f32.mrf.mxu0
      %846 = vmatprep.mubr.bf16.mxu0 0
      %847 = vmatmul.mubr.bf16.gmra.mxu0 %v766
      %v848 = vpop.f32.mrf.mxu0
      %v849 = vadd.f32 %v707, %v848
      %v850 = vpop.f32.mrf.mxu0
      %v851 = vpop.f32.mrf.mxu0
      %v852 = vadd.f32 %v707, %v851
      %v853 = vpop.f32.mrf.mxu0
      %854 = vmatprep.mubr.bf16.mxu0 0
      %855 = vmatmul.mubr.bf16.gmra.mxu0 %v769
      %v856 = vpop.f32.mrf.mxu0
      %v857 = vadd.f32 %v707, %v856
      %v858 = vpop.f32.mrf.mxu0
      %v859 = vpop.f32.mrf.mxu0
      %v860 = vadd.f32 %v707, %v859
      %v861 = vpop.f32.mrf.mxu0
      %862 = vmatprep.mubr.bf16.mxu0 0
      %863 = vmatmul.mubr.bf16.gmra.mxu0 %v772
      %v864 = vpop.f32.mrf.mxu0
      %v865 = vadd.f32 %v707, %v864
      %v866 = vpop.f32.mrf.mxu0
      %v867 = vpop.f32.mrf.mxu0
      %v868 = vadd.f32 %v707, %v867
      %v869 = vpop.f32.mrf.mxu0
      %870 = vdwg.mxu0
      %v871 = vpack.c.bf16 %v812, %v809
      %v872 = vpack.c.bf16 %v820, %v817
      %v873 = vpack.c.bf16 %v828, %v825
      %v874 = vpack.c.bf16 %v836, %v833
      %v875 = vpack.c.bf16 %v844, %v841
      %v876 = vpack.c.bf16 %v852, %v849
      %v877 = vpack.c.bf16 %v860, %v857
      %v878 = vpack.c.bf16 %v868, %v865
      %v887 = vunpack.c.l.b16 %v871
      %v888 = vunpack.c.h.b16 %v871
      %v889 = vunpack.c.l.b16 %v872
      %v890 = vunpack.c.h.b16 %v872
      %v891 = vunpack.c.l.b16 %v873
      %v892 = vunpack.c.h.b16 %v873
      %v893 = vunpack.c.l.b16 %v874
      %v894 = vunpack.c.h.b16 %v874
      %v895 = vunpack.c.l.b16 %v875
      %v896 = vunpack.c.h.b16 %v875
      %v897 = vunpack.c.l.b16 %v876
      %v898 = vunpack.c.h.b16 %v876
      %v899 = vunpack.c.l.b16 %v877
      %v900 = vunpack.c.h.b16 %v877
      %v901 = vunpack.c.l.b16 %v878
      %v902 = vunpack.c.h.b16 %v878
      %v903 = vpack.c.b16 %v887, %v887
      %v904 = vpack.c.b16 %v888, %v888
      %v905 = vpack.c.b16 %v889, %v889
      %v906 = vpack.c.b16 %v890, %v890
      %v907 = vpack.c.b16 %v891, %v891
      %v908 = vpack.c.b16 %v892, %v892
      %v909 = vpack.c.b16 %v893, %v893
      %v910 = vpack.c.b16 %v894, %v894
      %v911 = vpack.c.b16 %v895, %v895
      %v912 = vpack.c.b16 %v896, %v896
      %v913 = vpack.c.b16 %v897, %v897
      %v914 = vpack.c.b16 %v898, %v898
      %v915 = vpack.c.b16 %v899, %v899
      %v916 = vpack.c.b16 %v900, %v900
      %v917 = vpack.c.b16 %v901, %v901
      %v918 = vpack.c.b16 %v902, %v902
      %935 = vst [vmem:[%s267] sm:$0xf] %v903
      %936 = vst [vmem:[%s267 + $0x4] sm:$0xf] %v904
      %937 = vst [vmem:[%s267 + $0x8] sm:$0xf] %v905
      %938 = vst [vmem:[%s267 + $0xc] sm:$0xf] %v906
      %939 = vst [vmem:[%s267 + $0x10] sm:$0xf] %v907
      %940 = vst [vmem:[%s267 + $0x14] sm:$0xf] %v908
      %941 = vst [vmem:[%s267 + $0x18] sm:$0xf] %v909
      %942 = vst [vmem:[%s267 + $0x1c] sm:$0xf] %v910
      %943 = vst [vmem:[%s267 + $0x20] sm:$0xf] %v911
      %944 = vst [vmem:[%s267 + $0x24] sm:$0xf] %v912
      %945 = vst [vmem:[%s267 + $0x28] sm:$0xf] %v913
      %946 = vst [vmem:[%s267 + $0x2c] sm:$0xf] %v914
      %947 = vst [vmem:[%s267 + $0x30] sm:$0xf] %v915
      %948 = vst [vmem:[%s267 + $0x34] sm:$0xf] %v916
      %949 = vst [vmem:[%s267 + $0x38] sm:$0xf] %v917
      %950 = vst [vmem:[%s267 + $0x3c] sm:$0xf] %v918
      %s951 = smul.u32 16, %s18
      %p952 = scmp.lt.s32.totalorder %s951, 63
      %s953 = scalar_select %p952, %s951, 63
      %s954 = smul.addr %s953, 4
      %s955 = scalar_lea.vmem %s5, %s954
      %s956 = smul.u32 16, %s18
      %p957 = scmp.lt.s32.totalorder %s956, 63
      %s958 = scalar_select %p957, %s956, 63
      %s959 = smul.addr %s958, 4
      %s960 = scalar_lea.vmem %s6, %s959
      // Predicated region
      $region41: #{psa_forward.3} parent=39 // pred_check
        %p961 = pneg %p146
      $region42: #{psa_forward.3} parent=39 // pred_check_branch
        %963 = sbr.rel (%p961) target = $region44
      $region43: #{psa_forward.3} parent=39 // pred_region
        %s964 = smul.u32 16, %s18
      $region44: #{psa_forward.3} parent=39 // pred_fallthru
        _
      // Predicated region
      $region45: #{psa_forward.3} parent=39 // pred_check
        %p965 = pneg %p172
      $region46: #{psa_forward.3} parent=39 // pred_check_branch
        %967 = sbr.rel (%p965) target = $region48
      $region47: #{psa_forward.3} parent=39 // pred_region
        %s968 = smul.u32 16, %s18
      $region48: #{psa_forward.3} parent=39 // pred_fallthru
        _
    $region40: #{psa_forward.3} parent=5 // pred_fallthru
      _
    %p969 = scmp.le.s32.totalorder 2, %s13
    // Predicated region
    $region49: #{psa_forward.3} parent=5 // pred_check
      %p970 = pneg %p969
    $region50: #{psa_forward.3} parent=5 // pred_check_branch
      %972 = sbr.rel (%p970) target = $region52
    $region51: #{psa_forward.3} parent=5 // pred_region
      %s973 = ssub.s32 %s13, 2
      // Predicated region
      $region53: #{psa_forward.3} parent=51 // pred_check
        %p974 = pneg %p152
      $region54: #{psa_forward.3} parent=51 // pred_check_branch
        %976 = sbr.rel (%p974) target = $region56
      $region55: #{psa_forward.3} parent=51 // pred_region
        %s977 = smul.u32 16, %s19
        %p978 = scmp.lt.s32.totalorder %s977, 63
        %s979 = scalar_select %p978, %s977, 63
        %s980 = smul.addr %s979, 4
        %s981 = scalar_lea.vmem %s5, %s980
      $region56: #{psa_forward.3} parent=51 // pred_fallthru
        _
      // Predicated region
      $region57: #{psa_forward.3} parent=51 // pred_check
        %p982 = pneg %p178
      $region58: #{psa_forward.3} parent=51 // pred_check_branch
        %984 = sbr.rel (%p982) target = $region60
      $region59: #{psa_forward.3} parent=51 // pred_region
        %s985 = smul.u32 16, %s19
        %p986 = scmp.lt.s32.totalorder %s985, 63
        %s987 = scalar_select %p986, %s985, 63
        %s988 = smul.addr %s987, 4
        %s989 = scalar_lea.vmem %s6, %s988
      $region60: #{psa_forward.3} parent=51 // pred_fallthru
        _
    $region52: #{psa_forward.3} parent=5 // pred_fallthru
      _
  $region6: #{psa_forward.3} parent=0 // loop_footer
    %s17 = sadd.s32 1, %s13
  $region7: #{psa_forward.3} parent=0 // loop_footer_branch
    %12 = sbr.rel target = $region3
  $region8: #{psa_forward.3} parent=0 // loop_exit
    _

// kernel: psa_forward.5
$region0: #{psa_forward.5}
  #allocation0 [shape = 'u32[]', space=smem, size = 0x4, offset = 0x4, fixed_abs, tag = 'smem constant byte address 0x4 - core index']
  #allocation1 [shape = 'u32[144,128]{1,0:T(1,128)}', space=vmem, size = 0x12000, scoped, tag = 'internal scratch']
  %s0 = inlined_call_operand.vmem [shape: bf16[512,128], index: 0, kind: input, shape index: {}]
  %s1 = inlined_call_operand.vmem [shape: bf16[512,64], index: 1, kind: input, shape index: {}]
  %s2 = inlined_call_operand.vmem [shape: bf16[64,64], index: 2, kind: input, shape index: {}]
  %s3 = inlined_call_operand.vmem [shape: f32[1,64], index: 3, kind: input, shape index: {}]
  %s4 = inlined_call_operand.vmem [shape: bf16[64,128], index: 4, kind: input, shape index: {}]
  %s5 = inlined_call_operand.vmem [shape: f32[1,128], index: 5, kind: input, shape index: {}]
  %s6 = inlined_call_operand.vmem [shape: bf16[128,64], index: 6, kind: input, shape index: {}]
  %s7 = inlined_call_operand.vmem [shape: f32[1,64], index: 7, kind: input, shape index: {}]
  %s8 = inlined_call_operand.vmem [shape: bf16[128,128], index: 8, kind: input, shape index: {}]
  %s9 = inlined_call_operand.vmem [shape: f32[1,128], index: 9, kind: input, shape index: {}]
  %s10 = inlined_call_operand.hbm [shape: f32[512,128], index: 10, kind: output, shape index: {}]
  %s11 = sld [smem:[#allocation0]]
  $region73: #{psa_forward.5} parent=0
    _
  %s13 = ssub.s32 1, %s11
  %s14 = scalar_select 0, %s13, %s11
  $region1: #{psa_forward.5} parent=0
    #allocation2 [shape = 'u8[131072]{0}', space=vmem, size = 0x20000, scoped, tag = 'output window, operand 0']
    #allocation3 [shape = 's32[2]{0}', space=sflag, size = 0x8, scoped, tag = 'scoped memory for psa_forward.5']
    %15 = vsyncpa [#allocation3], 0
    %s16 = scalar_lea.sflag [#allocation3], 1
    %17 = vsyncpa %s16, 0
    loop: start=0, step=1, limit=6
    $region2: #{psa_forward.5} parent=1 // loop_pre_header
      _
    $region3: #{psa_forward.5} parent=1 // loop_header
      %s19 = sphi 0, %s23
      %p20 = scmp.ge.s32.totalorder %s19, 6
      %s29 = sphi 0, %s31
      %s32 = sphi 0, %s29
      %s33 = sphi 0, %s32
      %s49 = sphi 0, %s33
      %s55 = sphi 0, %s57
      %s58 = sphi 0, %s55
      %s59 = sphi 0, %s58
      %s75 = sphi 0, %s59
      %s79 = sphi 0, %s79
      %s81 = sphi 0, %s79
      %s82 = sphi 0, %s81
      %s96 = sphi 0, %s82
      %s100 = sphi 0, %s100
      %s102 = sphi 0, %s100
      %s103 = sphi 0, %s102
      %s117 = sphi 0, %s103
      %s121 = sphi 0, %s121
      %s123 = sphi 0, %s121
      %s124 = sphi 0, %s123
      %s138 = sphi 0, %s124
      %s142 = sphi 0, %s142
      %s144 = sphi 0, %s142
      %s145 = sphi 0, %s144
      %s159 = sphi 0, %s145
      %s163 = sphi 0, %s163
      %s165 = sphi 0, %s163
      %s166 = sphi 0, %s165
      %s180 = sphi 0, %s166
      %s184 = sphi 0, %s184
      %s186 = sphi 0, %s184
      %s187 = sphi 0, %s186
      %s201 = sphi 0, %s187
      %s205 = sphi 0, %s205
      %s207 = sphi 0, %s205
      %s208 = sphi 0, %s207
      %s222 = sphi 0, %s208
      %s226 = sphi 0, %s226
      %s228 = sphi 0, %s226
      %s229 = sphi 0, %s228
      %s243 = sphi 0, %s229
      %s249 = sphi 0, %s251
      %s252 = sphi 0, %s249
      %s253 = sphi 0, %s252
      %s269 = sphi 0, %s253
    $region4: #{psa_forward.5} parent=1 // loop_header_branch
      %22 = sbr.rel (%p20) target = $region8
    $region5: #{psa_forward.5} parent=1 // loop_body
      %s24 = ssub.s32 %s19, 1
      %s25 = ssub.s32 %s19, 2
      %s26 = sadd.s32 %s19, 1
      %s27 = ssub.s32 %s19, %s26
      %p28 = scmp.eq.s32.totalorder %s27, 0
      %s30 = sadd.s32 %s29, 1
      %s31 = scalar_select %p28, %s29, %s30
      %p34 = pneg %p28
      %p35 = scmp.eq.s32.totalorder %s19, 3
      %p36 = por %p34, %p35
      %p37 = scmp.ne.s32.totalorder %s29, %s32
      %p38 = scmp.eq.s32.totalorder %s19, 0
      %p39 = por %p37, %p38
      %p40 = scmp.ne.s32.totalorder %s29, %s32
      %p41 = scmp.eq.s32.totalorder %s24, 3
      %p42 = por %p40, %p41
      %p43 = scmp.ne.s32.totalorder %s32, %s33
      %p44 = scmp.eq.s32.totalorder %s24, 0
      %p45 = por %p43, %p44
      %p46 = scmp.ne.s32.totalorder %s32, %s33
      %p47 = scmp.eq.s32.totalorder %s25, 3
      %p48 = por %p46, %p47
      %p50 = scmp.ne.s32.totalorder %s33, %s49
      %p51 = scmp.eq.s32.totalorder %s25, 0
      %p52 = por %p50, %p51
      %s53 = ssub.s32 %s19, %s26
      %p54 = scmp.eq.s32.totalorder %s53, 0
      %s56 = sadd.s32 %s55, 1
      %s57 = scalar_select %p54, %s55, %s56
      %p60 = pneg %p54
      %p61 = scmp.eq.s32.totalorder %s19, 3
      %p62 = por %p60, %p61
      %p63 = scmp.ne.s32.totalorder %s55, %s58
      %p64 = scmp.eq.s32.totalorder %s19, 0
      %p65 = por %p63, %p64
      %p66 = scmp.ne.s32.totalorder %s55, %s58
      %p67 = scmp.eq.s32.totalorder %s24, 3
      %p68 = por %p66, %p67
      %p69 = scmp.ne.s32.totalorder %s58, %s59
      %p70 = scmp.eq.s32.totalorder %s24, 0
      %p71 = por %p69, %p70
      %p72 = scmp.ne.s32.totalorder %s58, %s59
      %p73 = scmp.eq.s32.totalorder %s25, 3
      %p74 = por %p72, %p73
      %p76 = scmp.ne.s32.totalorder %s59, %s75
      %p77 = scmp.eq.s32.totalorder %s25, 0
      %p78 = por %p76, %p77
      %s80 = sadd.s32 %s79, 1
      %p83 = scmp.eq.s32.totalorder %s19, 3
      %p84 = scmp.ne.s32.totalorder %s79, %s81
      %p85 = scmp.eq.s32.totalorder %s19, 0
      %p86 = por %p84, %p85
      %p87 = scmp.ne.s32.totalorder %s79, %s81
      %p88 = scmp.eq.s32.totalorder %s24, 3
      %p89 = por %p87, %p88
      %p90 = scmp.ne.s32.totalorder %s81, %s82
      %p91 = scmp.eq.s32.totalorder %s24, 0
      %p92 = por %p90, %p91
      %p93 = scmp.ne.s32.totalorder %s81, %s82
      %p94 = scmp.eq.s32.totalorder %s25, 3
      %p95 = por %p93, %p94
      %p97 = scmp.ne.s32.totalorder %s82, %s96
      %p98 = scmp.eq.s32.totalorder %s25, 0
      %p99 = por %p97, %p98
      %s101 = sadd.s32 %s100, 1
      %p104 = scmp.eq.s32.totalorder %s19, 3
      %p105 = scmp.ne.s32.totalorder %s100, %s102
      %p106 = scmp.eq.s32.totalorder %s19, 0
      %p107 = por %p105, %p106
      %p108 = scmp.ne.s32.totalorder %s100, %s102
      %p109 = scmp.eq.s32.totalorder %s24, 3
      %p110 = por %p108, %p109
      %p111 = scmp.ne.s32.totalorder %s102, %s103
      %p112 = scmp.eq.s32.totalorder %s24, 0
      %p113 = por %p111, %p112
      %p114 = scmp.ne.s32.totalorder %s102, %s103
      %p115 = scmp.eq.s32.totalorder %s25, 3
      %p116 = por %p114, %p115
      %p118 = scmp.ne.s32.totalorder %s103, %s117
      %p119 = scmp.eq.s32.totalorder %s25, 0
      %p120 = por %p118, %p119
      %s122 = sadd.s32 %s121, 1
      %p125 = scmp.eq.s32.totalorder %s19, 3
      %p126 = scmp.ne.s32.totalorder %s121, %s123
      %p127 = scmp.eq.s32.totalorder %s19, 0
      %p128 = por %p126, %p127
      %p129 = scmp.ne.s32.totalorder %s121, %s123
      %p130 = scmp.eq.s32.totalorder %s24, 3
      %p131 = por %p129, %p130
      %p132 = scmp.ne.s32.totalorder %s123, %s124
      %p133 = scmp.eq.s32.totalorder %s24, 0
      %p134 = por %p132, %p133
      %p135 = scmp.ne.s32.totalorder %s123, %s124
      %p136 = scmp.eq.s32.totalorder %s25, 3
      %p137 = por %p135, %p136
      %p139 = scmp.ne.s32.totalorder %s124, %s138
      %p140 = scmp.eq.s32.totalorder %s25, 0
      %p141 = por %p139, %p140
      %s143 = sadd.s32 %s142, 1
      %p146 = scmp.eq.s32.totalorder %s19, 3
      %p147 = scmp.ne.s32.totalorder %s142, %s144
      %p148 = scmp.eq.s32.totalorder %s19, 0
      %p149 = por %p147, %p148
      %p150 = scmp.ne.s32.totalorder %s142, %s144
      %p151 = scmp.eq.s32.totalorder %s24, 3
      %p152 = por %p150, %p151
      %p153 = scmp.ne.s32.totalorder %s144, %s145
      %p154 = scmp.eq.s32.totalorder %s24, 0
      %p155 = por %p153, %p154
      %p156 = scmp.ne.s32.totalorder %s144, %s145
      %p157 = scmp.eq.s32.totalorder %s25, 3
      %p158 = por %p156, %p157
      %p160 = scmp.ne.s32.totalorder %s145, %s159
      %p161 = scmp.eq.s32.totalorder %s25, 0
      %p162 = por %p160, %p161
      %s164 = sadd.s32 %s163, 1
      %p167 = scmp.eq.s32.totalorder %s19, 3
      %p168 = scmp.ne.s32.totalorder %s163, %s165
      %p169 = scmp.eq.s32.totalorder %s19, 0
      %p170 = por %p168, %p169
      %p171 = scmp.ne.s32.totalorder %s163, %s165
      %p172 = scmp.eq.s32.totalorder %s24, 3
      %p173 = por %p171, %p172
      %p174 = scmp.ne.s32.totalorder %s165, %s166
      %p175 = scmp.eq.s32.totalorder %s24, 0
      %p176 = por %p174, %p175
      %p177 = scmp.ne.s32.totalorder %s165, %s166
      %p178 = scmp.eq.s32.totalorder %s25, 3
      %p179 = por %p177, %p178
      %p181 = scmp.ne.s32.totalorder %s166, %s180
      %p182 = scmp.eq.s32.totalorder %s25, 0
      %p183 = por %p181, %p182
      %s185 = sadd.s32 %s184, 1
      %p188 = scmp.eq.s32.totalorder %s19, 3
      %p189 = scmp.ne.s32.totalorder %s184, %s186
      %p190 = scmp.eq.s32.totalorder %s19, 0
      %p191 = por %p189, %p190
      %p192 = scmp.ne.s32.totalorder %s184, %s186
      %p193 = scmp.eq.s32.totalorder %s24, 3
      %p194 = por %p192, %p193
      %p195 = scmp.ne.s32.totalorder %s186, %s187
      %p196 = scmp.eq.s32.totalorder %s24, 0
      %p197 = por %p195, %p196
      %p198 = scmp.ne.s32.totalorder %s186, %s187
      %p199 = scmp.eq.s32.totalorder %s25, 3
      %p200 = por %p198, %p199
      %p202 = scmp.ne.s32.totalorder %s187, %s201
      %p203 = scmp.eq.s32.totalorder %s25, 0
      %p204 = por %p202, %p203
      %s206 = sadd.s32 %s205, 1
      %p209 = scmp.eq.s32.totalorder %s19, 3
      %p210 = scmp.ne.s32.totalorder %s205, %s207
      %p211 = scmp.eq.s32.totalorder %s19, 0
      %p212 = por %p210, %p211
      %p213 = scmp.ne.s32.totalorder %s205, %s207
      %p214 = scmp.eq.s32.totalorder %s24, 3
      %p215 = por %p213, %p214
      %p216 = scmp.ne.s32.totalorder %s207, %s208
      %p217 = scmp.eq.s32.totalorder %s24, 0
      %p218 = por %p216, %p217
      %p219 = scmp.ne.s32.totalorder %s207, %s208
      %p220 = scmp.eq.s32.totalorder %s25, 3
      %p221 = por %p219, %p220
      %p223 = scmp.ne.s32.totalorder %s208, %s222
      %p224 = scmp.eq.s32.totalorder %s25, 0
      %p225 = por %p223, %p224
      %s227 = sadd.s32 %s226, 1
      %p230 = scmp.eq.s32.totalorder %s19, 3
      %p231 = scmp.ne.s32.totalorder %s226, %s228
      %p232 = scmp.eq.s32.totalorder %s19, 0
      %p233 = por %p231, %p232
      %p234 = scmp.ne.s32.totalorder %s226, %s228
      %p235 = scmp.eq.s32.totalorder %s24, 3
      %p236 = por %p234, %p235
      %p237 = scmp.ne.s32.totalorder %s228, %s229
      %p238 = scmp.eq.s32.totalorder %s24, 0
      %p239 = por %p237, %p238
      %p240 = scmp.ne.s32.totalorder %s228, %s229
      %p241 = scmp.eq.s32.totalorder %s25, 3
      %p242 = por %p240, %p241
      %p244 = scmp.ne.s32.totalorder %s229, %s243
      %p245 = scmp.eq.s32.totalorder %s25, 0
      %p246 = por %p244, %p245
      %s247 = ssub.s32 %s19, %s26
      %p248 = scmp.eq.s32.totalorder %s247, 0
      %s250 = sadd.s32 %s249, 1
      %s251 = scalar_select %p248, %s249, %s250
      %p254 = pneg %p248
      %p255 = scmp.eq.s32.totalorder %s19, 3
      %p256 = por %p254, %p255
      %p257 = scmp.ne.s32.totalorder %s249, %s252
      %p258 = scmp.eq.s32.totalorder %s19, 0
      %p259 = por %p257, %p258
      %p260 = scmp.ne.s32.totalorder %s249, %s252
      %p261 = scmp.eq.s32.totalorder %s24, 3
      %p262 = por %p260, %p261
      %p263 = scmp.ne.s32.totalorder %s252, %s253
      %p264 = scmp.eq.s32.totalorder %s24, 0
      %p265 = por %p263, %p264
      %p266 = scmp.ne.s32.totalorder %s252, %s253
      %p267 = scmp.eq.s32.totalorder %s25, 3
      %p268 = por %p266, %p267
      %p270 = scmp.ne.s32.totalorder %s253, %s269
      %p271 = scmp.eq.s32.totalorder %s25, 0
      %p272 = por %p270, %p271
      %p273 = scmp.le.s32.totalorder 1, %s19
      %p274 = scmp.lt.s32.totalorder %s19, 5
      %p275 = pnand %p273, %p274
      %p276 = pneg %p275
      // Predicated region
      $region9: #{psa_forward.5} parent=5 // pred_check
        _
      $region10: #{psa_forward.5} parent=5 // pred_check_branch
        %278 = sbr.rel (%p275) target = $region12
      $region11: #{psa_forward.5} parent=5 // pred_region
        %s279 = ssub.s32 %s19, 1
        // Predicated region
        $region13: #{psa_forward.5} parent=11 // pred_check
          %p280 = pneg %p92
        $region14: #{psa_forward.5} parent=11 // pred_check_branch
          %282 = sbr.rel (%p280) target = $region16
        $region15: #{psa_forward.5} parent=11 // pred_region
          _
        $region16: #{psa_forward.5} parent=11 // pred_fallthru
          _
        // Predicated region
        $region17: #{psa_forward.5} parent=11 // pred_check
          %p283 = pneg %p113
        $region18: #{psa_forward.5} parent=11 // pred_check_branch
          %285 = sbr.rel (%p283) target = $region20
        $region19: #{psa_forward.5} parent=11 // pred_region
          _
        $region20: #{psa_forward.5} parent=11 // pred_fallthru
          _
        // Predicated region
        $region21: #{psa_forward.5} parent=11 // pred_check
          %p286 = pneg %p134
        $region22: #{psa_forward.5} parent=11 // pred_check_branch
          %288 = sbr.rel (%p286) target = $region24
        $region23: #{psa_forward.5} parent=11 // pred_region
          _
        $region24: #{psa_forward.5} parent=11 // pred_fallthru
          _
        // Predicated region
        $region25: #{psa_forward.5} parent=11 // pred_check
          %p289 = pneg %p155
        $region26: #{psa_forward.5} parent=11 // pred_check_branch
          %291 = sbr.rel (%p289) target = $region28
        $region27: #{psa_forward.5} parent=11 // pred_region
          _
        $region28: #{psa_forward.5} parent=11 // pred_fallthru
          _
        // Predicated region
        $region29: #{psa_forward.5} parent=11 // pred_check
          %p292 = pneg %p176
        $region30: #{psa_forward.5} parent=11 // pred_check_branch
          %294 = sbr.rel (%p292) target = $region32
        $region31: #{psa_forward.5} parent=11 // pred_region
          _
        $region32: #{psa_forward.5} parent=11 // pred_fallthru
          _
        // Predicated region
        $region33: #{psa_forward.5} parent=11 // pred_check
          %p295 = pneg %p197
        $region34: #{psa_forward.5} parent=11 // pred_check_branch
          %297 = sbr.rel (%p295) target = $region36
        $region35: #{psa_forward.5} parent=11 // pred_region
          _
        $region36: #{psa_forward.5} parent=11 // pred_fallthru
          _
        // Predicated region
        $region37: #{psa_forward.5} parent=11 // pred_check
          %p298 = pneg %p218
        $region38: #{psa_forward.5} parent=11 // pred_check_branch
          %300 = sbr.rel (%p298) target = $region40
        $region39: #{psa_forward.5} parent=11 // pred_region
          _
        $region40: #{psa_forward.5} parent=11 // pred_fallthru
          _
        // Predicated region
        $region41: #{psa_forward.5} parent=11 // pred_check
          %p301 = pneg %p239
        $region42: #{psa_forward.5} parent=11 // pred_check_branch
          %303 = sbr.rel (%p301) target = $region44
        $region43: #{psa_forward.5} parent=11 // pred_region
          _
        $region44: #{psa_forward.5} parent=11 // pred_fallthru
          _
      $region12: #{psa_forward.5} parent=5 // pred_fallthru
        _
      %p304 = scmp.lt.s32.totalorder %s19, 4
      // Predicated region
      $region45: #{psa_forward.5} parent=5 // pred_check
        %p305 = pneg %p304
      $region46: #{psa_forward.5} parent=5 // pred_check_branch
        %307 = sbr.rel (%p305) target = $region48
      $region47: #{psa_forward.5} parent=5 // pred_region
        // Predicated region
        $region49: #{psa_forward.5} parent=47 // pred_check
          %p308 = pneg %p39
        $region50: #{psa_forward.5} parent=47 // pred_check_branch
          %310 = sbr.rel (%p308) target = $region52
        $region51: #{psa_forward.5} parent=47 // pred_region
          %s311 = smul.u32 16, %s19
          %p312 = scmp.lt.s32.totalorder %s311, 63
          %s313 = scalar_select %p312, %s311, 63
          %s314 = smul.addr %s313, 4
          %s315 = scalar_lea.vmem %s0, %s314
          %s316 = smul.u32 16, %s19
        $region52: #{psa_forward.5} parent=47 // pred_fallthru
          _
        // Predicated region
        $region53: #{psa_forward.5} parent=47 // pred_check
          %p317 = pneg %p65
        $region54: #{psa_forward.5} parent=47 // pred_check_branch
          %319 = sbr.rel (%p317) target = $region56
        $region55: #{psa_forward.5} parent=47 // pred_region
          %s320 = smul.u32 16, %s19
          %p321 = scmp.lt.s32.totalorder %s320, 63
          %s322 = scalar_select %p321, %s320, 63
          %s323 = smul.addr %s322, 4
          %s324 = scalar_lea.vmem %s1, %s323
          %s325 = smul.u32 16, %s19
        $region56: #{psa_forward.5} parent=47 // pred_fallthru
          _
      $region48: #{psa_forward.5} parent=5 // pred_fallthru
        _
      %p326 = scmp.le.s32.totalorder 1, %s19
      %p327 = scmp.lt.s32.totalorder %s19, 5
      %p328 = pnand %p326, %p327
      %p329 = pneg %p328
      // Predicated region
      $region57: #{psa_forward.5} parent=5 // pred_check
        _
      $region58: #{psa_forward.5} parent=5 // pred_check_branch
        %331 = sbr.rel (%p328) target = $region60
      $region59: #{psa_forward.5} parent=5 // pred_region
        %s332 = ssub.s32 %s19, 1
        %s333 = smul.u32 16, %s24
        %p334 = scmp.lt.s32.totalorder %s333, 63
        %s335 = scalar_select %p334, %s333, 63
        %s336 = smul.addr %s335, 4
        %s337 = scalar_lea.vmem %s0, %s336
        %p338 = pneg %p45
        %p339 = pneg %p42
        %s340 = smul.u32 16, %s24
        %p341 = scmp.lt.s32.totalorder %s340, 63
        %s342 = scalar_select %p341, %s340, 63
        %s343 = smul.addr %s342, 4
        %s344 = scalar_lea.vmem %s1, %s343
        %p345 = pneg %p71
        %p346 = pneg %p68
        %p347 = pneg %p92
        %p348 = pneg %p89
        %p349 = pneg %p113
        %p350 = pneg %p110
        %p351 = pneg %p134
        %p352 = pneg %p131
        %p353 = pneg %p155
        %p354 = pneg %p152
        %p355 = pneg %p176
        %p356 = pneg %p173
        %p357 = pneg %p197
        %p358 = pneg %p194
        %p359 = pneg %p218
        %p360 = pneg %p215
        %p361 = pneg %p239
        %p362 = pneg %p236
        %p363 = pneg %p265
        %p364 = pneg %p262
        %s365 = sand.u32 %s252, 1
        %s366 = scalar_lea.sflag [#allocation3], %s365
        %s367 = sand.u32 %s252, 1
        %s368 = smul.addr %s367, 128
        %s369 = scalar_lea.vmem [#allocation2], %s368
        %s370 = smul.u32 16, %s24
        %p371 = scmp.lt.s32.totalorder %s370, 63
        %s372 = scalar_select %p371, %s370, 63
        %s373 = smul.addr %s372, 4
        %s374 = scalar_lea.vmem %s0, %s373
        %s375 = smul.u32 16, %s24
        %s376 = smul.u32 16, %s24
        %p377 = scmp.lt.s32.totalorder %s376, 63
        %s378 = scalar_select %p377, %s376, 63
        %s379 = smul.addr %s378, 4
        %s380 = scalar_lea.vmem %s1, %s379
        %s381 = smul.u32 16, %s24
        %s382 = smul.u32 16, %s24
        %v384 = vld [vmem:[%s374] sm:$0xf]
        %v385 = vld [vmem:[%s374 + $0x4] sm:$0xf]
        %v386 = vld [vmem:[%s374 + $0x8] sm:$0xf]
        %v387 = vld [vmem:[%s374 + $0xc] sm:$0xf]
        %v388 = vld [vmem:[%s374 + $0x10] sm:$0xf]
        %v389 = vld [vmem:[%s374 + $0x14] sm:$0xf]
        %v390 = vld [vmem:[%s374 + $0x18] sm:$0xf]
        %v391 = vld [vmem:[%s374 + $0x1c] sm:$0xf]
        %v392 = vld [vmem:[%s374 + $0x20] sm:$0xf]
        %v393 = vld [vmem:[%s374 + $0x24] sm:$0xf]
        %v394 = vld [vmem:[%s374 + $0x28] sm:$0xf]
        %v395 = vld [vmem:[%s374 + $0x2c] sm:$0xf]
        %v396 = vld [vmem:[%s374 + $0x30] sm:$0xf]
        %v397 = vld [vmem:[%s374 + $0x34] sm:$0xf]
        %v398 = vld [vmem:[%s374 + $0x38] sm:$0xf]
        %v399 = vld [vmem:[%s374 + $0x3c] sm:$0xf]
        %v400 = vunpack.c.l.bf16 %v384
        %v401 = vunpack.c.l.bf16 %v385
        %v402 = vunpack.c.l.bf16 %v386
        %v403 = vunpack.c.l.bf16 %v387
        %v404 = vunpack.c.l.bf16 %v388
        %v405 = vunpack.c.l.bf16 %v389
        %v406 = vunpack.c.l.bf16 %v390
        %v407 = vunpack.c.l.bf16 %v391
        %v408 = vunpack.c.l.bf16 %v392
        %v409 = vunpack.c.l.bf16 %v393
        %v410 = vunpack.c.l.bf16 %v394
        %v411 = vunpack.c.l.bf16 %v395
        %v412 = vunpack.c.l.bf16 %v396
        %v413 = vunpack.c.l.bf16 %v397
        %v414 = vunpack.c.l.bf16 %v398
        %v415 = vunpack.c.l.bf16 %v399
        %v416 = vld [vmem:[%s380] sm:$0xf]
        %v417 = vld [vmem:[%s380 + $0x4] sm:$0xf]
        %v418 = vld [vmem:[%s380 + $0x8] sm:$0xf]
        %v419 = vld [vmem:[%s380 + $0xc] sm:$0xf]
        %v420 = vld [vmem:[%s380 + $0x10] sm:$0xf]
        %v421 = vld [vmem:[%s380 + $0x14] sm:$0xf]
        %v422 = vld [vmem:[%s380 + $0x18] sm:$0xf]
        %v423 = vld [vmem:[%s380 + $0x1c] sm:$0xf]
        %v424 = vld [vmem:[%s380 + $0x20] sm:$0xf]
        %v425 = vld [vmem:[%s380 + $0x24] sm:$0xf]
        %v426 = vld [vmem:[%s380 + $0x28] sm:$0xf]
        %v427 = vld [vmem:[%s380 + $0x2c] sm:$0xf]
        %v428 = vld [vmem:[%s380 + $0x30] sm:$0xf]
        %v429 = vld [vmem:[%s380 + $0x34] sm:$0xf]
        %v430 = vld [vmem:[%s380 + $0x38] sm:$0xf]
        %v431 = vld [vmem:[%s380 + $0x3c] sm:$0xf]
        %v432 = vld [vmem:[%s2] sm:$0xf]
        %v433 = vld [vmem:[%s2 + $0x4] sm:$0xf]
        %v434 = vld [vmem:[%s2 + $0x8] sm:$0xf]
        %v435 = vld [vmem:[%s2 + $0xc] sm:$0xf]
        %v436 = vld [vmem:[%s2 + $0x10] sm:$0xf]
        %v437 = vld [vmem:[%s2 + $0x14] sm:$0xf]
        %v438 = vld [vmem:[%s2 + $0x18] sm:$0xf]
        %v439 = vld [vmem:[%s2 + $0x1c] sm:$0xf]
        %v456 = vunpack.c.l.b16 %v416
        %v457 = vunpack.c.l.b16 %v417
        %v458 = vunpack.c.l.b16 %v418
        %v459 = vunpack.c.l.b16 %v419
        %v460 = vunpack.c.l.b16 %v420
        %v461 = vunpack.c.l.b16 %v421
        %v462 = vunpack.c.l.b16 %v422
        %v463 = vunpack.c.l.b16 %v423
        %v464 = vunpack.c.l.b16 %v424
        %v465 = vunpack.c.l.b16 %v425
        %v466 = vunpack.c.l.b16 %v426
        %v467 = vunpack.c.l.b16 %v427
        %v468 = vunpack.c.l.b16 %v428
        %v469 = vunpack.c.l.b16 %v429
        %v470 = vunpack.c.l.b16 %v430
        %v471 = vunpack.c.l.b16 %v431
        %v472 = vpack.c.b16 %v457, %v456
        %v473 = vpack.c.b16 %v459, %v458
        %v474 = vpack.c.b16 %v461, %v460
        %v475 = vpack.c.b16 %v463, %v462
        %v476 = vpack.c.b16 %v465, %v464
        %v477 = vpack.c.b16 %v467, %v466
        %v478 = vpack.c.b16 %v469, %v468
        %v479 = vpack.c.b16 %v471, %v470
        %v488 = vunpack.c.l.b16 %v432
        %v489 = vunpack.c.l.b16 %v433
        %v490 = vunpack.c.l.b16 %v434
        %v491 = vunpack.c.l.b16 %v435
        %v492 = vunpack.c.l.b16 %v436
        %v493 = vunpack.c.l.b16 %v437
        %v494 = vunpack.c.l.b16 %v438
        %v495 = vunpack.c.l.b16 %v439
        %v496 = vpack.c.b16 %v489, %v488
        %v497 = vpack.c.b16 %v491, %v490
        %v498 = vpack.c.b16 %v493, %v492
        %v499 = vpack.c.b16 %v495, %v494
        %vm504 = vcmask 523264
        %v506 = vsel %vm504, %v472, 0
        %v509 = vsel %vm504, %v473, 0
        %v512 = vsel %vm504, %v474, 0
        %v515 = vsel %vm504, %v475, 0
        %v518 = vsel %vm504, %v476, 0
        %v521 = vsel %vm504, %v477, 0
        %v524 = vsel %vm504, %v478, 0
        %v527 = vsel %vm504, %v479, 0
        %529 = vmatprep.subr.bf16.mxu0 0
        %530 = vmatpush1.bf16.msra.mxu0 0
        %531 = vmatprep.subr.bf16.mxu0 0
        %532 = vmatpush1.bf16.msra.mxu0 0
        %533 = vmatprep.subr.bf16.mxu0 0
        %534 = vmatpush1.bf16.msra.mxu0 0
        %535 = vmatprep.subr.bf16.mxu0 0
        %536 = vmatpush1.bf16.msra.mxu0 0
        %537 = vmatprep.subr.bf16.mxu0 0
        %538 = vmatpush1.bf16.msra.mxu0 %v499
        %539 = vmatprep.subr.bf16.mxu0 0
        %540 = vmatpush1.bf16.msra.mxu0 %v498
        %541 = vmatprep.subr.bf16.mxu0 0
        %542 = vmatpush1.bf16.msra.mxu0 %v497
        %543 = vmatprep.subr.bf16.mxu0 0
        %544 = vmatpush1.bf16.msra.mxu0 %v496
        %545 = vmatprep.subr.bf16.mxu0 0
        %546 = vmatpush2.bf16.msra.mxu0 0
        %547 = vmatprep.subr.bf16.mxu0 0
        %548 = vmatpush2.bf16.msra.mxu0 0
        %549 = vmatprep.subr.bf16.mxu0 0
        %550 = vmatpush2.bf16.msra.mxu0 0
        %551 = vmatprep.subr.bf16.mxu0 0
        %552 = vmatpush2.bf16.msra.mxu0 0
        %553 = vmatprep.subr.bf16.mxu0 0
        %554 = vmatpush2.bf16.msra.mxu0 0
        %555 = vmatprep.subr.bf16.mxu0 0
        %556 = vmatpush2.bf16.msra.mxu0 0
        %557 = vmatprep.subr.bf16.mxu0 0
        %558 = vmatpush2.bf16.msra.mxu0 0
        %559 = vmatprep.subr.bf16.mxu0 0
        %560 = vmatpush2.bf16.msra.mxu0 0
        %561 = vmatprep.mubr.bf16.mxu0 0
        %562 = vmatmul.mubr.bf16.gmra.mxu0 %v506
        %v563 = vpop.f32.mrf.mxu0
        %v564 = vadd.f32 0.0, %v563
        %v565 = vpop.f32.mrf.mxu0
        %v566 = vpop.f32.mrf.mxu0
        %v567 = vadd.f32 0.0, %v566
        %v568 = vpop.f32.mrf.mxu0
        %569 = vmatprep.mubr.bf16.mxu0 0
        %570 = vmatmul.mubr.bf16.gmra.mxu0 %v509
        %v571 = vpop.f32.mrf.mxu0
        %v572 = vadd.f32 0.0, %v571
        %v573 = vpop.f32.mrf.mxu0
        %v574 = vpop.f32.mrf.mxu0
        %v575 = vadd.f32 0.0, %v574
        %v576 = vpop.f32.mrf.mxu0
        %577 = vmatprep.mubr.bf16.mxu0 0
        %578 = vmatmul.mubr.bf16.gmra.mxu0 %v512
        %v579 = vpop.f32.mrf.mxu0
        %v580 = vadd.f32 0.0, %v579
        %v581 = vpop.f32.mrf.mxu0
        %v582 = vpop.f32.mrf.mxu0
        %v583 = vadd.f32 0.0, %v582
        %v584 = vpop.f32.mrf.mxu0
        %585 = vmatprep.mubr.bf16.mxu0 0
        %586 = vmatmul.mubr.bf16.gmra.mxu0 %v515
        %v587 = vpop.f32.mrf.mxu0
        %v588 = vadd.f32 0.0, %v587
        %v589 = vpop.f32.mrf.mxu0
        %v590 = vpop.f32.mrf.mxu0
        %v591 = vadd.f32 0.0, %v590
        %v592 = vpop.f32.mrf.mxu0
        %593 = vmatprep.mubr.bf16.mxu0 0
        %594 = vmatmul.mubr.bf16.gmra.mxu0 %v518
        %v595 = vpop.f32.mrf.mxu0
        %v596 = vadd.f32 0.0, %v595
        %v597 = vpop.f32.mrf.mxu0
        %v598 = vpop.f32.mrf.mxu0
        %v599 = vadd.f32 0.0, %v598
        %v600 = vpop.f32.mrf.mxu0
        %601 = vmatprep.mubr.bf16.mxu0 0
        %602 = vmatmul.mubr.bf16.gmra.mxu0 %v521
        %v603 = vpop.f32.mrf.mxu0
        %v604 = vadd.f32 0.0, %v603
        %v605 = vpop.f32.mrf.mxu0
        %v606 = vpop.f32.mrf.mxu0
        %v607 = vadd.f32 0.0, %v606
        %v608 = vpop.f32.mrf.mxu0
        %609 = vmatprep.mubr.bf16.mxu0 0
        %610 = vmatmul.mubr.bf16.gmra.mxu0 %v524
        %v611 = vpop.f32.mrf.mxu0
        %v612 = vadd.f32 0.0, %v611
        %v613 = vpop.f32.mrf.mxu0
        %v614 = vpop.f32.mrf.mxu0
        %v615 = vadd.f32 0.0, %v614
        %v616 = vpop.f32.mrf.mxu0
        %617 = vmatprep.mubr.bf16.mxu0 0
        %618 = vmatmul.mubr.bf16.gmra.mxu0 %v527
        %v619 = vpop.f32.mrf.mxu0
        %v620 = vadd.f32 0.0, %v619
        %v621 = vpop.f32.mrf.mxu0
        %v622 = vpop.f32.mrf.mxu0
        %v623 = vadd.f32 0.0, %v622
        %v624 = vpop.f32.mrf.mxu0
        %625 = vdwg.mxu0
        %642 = vrot.lane.b32.xlu0 %v564, 64
        %v643 = vpop.permute.xlu0 %642
        %644 = vrot.lane.b32.xlu0 %v567, 64
        %v645 = vpop.permute.xlu0 %644
        %646 = vrot.lane.b32.xlu0 %v572, 64
        %v647 = vpop.permute.xlu0 %646
        %648 = vrot.lane.b32.xlu0 %v575, 64
        %v649 = vpop.permute.xlu0 %648
        %650 = vrot.lane.b32.xlu0 %v580, 64
        %v651 = vpop.permute.xlu0 %650
        %652 = vrot.lane.b32.xlu0 %v583, 64
        %v653 = vpop.permute.xlu0 %652
        %654 = vrot.lane.b32.xlu0 %v588, 64
        %v655 = vpop.permute.xlu0 %654
        %656 = vrot.lane.b32.xlu0 %v591, 64
        %v657 = vpop.permute.xlu0 %656
        %658 = vrot.lane.b32.xlu0 %v596, 64
        %v659 = vpop.permute.xlu0 %658
        %660 = vrot.lane.b32.xlu0 %v599, 64
        %v661 = vpop.permute.xlu0 %660
        %662 = vrot.lane.b32.xlu0 %v604, 64
        %v663 = vpop.permute.xlu0 %662
        %664 = vrot.lane.b32.xlu0 %v607, 64
        %v665 = vpop.permute.xlu0 %664
        %666 = vrot.lane.b32.xlu0 %v612, 64
        %v667 = vpop.permute.xlu0 %666
        %668 = vrot.lane.b32.xlu0 %v615, 64
        %v669 = vpop.permute.xlu0 %668
        %670 = vrot.lane.b32.xlu0 %v620, 64
        %v671 = vpop.permute.xlu0 %670
        %672 = vrot.lane.b32.xlu0 %v623, 64
        %v673 = vpop.permute.xlu0 %672
        %v690 = vadd.f32 %v400, %v643
        %v691 = vadd.f32 %v401, %v645
        %v692 = vadd.f32 %v402, %v647
        %v693 = vadd.f32 %v403, %v649
        %v694 = vadd.f32 %v404, %v651
        %v695 = vadd.f32 %v405, %v653
        %v696 = vadd.f32 %v406, %v655
        %v697 = vadd.f32 %v407, %v657
        %v698 = vadd.f32 %v408, %v659
        %v699 = vadd.f32 %v409, %v661
        %v700 = vadd.f32 %v410, %v663
        %v701 = vadd.f32 %v411, %v665
        %v702 = vadd.f32 %v412, %v667
        %v703 = vadd.f32 %v413, %v669
        %v704 = vadd.f32 %v414, %v671
        %v705 = vadd.f32 %v415, %v673
        %v706 = vld [vmem:[%s3] sm:$0x1]
        %v708 = vlaneseq
        %v709 = vshrl.u32 %v708, 7
        %v710 = vsub.s32 0, %v709
        %v711 = vrot.slane %v706, %v710
        %712 = vrot.lane.b32.xlu0 %v711, 64
        %v713 = vpop.permute.xlu0 %712
        %v715 = vadd.f32 %v690, %v713
        %v716 = vadd.f32 %v691, %v713
        %v717 = vadd.f32 %v692, %v713
        %v718 = vadd.f32 %v693, %v713
        %v719 = vadd.f32 %v694, %v713
        %v720 = vadd.f32 %v695, %v713
        %v721 = vadd.f32 %v696, %v713
        %v722 = vadd.f32 %v697, %v713
        %v723 = vadd.f32 %v698, %v713
        %v724 = vadd.f32 %v699, %v713
        %v725 = vadd.f32 %v700, %v713
        %v726 = vadd.f32 %v701, %v713
        %v727 = vadd.f32 %v702, %v713
        %v728 = vadd.f32 %v703, %v713
        %v729 = vadd.f32 %v704, %v713
        %v730 = vadd.f32 %v705, %v713
        %v731 = vpack.c.bf16 %v716, %v715
        %v732 = vpack.c.bf16 %v718, %v717
        %v733 = vpack.c.bf16 %v720, %v719
        %v734 = vpack.c.bf16 %v722, %v721
        %v735 = vpack.c.bf16 %v724, %v723
        %v736 = vpack.c.bf16 %v726, %v725
        %v737 = vpack.c.bf16 %v728, %v727
        %v738 = vpack.c.bf16 %v730, %v729
        %v739 = vld [vmem:[%s4] sm:$0xf]
        %v740 = vld [vmem:[%s4 + $0x4] sm:$0xf]
        %v741 = vld [vmem:[%s4 + $0x8] sm:$0xf]
        %v742 = vld [vmem:[%s4 + $0xc] sm:$0xf]
        %v743 = vld [vmem:[%s4 + $0x10] sm:$0xf]
        %v744 = vld [vmem:[%s4 + $0x14] sm:$0xf]
        %v745 = vld [vmem:[%s4 + $0x18] sm:$0xf]
        %v746 = vld [vmem:[%s4 + $0x1c] sm:$0xf]
        %v747 = vld [vmem:[%s5] sm:$0x1]
        %v749 = vlaneseq
        %v750 = vshrl.u32 %v749, 7
        %v751 = vsub.s32 0, %v750
        %v752 = vrot.slane %v747, %v751
        %762 = vrot.lane.b32.xlu0 %v731, 64
        %v763 = vpop.permute.xlu0 %762
        %764 = vrot.lane.b32.xlu0 %v732, 64
        %v765 = vpop.permute.xlu0 %764
        %766 = vrot.lane.b32.xlu0 %v733, 64
        %v767 = vpop.permute.xlu0 %766
        %768 = vrot.lane.b32.xlu0 %v734, 64
        %v769 = vpop.permute.xlu0 %768
        %770 = vrot.lane.b32.xlu0 %v735, 64
        %v771 = vpop.permute.xlu0 %770
        %772 = vrot.lane.b32.xlu0 %v736, 64
        %v773 = vpop.permute.xlu0 %772
        %774 = vrot.lane.b32.xlu0 %v737, 64
        %v775 = vpop.permute.xlu0 %774
        %776 = vrot.lane.b32.xlu0 %v738, 64
        %v777 = vpop.permute.xlu0 %776
        %v786 = vunpack.c.l.b16 %v739
        %v787 = vunpack.c.l.b16 %v740
        %v788 = vunpack.c.l.b16 %v741
        %v789 = vunpack.c.l.b16 %v742
        %v790 = vunpack.c.l.b16 %v743
        %v791 = vunpack.c.l.b16 %v744
        %v792 = vunpack.c.l.b16 %v745
        %v793 = vunpack.c.l.b16 %v746
        %v794 = vpack.c.b16 %v787, %v786
        %v795 = vpack.c.b16 %v789, %v788
        %v796 = vpack.c.b16 %v791, %v790
        %v797 = vpack.c.b16 %v793, %v792
        %v803 = vsel %vm504, %v763, 0
        %v806 = vsel %vm504, %v765, 0
        %v809 = vsel %vm504, %v767, 0
        %v812 = vsel %vm504, %v769, 0
        %v815 = vsel %vm504, %v771, 0
        %v818 = vsel %vm504, %v773, 0
        %v821 = vsel %vm504, %v775, 0
        %v824 = vsel %vm504, %v777, 0
        %826 = vmatprep.subr.bf16.mxu0 0
        %827 = vmatpush1.bf16.msra.mxu0 0
        %828 = vmatprep.subr.bf16.mxu0 0
        %829 = vmatpush1.bf16.msra.mxu0 0
        %830 = vmatprep.subr.bf16.mxu0 0
        %831 = vmatpush1.bf16.msra.mxu0 0
        %832 = vmatprep.subr.bf16.mxu0 0
        %833 = vmatpush1.bf16.msra.mxu0 0
        %834 = vmatprep.subr.bf16.mxu0 0
        %835 = vmatpush1.bf16.msra.mxu0 %v797
        %836 = vmatprep.subr.bf16.mxu0 0
        %837 = vmatpush1.bf16.msra.mxu0 %v796
        %838 = vmatprep.subr.bf16.mxu0 0
        %839 = vmatpush1.bf16.msra.mxu0 %v795
        %840 = vmatprep.subr.bf16.mxu0 0
        %841 = vmatpush1.bf16.msra.mxu0 %v794
        %842 = vmatprep.subr.bf16.mxu0 0
        %843 = vmatpush2.bf16.msra.mxu0 0
        %844 = vmatprep.subr.bf16.mxu0 0
        %845 = vmatpush2.bf16.msra.mxu0 0
        %846 = vmatprep.subr.bf16.mxu0 0
        %847 = vmatpush2.bf16.msra.mxu0 0
        %848 = vmatprep.subr.bf16.mxu0 0
        %849 = vmatpush2.bf16.msra.mxu0 0
        %850 = vmatprep.subr.bf16.mxu0 0
        %851 = vmatpush2.bf16.msra.mxu0 0
        %852 = vmatprep.subr.bf16.mxu0 0
        %853 = vmatpush2.bf16.msra.mxu0 0
        %854 = vmatprep.subr.bf16.mxu0 0
        %855 = vmatpush2.bf16.msra.mxu0 0
        %856 = vmatprep.subr.bf16.mxu0 0
        %857 = vmatpush2.bf16.msra.mxu0 0
        %858 = vmatprep.mubr.bf16.mxu0 0
        %859 = vmatmul.mubr.bf16.gmra.mxu0 %v803
        %v860 = vpop.f32.mrf.mxu0
        %v861 = vadd.f32 %v752, %v860
        %v862 = vpop.f32.mrf.mxu0
        %v863 = vpop.f32.mrf.mxu0
        %v864 = vadd.f32 %v752, %v863
        %v865 = vpop.f32.mrf.mxu0
        %866 = vmatprep.mubr.bf16.mxu0 0
        %867 = vmatmul.mubr.bf16.gmra.mxu0 %v806
        %v868 = vpop.f32.mrf.mxu0
        %v869 = vadd.f32 %v752, %v868
        %v870 = vpop.f32.mrf.mxu0
        %v871 = vpop.f32.mrf.mxu0
        %v872 = vadd.f32 %v752, %v871
        %v873 = vpop.f32.mrf.mxu0
        %874 = vmatprep.mubr.bf16.mxu0 0
        %875 = vmatmul.mubr.bf16.gmra.mxu0 %v809
        %v876 = vpop.f32.mrf.mxu0
        %v877 = vadd.f32 %v752, %v876
        %v878 = vpop.f32.mrf.mxu0
        %v879 = vpop.f32.mrf.mxu0
        %v880 = vadd.f32 %v752, %v879
        %v881 = vpop.f32.mrf.mxu0
        %882 = vmatprep.mubr.bf16.mxu0 0
        %883 = vmatmul.mubr.bf16.gmra.mxu0 %v812
        %v884 = vpop.f32.mrf.mxu0
        %v885 = vadd.f32 %v752, %v884
        %v886 = vpop.f32.mrf.mxu0
        %v887 = vpop.f32.mrf.mxu0
        %v888 = vadd.f32 %v752, %v887
        %v889 = vpop.f32.mrf.mxu0
        %890 = vmatprep.mubr.bf16.mxu0 0
        %891 = vmatmul.mubr.bf16.gmra.mxu0 %v815
        %v892 = vpop.f32.mrf.mxu0
        %v893 = vadd.f32 %v752, %v892
        %v894 = vpop.f32.mrf.mxu0
        %v895 = vpop.f32.mrf.mxu0
        %v896 = vadd.f32 %v752, %v895
        %v897 = vpop.f32.mrf.mxu0
        %898 = vmatprep.mubr.bf16.mxu0 0
        %899 = vmatmul.mubr.bf16.gmra.mxu0 %v818
        %v900 = vpop.f32.mrf.mxu0
        %v901 = vadd.f32 %v752, %v900
        %v902 = vpop.f32.mrf.mxu0
        %v903 = vpop.f32.mrf.mxu0
        %v904 = vadd.f32 %v752, %v903
        %v905 = vpop.f32.mrf.mxu0
        %906 = vmatprep.mubr.bf16.mxu0 0
        %907 = vmatmul.mubr.bf16.gmra.mxu0 %v821
        %v908 = vpop.f32.mrf.mxu0
        %v909 = vadd.f32 %v752, %v908
        %v910 = vpop.f32.mrf.mxu0
        %v911 = vpop.f32.mrf.mxu0
        %v912 = vadd.f32 %v752, %v911
        %v913 = vpop.f32.mrf.mxu0
        %914 = vmatprep.mubr.bf16.mxu0 0
        %915 = vmatmul.mubr.bf16.gmra.mxu0 %v824
        %v916 = vpop.f32.mrf.mxu0
        %v917 = vadd.f32 %v752, %v916
        %v918 = vpop.f32.mrf.mxu0
        %v919 = vpop.f32.mrf.mxu0
        %v920 = vadd.f32 %v752, %v919
        %v921 = vpop.f32.mrf.mxu0
        %922 = vdwg.mxu0
        %v923 = vxor.u32 %v861, 2147483648
        %v924 = vxor.u32 %v864, 2147483648
        %v925 = vxor.u32 %v869, 2147483648
        %v926 = vxor.u32 %v872, 2147483648
        %v927 = vxor.u32 %v877, 2147483648
        %v928 = vxor.u32 %v880, 2147483648
        %v929 = vxor.u32 %v885, 2147483648
        %v930 = vxor.u32 %v888, 2147483648
        %v931 = vxor.u32 %v893, 2147483648
        %v932 = vxor.u32 %v896, 2147483648
        %v933 = vxor.u32 %v901, 2147483648
        %v934 = vxor.u32 %v904, 2147483648
        %v935 = vxor.u32 %v909, 2147483648
        %v936 = vxor.u32 %v912, 2147483648
        %v937 = vxor.u32 %v917, 2147483648
        %v938 = vxor.u32 %v920, 2147483648
        %v939 = vmul.f32 %v923, 1.442695
        %v940 = vpow.pop %v939
        %v941 = vmul.f32 %v924, 1.442695
        %v942 = vpow.pop %v941
        %v943 = vmul.f32 %v925, 1.442695
        %v944 = vpow.pop %v943
        %v945 = vmul.f32 %v926, 1.442695
        %v946 = vpow.pop %v945
        %v947 = vmul.f32 %v927, 1.442695
        %v948 = vpow.pop %v947
        %v949 = vmul.f32 %v928, 1.442695
        %v950 = vpow.pop %v949
        %v951 = vmul.f32 %v929, 1.442695
        %v952 = vpow.pop %v951
        %v953 = vmul.f32 %v930, 1.442695
        %v954 = vpow.pop %v953
        %v955 = vmul.f32 %v931, 1.442695
        %v956 = vpow.pop %v955
        %v957 = vmul.f32 %v932, 1.442695
        %v958 = vpow.pop %v957
        %v959 = vmul.f32 %v933, 1.442695
        %v960 = vpow.pop %v959
        %v961 = vmul.f32 %v934, 1.442695
        %v962 = vpow.pop %v961
        %v963 = vmul.f32 %v935, 1.442695
        %v964 = vpow.pop %v963
        %v965 = vmul.f32 %v936, 1.442695
        %v966 = vpow.pop %v965
        %v967 = vmul.f32 %v937, 1.442695
        %v968 = vpow.pop %v967
        %v969 = vmul.f32 %v938, 1.442695
        %v970 = vpow.pop %v969
        %v971 = vadd.f32 %v940, 1.0
        %v972 = vadd.f32 %v942, 1.0
        %v973 = vadd.f32 %v944, 1.0
        %v974 = vadd.f32 %v946, 1.0
        %v975 = vadd.f32 %v948, 1.0
        %v976 = vadd.f32 %v950, 1.0
        %v977 = vadd.f32 %v952, 1.0
        %v978 = vadd.f32 %v954, 1.0
        %v979 = vadd.f32 %v956, 1.0
        %v980 = vadd.f32 %v958, 1.0
        %v981 = vadd.f32 %v960, 1.0
        %v982 = vadd.f32 %v962, 1.0
        %v983 = vadd.f32 %v964, 1.0
        %v984 = vadd.f32 %v966, 1.0
        %v985 = vadd.f32 %v968, 1.0
        %v986 = vadd.f32 %v970, 1.0
        %v987 = vrcp.pop %v971
        %v988 = vmul.f32 1.0, %v987
        %v989 = vrcp.pop %v972
        %v990 = vmul.f32 1.0, %v989
        %v991 = vrcp.pop %v973
        %v992 = vmul.f32 1.0, %v991
        %v993 = vrcp.pop %v974
        %v994 = vmul.f32 1.0, %v993
        %v995 = vrcp.pop %v975
        %v996 = vmul.f32 1.0, %v995
        %v997 = vrcp.pop %v976
        %v998 = vmul.f32 1.0, %v997
        %v999 = vrcp.pop %v977
        %v1000 = vmul.f32 1.0, %v999
        %v1001 = vrcp.pop %v978
        %v1002 = vmul.f32 1.0, %v1001
        %v1003 = vrcp.pop %v979
        %v1004 = vmul.f32 1.0, %v1003
        %v1005 = vrcp.pop %v980
        %v1006 = vmul.f32 1.0, %v1005
        %v1007 = vrcp.pop %v981
        %v1008 = vmul.f32 1.0, %v1007
        %v1009 = vrcp.pop %v982
        %v1010 = vmul.f32 1.0, %v1009
        %v1011 = vrcp.pop %v983
        %v1012 = vmul.f32 1.0, %v1011
        %v1013 = vrcp.pop %v984
        %v1014 = vmul.f32 1.0, %v1013
        %v1015 = vrcp.pop %v985
        %v1016 = vmul.f32 1.0, %v1015
        %v1017 = vrcp.pop %v986
        %v1018 = vmul.f32 1.0, %v1017
        %v1019 = vmul.f32 %v861, %v988
        %v1020 = vmul.f32 %v864, %v990
        %v1021 = vmul.f32 %v869, %v992
        %v1022 = vmul.f32 %v872, %v994
        %v1023 = vmul.f32 %v877, %v996
        %v1024 = vmul.f32 %v880, %v998
        %v1025 = vmul.f32 %v885, %v1000
        %v1026 = vmul.f32 %v888, %v1002
        %v1027 = vmul.f32 %v893, %v1004
        %v1028 = vmul.f32 %v896, %v1006
        %v1029 = vmul.f32 %v901, %v1008
        %v1030 = vmul.f32 %v904, %v1010
        %v1031 = vmul.f32 %v909, %v1012
        %v1032 = vmul.f32 %v912, %v1014
        %v1033 = vmul.f32 %v917, %v1016
        %v1034 = vmul.f32 %v920, %v1018
        %v1035 = vpack.c.bf16 %v1020, %v1019
        %v1036 = vpack.c.bf16 %v1022, %v1021
        %v1037 = vpack.c.bf16 %v1024, %v1023
        %v1038 = vpack.c.bf16 %v1026, %v1025
        %v1039 = vpack.c.bf16 %v1028, %v1027
        %v1040 = vpack.c.bf16 %v1030, %v1029
        %v1041 = vpack.c.bf16 %v1032, %v1031
        %v1042 = vpack.c.bf16 %v1034, %v1033
        %v1043 = vld [vmem:[%s6] sm:$0xf]
        %v1044 = vld [vmem:[%s6 + $0x4] sm:$0xf]
        %v1045 = vld [vmem:[%s6 + $0x8] sm:$0xf]
        %v1046 = vld [vmem:[%s6 + $0xc] sm:$0xf]
        %v1047 = vld [vmem:[%s6 + $0x10] sm:$0xf]
        %v1048 = vld [vmem:[%s6 + $0x14] sm:$0xf]
        %v1049 = vld [vmem:[%s6 + $0x18] sm:$0xf]
        %v1050 = vld [vmem:[%s6 + $0x1c] sm:$0xf]
        %v1051 = vld [vmem:[%s6 + $0x20] sm:$0xf]
        %v1052 = vld [vmem:[%s6 + $0x24] sm:$0xf]
        %v1053 = vld [vmem:[%s6 + $0x28] sm:$0xf]
        %v1054 = vld [vmem:[%s6 + $0x2c] sm:$0xf]
        %v1055 = vld [vmem:[%s6 + $0x30] sm:$0xf]
        %v1056 = vld [vmem:[%s6 + $0x34] sm:$0xf]
        %v1057 = vld [vmem:[%s6 + $0x38] sm:$0xf]
        %v1058 = vld [vmem:[%s6 + $0x3c] sm:$0xf]
        %v1075 = vunpack.c.l.b16 %v1043
        %v1076 = vunpack.c.l.b16 %v1044
        %v1077 = vunpack.c.l.b16 %v1045
        %v1078 = vunpack.c.l.b16 %v1046
        %v1079 = vunpack.c.l.b16 %v1047
        %v1080 = vunpack.c.l.b16 %v1048
        %v1081 = vunpack.c.l.b16 %v1049
        %v1082 = vunpack.c.l.b16 %v1050
        %v1083 = vunpack.c.l.b16 %v1051
        %v1084 = vunpack.c.l.b16 %v1052
        %v1085 = vunpack.c.l.b16 %v1053
        %v1086 = vunpack.c.l.b16 %v1054
        %v1087 = vunpack.c.l.b16 %v1055
        %v1088 = vunpack.c.l.b16 %v1056
        %v1089 = vunpack.c.l.b16 %v1057
        %v1090 = vunpack.c.l.b16 %v1058
        %v1091 = vpack.c.b16 %v1076, %v1075
        %v1092 = vpack.c.b16 %v1078, %v1077
        %v1093 = vpack.c.b16 %v1080, %v1079
        %v1094 = vpack.c.b16 %v1082, %v1081
        %v1095 = vpack.c.b16 %v1084, %v1083
        %v1096 = vpack.c.b16 %v1086, %v1085
        %v1097 = vpack.c.b16 %v1088, %v1087
        %v1098 = vpack.c.b16 %v1090, %v1089
        %1107 = vmatprep.subr.bf16.mxu0 0
        %1108 = vmatpush1.bf16.msra.mxu0 %v1098
        %1109 = vmatprep.subr.bf16.mxu0 0
        %1110 = vmatpush1.bf16.msra.mxu0 %v1097
        %1111 = vmatprep.subr.bf16.mxu0 0
        %1112 = vmatpush1.bf16.msra.mxu0 %v1096
        %1113 = vmatprep.subr.bf16.mxu0 0
        %1114 = vmatpush1.bf16.msra.mxu0 %v1095
        %1115 = vmatprep.subr.bf16.mxu0 0
        %1116 = vmatpush1.bf16.msra.mxu0 %v1094
        %1117 = vmatprep.subr.bf16.mxu0 0
        %1118 = vmatpush1.bf16.msra.mxu0 %v1093
        %1119 = vmatprep.subr.bf16.mxu0 0
        %1120 = vmatpush1.bf16.msra.mxu0 %v1092
        %1121 = vmatprep.subr.bf16.mxu0 0
        %1122 = vmatpush1.bf16.msra.mxu0 %v1091
        %1123 = vmatprep.subr.bf16.mxu0 0
        %1124 = vmatpush2.bf16.msra.mxu0 0
        %1125 = vmatprep.subr.bf16.mxu0 0
        %1126 = vmatpush2.bf16.msra.mxu0 0
        %1127 = vmatprep.subr.bf16.mxu0 0
        %1128 = vmatpush2.bf16.msra.mxu0 0
        %1129 = vmatprep.subr.bf16.mxu0 0
        %1130 = vmatpush2.bf16.msra.mxu0 0
        %1131 = vmatprep.subr.bf16.mxu0 0
        %1132 = vmatpush2.bf16.msra.mxu0 0
        %1133 = vmatprep.subr.bf16.mxu0 0
        %1134 = vmatpush2.bf16.msra.mxu0 0
        %1135 = vmatprep.subr.bf16.mxu0 0
        %1136 = vmatpush2.bf16.msra.mxu0 0
        %1137 = vmatprep.subr.bf16.mxu0 0
        %1138 = vmatpush2.bf16.msra.mxu0 0
        %1139 = vmatprep.mubr.bf16.mxu0 0
        %1140 = vmatmul.mubr.bf16.gmra.mxu0 %v1035
        %v1141 = vpop.f32.mrf.mxu0
        %v1142 = vadd.f32 0.0, %v1141
        %v1143 = vpop.f32.mrf.mxu0
        %v1144 = vpop.f32.mrf.mxu0
        %v1145 = vadd.f32 0.0, %v1144
        %v1146 = vpop.f32.mrf.mxu0
        %1147 = vmatprep.mubr.bf16.mxu0 0
        %1148 = vmatmul.mubr.bf16.gmra.mxu0 %v1036
        %v1149 = vpop.f32.mrf.mxu0
        %v1150 = vadd.f32 0.0, %v1149
        %v1151 = vpop.f32.mrf.mxu0
        %v1152 = vpop.f32.mrf.mxu0
        %v1153 = vadd.f32 0.0, %v1152
        %v1154 = vpop.f32.mrf.mxu0
        %1155 = vmatprep.mubr.bf16.mxu0 0
        %1156 = vmatmul.mubr.bf16.gmra.mxu0 %v1037
        %v1157 = vpop.f32.mrf.mxu0
        %v1158 = vadd.f32 0.0, %v1157
        %v1159 = vpop.f32.mrf.mxu0
        %v1160 = vpop.f32.mrf.mxu0
        %v1161 = vadd.f32 0.0, %v1160
        %v1162 = vpop.f32.mrf.mxu0
        %1163 = vmatprep.mubr.bf16.mxu0 0
        %1164 = vmatmul.mubr.bf16.gmra.mxu0 %v1038
        %v1165 = vpop.f32.mrf.mxu0
        %v1166 = vadd.f32 0.0, %v1165
        %v1167 = vpop.f32.mrf.mxu0
        %v1168 = vpop.f32.mrf.mxu0
        %v1169 = vadd.f32 0.0, %v1168
        %v1170 = vpop.f32.mrf.mxu0
        %1171 = vmatprep.mubr.bf16.mxu0 0
        %1172 = vmatmul.mubr.bf16.gmra.mxu0 %v1039
        %v1173 = vpop.f32.mrf.mxu0
        %v1174 = vadd.f32 0.0, %v1173
        %v1175 = vpop.f32.mrf.mxu0
        %v1176 = vpop.f32.mrf.mxu0
        %v1177 = vadd.f32 0.0, %v1176
        %v1178 = vpop.f32.mrf.mxu0
        %1179 = vmatprep.mubr.bf16.mxu0 0
        %1180 = vmatmul.mubr.bf16.gmra.mxu0 %v1040
        %v1181 = vpop.f32.mrf.mxu0
        %v1182 = vadd.f32 0.0, %v1181
        %v1183 = vpop.f32.mrf.mxu0
        %v1184 = vpop.f32.mrf.mxu0
        %v1185 = vadd.f32 0.0, %v1184
        %v1186 = vpop.f32.mrf.mxu0
        %1187 = vmatprep.mubr.bf16.mxu0 0
        %1188 = vmatmul.mubr.bf16.gmra.mxu0 %v1041
        %v1189 = vpop.f32.mrf.mxu0
        %v1190 = vadd.f32 0.0, %v1189
        %v1191 = vpop.f32.mrf.mxu0
        %v1192 = vpop.f32.mrf.mxu0
        %v1193 = vadd.f32 0.0, %v1192
        %v1194 = vpop.f32.mrf.mxu0
        %1195 = vmatprep.mubr.bf16.mxu0 0
        %1196 = vmatmul.mubr.bf16.gmra.mxu0 %v1042
        %v1197 = vpop.f32.mrf.mxu0
        %v1198 = vadd.f32 0.0, %v1197
        %v1199 = vpop.f32.mrf.mxu0
        %v1200 = vpop.f32.mrf.mxu0
        %v1201 = vadd.f32 0.0, %v1200
        %v1202 = vpop.f32.mrf.mxu0
        %1203 = vdwg.mxu0
        %1220 = vrot.lane.b32.xlu0 %v1142, 64
        %v1221 = vpop.permute.xlu0 %1220
        %1222 = vrot.lane.b32.xlu0 %v1145, 64
        %v1223 = vpop.permute.xlu0 %1222
        %1224 = vrot.lane.b32.xlu0 %v1150, 64
        %v1225 = vpop.permute.xlu0 %1224
        %1226 = vrot.lane.b32.xlu0 %v1153, 64
        %v1227 = vpop.permute.xlu0 %1226
        %1228 = vrot.lane.b32.xlu0 %v1158, 64
        %v1229 = vpop.permute.xlu0 %1228
        %1230 = vrot.lane.b32.xlu0 %v1161, 64
        %v1231 = vpop.permute.xlu0 %1230
        %1232 = vrot.lane.b32.xlu0 %v1166, 64
        %v1233 = vpop.permute.xlu0 %1232
        %1234 = vrot.lane.b32.xlu0 %v1169, 64
        %v1235 = vpop.permute.xlu0 %1234
        %1236 = vrot.lane.b32.xlu0 %v1174, 64
        %v1237 = vpop.permute.xlu0 %1236
        %1238 = vrot.lane.b32.xlu0 %v1177, 64
        %v1239 = vpop.permute.xlu0 %1238
        %1240 = vrot.lane.b32.xlu0 %v1182, 64
        %v1241 = vpop.permute.xlu0 %1240
        %1242 = vrot.lane.b32.xlu0 %v1185, 64
        %v1243 = vpop.permute.xlu0 %1242
        %1244 = vrot.lane.b32.xlu0 %v1190, 64
        %v1245 = vpop.permute.xlu0 %1244
        %1246 = vrot.lane.b32.xlu0 %v1193, 64
        %v1247 = vpop.permute.xlu0 %1246
        %1248 = vrot.lane.b32.xlu0 %v1198, 64
        %v1249 = vpop.permute.xlu0 %1248
        %1250 = vrot.lane.b32.xlu0 %v1201, 64
        %v1251 = vpop.permute.xlu0 %1250
        %v1268 = vadd.f32 %v715, %v1221
        %v1269 = vadd.f32 %v716, %v1223
        %v1270 = vadd.f32 %v717, %v1225
        %v1271 = vadd.f32 %v718, %v1227
        %v1272 = vadd.f32 %v719, %v1229
        %v1273 = vadd.f32 %v720, %v1231
        %v1274 = vadd.f32 %v721, %v1233
        %v1275 = vadd.f32 %v722, %v1235
        %v1276 = vadd.f32 %v723, %v1237
        %v1277 = vadd.f32 %v724, %v1239
        %v1278 = vadd.f32 %v725, %v1241
        %v1279 = vadd.f32 %v726, %v1243
        %v1280 = vadd.f32 %v727, %v1245
        %v1281 = vadd.f32 %v728, %v1247
        %v1282 = vadd.f32 %v729, %v1249
        %v1283 = vadd.f32 %v730, %v1251
        %v1284 = vld [vmem:[%s7] sm:$0x1]
        %v1286 = vlaneseq
        %v1287 = vshrl.u32 %v1286, 7
        %v1288 = vsub.s32 0, %v1287
        %v1289 = vrot.slane %v1284, %v1288
        %1290 = vrot.lane.b32.xlu0 %v1289, 64
        %v1291 = vpop.permute.xlu0 %1290
        %v1293 = vadd.f32 %v1268, %v1291
        %v1294 = vadd.f32 %v1269, %v1291
        %v1295 = vadd.f32 %v1270, %v1291
        %v1296 = vadd.f32 %v1271, %v1291
        %v1297 = vadd.f32 %v1272, %v1291
        %v1298 = vadd.f32 %v1273, %v1291
        %v1299 = vadd.f32 %v1274, %v1291
        %v1300 = vadd.f32 %v1275, %v1291
        %v1301 = vadd.f32 %v1276, %v1291
        %v1302 = vadd.f32 %v1277, %v1291
        %v1303 = vadd.f32 %v1278, %v1291
        %v1304 = vadd.f32 %v1279, %v1291
        %v1305 = vadd.f32 %v1280, %v1291
        %v1306 = vadd.f32 %v1281, %v1291
        %v1307 = vadd.f32 %v1282, %v1291
        %v1308 = vadd.f32 %v1283, %v1291
        %v1309 = vpack.c.bf16 %v1294, %v1293
        %v1310 = vpack.c.bf16 %v1296, %v1295
        %v1311 = vpack.c.bf16 %v1298, %v1297
        %v1312 = vpack.c.bf16 %v1300, %v1299
        %v1313 = vpack.c.bf16 %v1302, %v1301
        %v1314 = vpack.c.bf16 %v1304, %v1303
        %v1315 = vpack.c.bf16 %v1306, %v1305
        %v1316 = vpack.c.bf16 %v1308, %v1307
        %v1333 = vunpack.c.l.b16 %v384
        %v1334 = vunpack.c.l.b16 %v385
        %v1335 = vunpack.c.l.b16 %v386
        %v1336 = vunpack.c.l.b16 %v387
        %v1337 = vunpack.c.l.b16 %v388
        %v1338 = vunpack.c.l.b16 %v389
        %v1339 = vunpack.c.l.b16 %v390
        %v1340 = vunpack.c.l.b16 %v391
        %v1341 = vunpack.c.l.b16 %v392
        %v1342 = vunpack.c.l.b16 %v393
        %v1343 = vunpack.c.l.b16 %v394
        %v1344 = vunpack.c.l.b16 %v395
        %v1345 = vunpack.c.l.b16 %v396
        %v1346 = vunpack.c.l.b16 %v397
        %v1347 = vunpack.c.l.b16 %v398
        %v1348 = vunpack.c.l.b16 %v399
        %v1349 = vpack.c.b16 %v1334, %v1333
        %v1350 = vpack.c.b16 %v1336, %v1335
        %v1351 = vpack.c.b16 %v1338, %v1337
        %v1352 = vpack.c.b16 %v1340, %v1339
        %v1353 = vpack.c.b16 %v1342, %v1341
        %v1354 = vpack.c.b16 %v1344, %v1343
        %v1355 = vpack.c.b16 %v1346, %v1345
        %v1356 = vpack.c.b16 %v1348, %v1347
        %v1359 = vsel %vm504, %v1349, %v1309
        %v1363 = vsel %vm504, %v1350, %v1310
        %v1367 = vsel %vm504, %v1351, %v1311
        %v1371 = vsel %vm504, %v1352, %v1312
        %v1375 = vsel %vm504, %v1353, %v1313
        %v1379 = vsel %vm504, %v1354, %v1314
        %v1383 = vsel %vm504, %v1355, %v1315
        %v1387 = vsel %vm504, %v1356, %v1316
        %v1389 = vld [vmem:[%s8] sm:$0xf]
        %v1390 = vld [vmem:[%s8 + $0x4] sm:$0xf]
        %v1391 = vld [vmem:[%s8 + $0x8] sm:$0xf]
        %v1392 = vld [vmem:[%s8 + $0xc] sm:$0xf]
        %v1393 = vld [vmem:[%s8 + $0x10] sm:$0xf]
        %v1394 = vld [vmem:[%s8 + $0x14] sm:$0xf]
        %v1395 = vld [vmem:[%s8 + $0x18] sm:$0xf]
        %v1396 = vld [vmem:[%s8 + $0x1c] sm:$0xf]
        %v1397 = vld [vmem:[%s8 + $0x20] sm:$0xf]
        %v1398 = vld [vmem:[%s8 + $0x24] sm:$0xf]
        %v1399 = vld [vmem:[%s8 + $0x28] sm:$0xf]
        %v1400 = vld [vmem:[%s8 + $0x2c] sm:$0xf]
        %v1401 = vld [vmem:[%s8 + $0x30] sm:$0xf]
        %v1402 = vld [vmem:[%s8 + $0x34] sm:$0xf]
        %v1403 = vld [vmem:[%s8 + $0x38] sm:$0xf]
        %v1404 = vld [vmem:[%s8 + $0x3c] sm:$0xf]
        %v1405 = vld [vmem:[%s9] sm:$0x1]
        %v1407 = vlaneseq
        %v1408 = vshrl.u32 %v1407, 7
        %v1409 = vsub.s32 0, %v1408
        %v1410 = vrot.slane %v1405, %v1409
        %v1428 = vunpack.c.l.b16 %v1389
        %v1429 = vunpack.c.l.b16 %v1390
        %v1430 = vunpack.c.l.b16 %v1391
        %v1431 = vunpack.c.l.b16 %v1392
        %v1432 = vunpack.c.l.b16 %v1393
        %v1433 = vunpack.c.l.b16 %v1394
        %v1434 = vunpack.c.l.b16 %v1395
        %v1435 = vunpack.c.l.b16 %v1396
        %v1436 = vunpack.c.l.b16 %v1397
        %v1437 = vunpack.c.l.b16 %v1398
        %v1438 = vunpack.c.l.b16 %v1399
        %v1439 = vunpack.c.l.b16 %v1400
        %v1440 = vunpack.c.l.b16 %v1401
        %v1441 = vunpack.c.l.b16 %v1402
        %v1442 = vunpack.c.l.b16 %v1403
        %v1443 = vunpack.c.l.b16 %v1404
        %v1444 = vpack.c.b16 %v1429, %v1428
        %v1445 = vpack.c.b16 %v1431, %v1430
        %v1446 = vpack.c.b16 %v1433, %v1432
        %v1447 = vpack.c.b16 %v1435, %v1434
        %v1448 = vpack.c.b16 %v1437, %v1436
        %v1449 = vpack.c.b16 %v1439, %v1438
        %v1450 = vpack.c.b16 %v1441, %v1440
        %v1451 = vpack.c.b16 %v1443, %v1442
        %1460 = vmatprep.subr.bf16.mxu0 0
        %1461 = vmatpush1.bf16.msra.mxu0 %v1451
        %1462 = vmatprep.subr.bf16.mxu0 0
        %1463 = vmatpush1.bf16.msra.mxu0 %v1450
        %1464 = vmatprep.subr.bf16.mxu0 0
        %1465 = vmatpush1.bf16.msra.mxu0 %v1449
        %1466 = vmatprep.subr.bf16.mxu0 0
        %1467 = vmatpush1.bf16.msra.mxu0 %v1448
        %1468 = vmatprep.subr.bf16.mxu0 0
        %1469 = vmatpush1.bf16.msra.mxu0 %v1447
        %1470 = vmatprep.subr.bf16.mxu0 0
        %1471 = vmatpush1.bf16.msra.mxu0 %v1446
        %1472 = vmatprep.subr.bf16.mxu0 0
        %1473 = vmatpush1.bf16.msra.mxu0 %v1445
        %1474 = vmatprep.subr.bf16.mxu0 0
        %1475 = vmatpush1.bf16.msra.mxu0 %v1444
        %1476 = vmatprep.subr.bf16.mxu0 0
        %1477 = vmatpush2.bf16.msra.mxu0 0
        %1478 = vmatprep.subr.bf16.mxu0 0
        %1479 = vmatpush2.bf16.msra.mxu0 0
        %1480 = vmatprep.subr.bf16.mxu0 0
        %1481 = vmatpush2.bf16.msra.mxu0 0
        %1482 = vmatprep.subr.bf16.mxu0 0
        %1483 = vmatpush2.bf16.msra.mxu0 0
        %1484 = vmatprep.subr.bf16.mxu0 0
        %1485 = vmatpush2.bf16.msra.mxu0 0
        %1486 = vmatprep.subr.bf16.mxu0 0
        %1487 = vmatpush2.bf16.msra.mxu0 0
        %1488 = vmatprep.subr.bf16.mxu0 0
        %1489 = vmatpush2.bf16.msra.mxu0 0
        %1490 = vmatprep.subr.bf16.mxu0 0
        %1491 = vmatpush2.bf16.msra.mxu0 0
        %1492 = vmatprep.mubr.bf16.mxu0 0
        %1493 = vmatmul.mubr.bf16.gmra.mxu0 %v1359
        %v1494 = vpop.f32.mrf.mxu0
        %v1495 = vadd.f32 %v1410, %v1494
        %v1496 = vpop.f32.mrf.mxu0
        %v1497 = vpop.f32.mrf.mxu0
        %v1498 = vadd.f32 %v1410, %v1497
        %v1499 = vpop.f32.mrf.mxu0
        %1500 = vmatprep.mubr.bf16.mxu0 0
        %1501 = vmatmul.mubr.bf16.gmra.mxu0 %v1363
        %v1502 = vpop.f32.mrf.mxu0
        %v1503 = vadd.f32 %v1410, %v1502
        %v1504 = vpop.f32.mrf.mxu0
        %v1505 = vpop.f32.mrf.mxu0
        %v1506 = vadd.f32 %v1410, %v1505
        %v1507 = vpop.f32.mrf.mxu0
        %1508 = vmatprep.mubr.bf16.mxu0 0
        %1509 = vmatmul.mubr.bf16.gmra.mxu0 %v1367
        %v1510 = vpop.f32.mrf.mxu0
        %v1511 = vadd.f32 %v1410, %v1510
        %v1512 = vpop.f32.mrf.mxu0
        %v1513 = vpop.f32.mrf.mxu0
        %v1514 = vadd.f32 %v1410, %v1513
        %v1515 = vpop.f32.mrf.mxu0
        %1516 = vmatprep.mubr.bf16.mxu0 0
        %1517 = vmatmul.mubr.bf16.gmra.mxu0 %v1371
        %v1518 = vpop.f32.mrf.mxu0
        %v1519 = vadd.f32 %v1410, %v1518
        %v1520 = vpop.f32.mrf.mxu0
        %v1521 = vpop.f32.mrf.mxu0
        %v1522 = vadd.f32 %v1410, %v1521
        %v1523 = vpop.f32.mrf.mxu0
        %1524 = vmatprep.mubr.bf16.mxu0 0
        %1525 = vmatmul.mubr.bf16.gmra.mxu0 %v1375
        %v1526 = vpop.f32.mrf.mxu0
        %v1527 = vadd.f32 %v1410, %v1526
        %v1528 = vpop.f32.mrf.mxu0
        %v1529 = vpop.f32.mrf.mxu0
        %v1530 = vadd.f32 %v1410, %v1529
        %v1531 = vpop.f32.mrf.mxu0
        %1532 = vmatprep.mubr.bf16.mxu0 0
        %1533 = vmatmul.mubr.bf16.gmra.mxu0 %v1379
        %v1534 = vpop.f32.mrf.mxu0
        %v1535 = vadd.f32 %v1410, %v1534
        %v1536 = vpop.f32.mrf.mxu0
        %v1537 = vpop.f32.mrf.mxu0
        %v1538 = vadd.f32 %v1410, %v1537
        %v1539 = vpop.f32.mrf.mxu0
        %1540 = vmatprep.mubr.bf16.mxu0 0
        %1541 = vmatmul.mubr.bf16.gmra.mxu0 %v1383
        %v1542 = vpop.f32.mrf.mxu0
        %v1543 = vadd.f32 %v1410, %v1542
        %v1544 = vpop.f32.mrf.mxu0
        %v1545 = vpop.f32.mrf.mxu0
        %v1546 = vadd.f32 %v1410, %v1545
        %v1547 = vpop.f32.mrf.mxu0
        %1548 = vmatprep.mubr.bf16.mxu0 0
        %1549 = vmatmul.mubr.bf16.gmra.mxu0 %v1387
        %v1550 = vpop.f32.mrf.mxu0
        %v1551 = vadd.f32 %v1410, %v1550
        %v1552 = vpop.f32.mrf.mxu0
        %v1553 = vpop.f32.mrf.mxu0
        %v1554 = vadd.f32 %v1410, %v1553
        %v1555 = vpop.f32.mrf.mxu0
        %1556 = vdwg.mxu0
        %v1557 = vxor.u32 %v1495, 2147483648
        %v1558 = vxor.u32 %v1498, 2147483648
        %v1559 = vxor.u32 %v1503, 2147483648
        %v1560 = vxor.u32 %v1506, 2147483648
        %v1561 = vxor.u32 %v1511, 2147483648
        %v1562 = vxor.u32 %v1514, 2147483648
        %v1563 = vxor.u32 %v1519, 2147483648
        %v1564 = vxor.u32 %v1522, 2147483648
        %v1565 = vxor.u32 %v1527, 2147483648
        %v1566 = vxor.u32 %v1530, 2147483648
        %v1567 = vxor.u32 %v1535, 2147483648
        %v1568 = vxor.u32 %v1538, 2147483648
        %v1569 = vxor.u32 %v1543, 2147483648
        %v1570 = vxor.u32 %v1546, 2147483648
        %v1571 = vxor.u32 %v1551, 2147483648
        %v1572 = vxor.u32 %v1554, 2147483648
        %v1573 = vmul.f32 %v1557, 1.442695
        %v1574 = vpow.pop %v1573
        %v1575 = vmul.f32 %v1558, 1.442695
        %v1576 = vpow.pop %v1575
        %v1577 = vmul.f32 %v1559, 1.442695
        %v1578 = vpow.pop %v1577
        %v1579 = vmul.f32 %v1560, 1.442695
        %v1580 = vpow.pop %v1579
        %v1581 = vmul.f32 %v1561, 1.442695
        %v1582 = vpow.pop %v1581
        %v1583 = vmul.f32 %v1562, 1.442695
        %v1584 = vpow.pop %v1583
        %v1585 = vmul.f32 %v1563, 1.442695
        %v1586 = vpow.pop %v1585
        %v1587 = vmul.f32 %v1564, 1.442695
        %v1588 = vpow.pop %v1587
        %v1589 = vmul.f32 %v1565, 1.442695
        %v1590 = vpow.pop %v1589
        %v1591 = vmul.f32 %v1566, 1.442695
        %v1592 = vpow.pop %v1591
        %v1593 = vmul.f32 %v1567, 1.442695
        %v1594 = vpow.pop %v1593
        %v1595 = vmul.f32 %v1568, 1.442695
        %v1596 = vpow.pop %v1595
        %v1597 = vmul.f32 %v1569, 1.442695
        %v1598 = vpow.pop %v1597
        %v1599 = vmul.f32 %v1570, 1.442695
        %v1600 = vpow.pop %v1599
        %v1601 = vmul.f32 %v1571, 1.442695
        %v1602 = vpow.pop %v1601
        %v1603 = vmul.f32 %v1572, 1.442695
        %v1604 = vpow.pop %v1603
        %v1605 = vadd.f32 %v1574, 1.0
        %v1606 = vadd.f32 %v1576, 1.0
        %v1607 = vadd.f32 %v1578, 1.0
        %v1608 = vadd.f32 %v1580, 1.0
        %v1609 = vadd.f32 %v1582, 1.0
        %v1610 = vadd.f32 %v1584, 1.0
        %v1611 = vadd.f32 %v1586, 1.0
        %v1612 = vadd.f32 %v1588, 1.0
        %v1613 = vadd.f32 %v1590, 1.0
        %v1614 = vadd.f32 %v1592, 1.0
        %v1615 = vadd.f32 %v1594, 1.0
        %v1616 = vadd.f32 %v1596, 1.0
        %v1617 = vadd.f32 %v1598, 1.0
        %v1618 = vadd.f32 %v1600, 1.0
        %v1619 = vadd.f32 %v1602, 1.0
        %v1620 = vadd.f32 %v1604, 1.0
        %v1621 = vrcp.pop %v1605
        %v1622 = vmul.f32 1.0, %v1621
        %v1623 = vrcp.pop %v1606
        %v1624 = vmul.f32 1.0, %v1623
        %v1625 = vrcp.pop %v1607
        %v1626 = vmul.f32 1.0, %v1625
        %v1627 = vrcp.pop %v1608
        %v1628 = vmul.f32 1.0, %v1627
        %v1629 = vrcp.pop %v1609
        %v1630 = vmul.f32 1.0, %v1629
        %v1631 = vrcp.pop %v1610
        %v1632 = vmul.f32 1.0, %v1631
        %v1633 = vrcp.pop %v1611
        %v1634 = vmul.f32 1.0, %v1633
        %v1635 = vrcp.pop %v1612
        %v1636 = vmul.f32 1.0, %v1635
        %v1637 = vrcp.pop %v1613
        %v1638 = vmul.f32 1.0, %v1637
        %v1639 = vrcp.pop %v1614
        %v1640 = vmul.f32 1.0, %v1639
        %v1641 = vrcp.pop %v1615
        %v1642 = vmul.f32 1.0, %v1641
        %v1643 = vrcp.pop %v1616
        %v1644 = vmul.f32 1.0, %v1643
        %v1645 = vrcp.pop %v1617
        %v1646 = vmul.f32 1.0, %v1645
        %v1647 = vrcp.pop %v1618
        %v1648 = vmul.f32 1.0, %v1647
        %v1649 = vrcp.pop %v1619
        %v1650 = vmul.f32 1.0, %v1649
        %v1651 = vrcp.pop %v1620
        %v1652 = vmul.f32 1.0, %v1651
        %v1653 = vmul.f32 %v1495, %v1622
        %v1654 = vmul.f32 %v1498, %v1624
        %v1655 = vmul.f32 %v1503, %v1626
        %v1656 = vmul.f32 %v1506, %v1628
        %v1657 = vmul.f32 %v1511, %v1630
        %v1658 = vmul.f32 %v1514, %v1632
        %v1659 = vmul.f32 %v1519, %v1634
        %v1660 = vmul.f32 %v1522, %v1636
        %v1661 = vmul.f32 %v1527, %v1638
        %v1662 = vmul.f32 %v1530, %v1640
        %v1663 = vmul.f32 %v1535, %v1642
        %v1664 = vmul.f32 %v1538, %v1644
        %v1665 = vmul.f32 %v1543, %v1646
        %v1666 = vmul.f32 %v1546, %v1648
        %v1667 = vmul.f32 %v1551, %v1650
        %v1668 = vmul.f32 %v1554, %v1652
        %1669 = vst [vmem:[%s369] sm:$0xff] %v1653
        %1670 = vst [vmem:[%s369 + $0x8] sm:$0xff] %v1654
        %1671 = vst [vmem:[%s369 + $0x10] sm:$0xff] %v1655
        %1672 = vst [vmem:[%s369 + $0x18] sm:$0xff] %v1656
        %1673 = vst [vmem:[%s369 + $0x20] sm:$0xff] %v1657
        %1674 = vst [vmem:[%s369 + $0x28] sm:$0xff] %v1658
        %1675 = vst [vmem:[%s369 + $0x30] sm:$0xff] %v1659
        %1676 = vst [vmem:[%s369 + $0x38] sm:$0xff] %v1660
        %1677 = vst [vmem:[%s369 + $0x40] sm:$0xff] %v1661
        %1678 = vst [vmem:[%s369 + $0x48] sm:$0xff] %v1662
        %1679 = vst [vmem:[%s369 + $0x50] sm:$0xff] %v1663
        %1680 = vst [vmem:[%s369 + $0x58] sm:$0xff] %v1664
        %1681 = vst [vmem:[%s369 + $0x60] sm:$0xff] %v1665
        %1682 = vst [vmem:[%s369 + $0x68] sm:$0xff] %v1666
        %1683 = vst [vmem:[%s369 + $0x70] sm:$0xff] %v1667
        %1684 = vst [vmem:[%s369 + $0x78] sm:$0xff] %v1668
        %s1685 = sand.u32 %s252, 1
        %s1686 = scalar_lea.sflag [#allocation3], %s1685
        %s1687 = sand.u32 %s252, 1
        %s1688 = smul.addr %s1687, 128
        %s1689 = scalar_lea.vmem [#allocation2], %s1688
        // Predicated region
        $region61: #{psa_forward.5} parent=59 // pred_check
          %p1690 = pneg %p262
        $region62: #{psa_forward.5} parent=59 // pred_check_branch
          %1692 = sbr.rel (%p1690) target = $region64
        $region63: #{psa_forward.5} parent=59 // pred_region
          %s1693 = smul.u32 16, %s24
          %s1695 = ssub.s32 2048, 2048
          %1696 = vsyncadd %s1686, %s1695
          %s1697 = smul.addr %s1693, 128
          %s1698 = scalar_lea.hbm %s10, %s1697
          %s1699 = sshll.u32 %s1689, 4
          %s1700 = int_to_ptr.vmem [resolvable:$true] %s1699
          %1705 = dma.vmem_to_hbm [thread:$0]  %s1700, 2048, %s1698, %s1686, 128, 128, 8
        $region64: #{psa_forward.5} parent=59 // pred_fallthru
          _
      $region60: #{psa_forward.5} parent=5 // pred_fallthru
        _
      %p1706 = scmp.le.s32.totalorder 2, %s19
      // Predicated region
      $region65: #{psa_forward.5} parent=5 // pred_check
        %p1707 = pneg %p1706
      $region66: #{psa_forward.5} parent=5 // pred_check_branch
        %1709 = sbr.rel (%p1707) target = $region68
      $region67: #{psa_forward.5} parent=5 // pred_region
        %s1710 = ssub.s32 %s19, 2
        // Predicated region
        $region69: #{psa_forward.5} parent=67 // pred_check
          %p1711 = pneg %p268
        $region70: #{psa_forward.5} parent=67 // pred_check_branch
          %1713 = sbr.rel (%p1711) target = $region72
        $region71: #{psa_forward.5} parent=67 // pred_region
          %s1714 = sand.u32 %s253, 1
          %s1715 = scalar_lea.sflag [#allocation3], %s1714
          %s1716 = sand.u32 %s253, 1
          %s1717 = smul.addr %s1716, 128
          %s1718 = scalar_lea.vmem [#allocation2], %s1717
          %1719 = dma.done %s1715, 2048
        $region72: #{psa_forward.5} parent=67 // pred_fallthru
          _
      $region68: #{psa_forward.5} parent=5 // pred_fallthru
        _
    $region6: #{psa_forward.5} parent=1 // loop_footer
      %s23 = sadd.s32 1, %s19
    $region7: #{psa_forward.5} parent=1 // loop_footer_branch
      %18 = sbr.rel target = $region3
    $region8: #{psa_forward.5} parent=1 // loop_exit
      _
    %1720 = vsyncpa [#allocation3], 1
    %s1721 = scalar_lea.sflag [#allocation3], 1
    %1722 = vsyncpa %s1721, 1

// kernel: psa_forward.4
$region0: #{psa_forward.4}
  #allocation0 [shape = 'u32[]', space=smem, size = 0x4, offset = 0x4, fixed_abs, tag = 'smem constant byte address 0x4 - core index']
  #allocation1 [shape = 'u32[144,128]{1,0:T(1,128)}', space=vmem, size = 0x12000, scoped, tag = 'internal scratch']
  #allocation2 [shape = 'f32[256,64]{1,0:T(8,128)}', space=vmem, size = 0x20000, scoped, tag = 'scratch operand']
  #allocation3 [shape = 'f32[18,18,64]{2,1,0:T(8,128)}', space=vmem, size = 0x36000, scoped, tag = 'scratch operand']
  %s0 = inlined_call_operand.vmem [shape: bf16[2,256,128], index: 0, kind: input, shape index: {}]
  %s1 = inlined_call_operand.vmem [shape: f32[1,9,64], index: 1, kind: input, shape index: {}]
  %s2 = inlined_call_operand.vmem [shape: f32[1,1,64], index: 2, kind: input, shape index: {}]
  %s3 = inlined_call_operand.vmem [shape: bf16[1,2,256,64], index: 3, kind: output, shape index: {}]
  %s4 = sld [smem:[#allocation0]]
  $region49: #{psa_forward.4} parent=0
    _
  %s6 = ssub.s32 1, %s4
  %s7 = scalar_select 0, %s6, %s4
  loop: start=0, step=1, limit=4
  $region2: #{psa_forward.4} parent=0 // loop_pre_header
    _
  $region3: #{psa_forward.4} parent=0 // loop_header
    %s9 = sphi 0, %s13
    %p10 = scmp.ge.s32.totalorder %s9, 4
    %s16 = sphi 0, %s35
    %s17 = sphi 0, %s31
    %s18 = sphi 0, %s27
    %s19 = sphi 0, %s16
    %s20 = sphi 0, %s17
    %s21 = sphi 0, %s18
    %s22 = sphi 0, %s19
    %s23 = sphi 0, %s20
    %s24 = sphi 0, %s21
    %s40 = sphi 0, %s42
    %s43 = sphi 0, %s40
    %s44 = sphi 0, %s43
    %s60 = sphi 0, %s44
    %s66 = sphi 0, %s68
    %s69 = sphi 0, %s66
    %s70 = sphi 0, %s69
    %s86 = sphi 0, %s70
    %s92 = sphi 0, %s94
    %s95 = sphi 0, %s92
    %s96 = sphi 0, %s95
    %s112 = sphi 0, %s96
    %s122 = sphi 0, %s124
    %s125 = sphi 0, %s122
    %s126 = sphi 0, %s125
    %s142 = sphi 0, %s126
  $region4: #{psa_forward.4} parent=0 // loop_header_branch
    %12 = sbr.rel (%p10) target = $region8
  $region5: #{psa_forward.4} parent=0 // loop_body
    %s14 = ssub.s32 %s9, 1
    %s15 = ssub.s32 %s9, 2
    %s25 = sadd.s32 1, %s18
    %p26 = scmp.ge.s32.totalorder %s25, 1
    %s27 = scalar_select %p26, 0, %s25
    %s28 = sadd.s32 1, %s17
    %s29 = scalar_select %p26, %s28, %s17
    %p30 = scmp.ge.s32.totalorder %s29, 2
    %s31 = scalar_select %p30, 0, %s29
    %s32 = sadd.s32 1, %s16
    %s33 = scalar_select %p30, %s32, %s16
    %p34 = scmp.ge.s32.totalorder %s33, 1
    %s35 = scalar_select %p34, 0, %s33
    %s36 = ssub.s32 %s17, %s31
    %s37 = ssub.s32 %s16, %s35
    %s38 = sor.u32 %s36, %s37
    %p39 = scmp.eq.s32.totalorder %s38, 0
    %s41 = sadd.s32 %s40, 1
    %s42 = scalar_select %p39, %s40, %s41
    %p45 = pneg %p39
    %p46 = scmp.eq.s32.totalorder %s9, 1
    %p47 = por %p45, %p46
    %p48 = scmp.ne.s32.totalorder %s40, %s43
    %p49 = scmp.eq.s32.totalorder %s9, 0
    %p50 = por %p48, %p49
    %p51 = scmp.ne.s32.totalorder %s40, %s43
    %p52 = scmp.eq.s32.totalorder %s14, 1
    %p53 = por %p51, %p52
    %p54 = scmp.ne.s32.totalorder %s43, %s44
    %p55 = scmp.eq.s32.totalorder %s14, 0
    %p56 = por %p54, %p55
    %p57 = scmp.ne.s32.totalorder %s43, %s44
    %p58 = scmp.eq.s32.totalorder %s15, 1
    %p59 = por %p57, %p58
    %p61 = scmp.ne.s32.totalorder %s44, %s60
    %p62 = scmp.eq.s32.totalorder %s15, 0
    %p63 = por %p61, %p62
    %s64 = ssub.s32 %s16, %s35
    %p65 = scmp.eq.s32.totalorder %s64, 0
    %s67 = sadd.s32 %s66, 1
    %s68 = scalar_select %p65, %s66, %s67
    %p71 = pneg %p65
    %p72 = scmp.eq.s32.totalorder %s9, 1
    %p73 = por %p71, %p72
    %p74 = scmp.ne.s32.totalorder %s66, %s69
    %p75 = scmp.eq.s32.totalorder %s9, 0
    %p76 = por %p74, %p75
    %p77 = scmp.ne.s32.totalorder %s66, %s69
    %p78 = scmp.eq.s32.totalorder %s14, 1
    %p79 = por %p77, %p78
    %p80 = scmp.ne.s32.totalorder %s69, %s70
    %p81 = scmp.eq.s32.totalorder %s14, 0
    %p82 = por %p80, %p81
    %p83 = scmp.ne.s32.totalorder %s69, %s70
    %p84 = scmp.eq.s32.totalorder %s15, 1
    %p85 = por %p83, %p84
    %p87 = scmp.ne.s32.totalorder %s70, %s86
    %p88 = scmp.eq.s32.totalorder %s15, 0
    %p89 = por %p87, %p88
    %s90 = ssub.s32 %s16, %s35
    %p91 = scmp.eq.s32.totalorder %s90, 0
    %s93 = sadd.s32 %s92, 1
    %s94 = scalar_select %p91, %s92, %s93
    %p97 = pneg %p91
    %p98 = scmp.eq.s32.totalorder %s9, 1
    %p99 = por %p97, %p98
    %p100 = scmp.ne.s32.totalorder %s92, %s95
    %p101 = scmp.eq.s32.totalorder %s9, 0
    %p102 = por %p100, %p101
    %p103 = scmp.ne.s32.totalorder %s92, %s95
    %p104 = scmp.eq.s32.totalorder %s14, 1
    %p105 = por %p103, %p104
    %p106 = scmp.ne.s32.totalorder %s95, %s96
    %p107 = scmp.eq.s32.totalorder %s14, 0
    %p108 = por %p106, %p107
    %p109 = scmp.ne.s32.totalorder %s95, %s96
    %p110 = scmp.eq.s32.totalorder %s15, 1
    %p111 = por %p109, %p110
    %p113 = scmp.ne.s32.totalorder %s96, %s112
    %p114 = scmp.eq.s32.totalorder %s15, 0
    %p115 = por %p113, %p114
    %s116 = ssub.s32 %s16, %s35
    %s117 = ssub.s32 %s17, %s31
    %s118 = sor.u32 %s116, %s117
    %s119 = ssub.s32 %s18, %s27
    %s120 = sor.u32 %s118, %s119
    %p121 = scmp.eq.s32.totalorder %s120, 0
    %s123 = sadd.s32 %s122, 1
    %s124 = scalar_select %p121, %s122, %s123
    %p127 = pneg %p121
    %p128 = scmp.eq.s32.totalorder %s9, 1
    %p129 = por %p127, %p128
    %p130 = scmp.ne.s32.totalorder %s122, %s125
    %p131 = scmp.eq.s32.totalorder %s9, 0
    %p132 = por %p130, %p131
    %p133 = scmp.ne.s32.totalorder %s122, %s125
    %p134 = scmp.eq.s32.totalorder %s14, 1
    %p135 = por %p133, %p134
    %p136 = scmp.ne.s32.totalorder %s125, %s126
    %p137 = scmp.eq.s32.totalorder %s14, 0
    %p138 = por %p136, %p137
    %p139 = scmp.ne.s32.totalorder %s125, %s126
    %p140 = scmp.eq.s32.totalorder %s15, 1
    %p141 = por %p139, %p140
    %p143 = scmp.ne.s32.totalorder %s126, %s142
    %p144 = scmp.eq.s32.totalorder %s15, 0
    %p145 = por %p143, %p144
    %p146 = scmp.le.s32.totalorder 1, %s9
    %p147 = scmp.lt.s32.totalorder %s9, 3
    %p148 = pnand %p146, %p147
    %p149 = pneg %p148
    // Predicated region
    $region9: #{psa_forward.4} parent=5 // pred_check
      _
    $region10: #{psa_forward.4} parent=5 // pred_check_branch
      %151 = sbr.rel (%p148) target = $region12
    $region11: #{psa_forward.4} parent=5 // pred_region
      %s152 = ssub.s32 %s9, 1
      // Predicated region
      $region13: #{psa_forward.4} parent=11 // pred_check
        %p153 = pneg %p82
      $region14: #{psa_forward.4} parent=11 // pred_check_branch
        %155 = sbr.rel (%p153) target = $region16
      $region15: #{psa_forward.4} parent=11 // pred_region
        %p156 = scmp.lt.s32.totalorder %s19, 0
        %s157 = scalar_select %p156, %s19, 0
        %s158 = smul.addr %s157, 2
        %s159 = smul.addr %s158, 8
        %s160 = scalar_lea.vmem %s1, %s159
      $region16: #{psa_forward.4} parent=11 // pred_fallthru
        _
      // Predicated region
      $region17: #{psa_forward.4} parent=11 // pred_check
        %p161 = pneg %p108
      $region18: #{psa_forward.4} parent=11 // pred_check_branch
        %163 = sbr.rel (%p161) target = $region20
      $region19: #{psa_forward.4} parent=11 // pred_region
        %p164 = scmp.lt.s32.totalorder %s19, 0
        %s165 = scalar_select %p164, %s19, 0
        %s166 = scalar_lea.vmem %s2, %s165
      $region20: #{psa_forward.4} parent=11 // pred_fallthru
        _
    $region12: #{psa_forward.4} parent=5 // pred_fallthru
      _
    %p167 = scmp.lt.s32.totalorder %s9, 2
    // Predicated region
    $region21: #{psa_forward.4} parent=5 // pred_check
      %p168 = pneg %p167
    $region22: #{psa_forward.4} parent=5 // pred_check_branch
      %170 = sbr.rel (%p168) target = $region24
    $region23: #{psa_forward.4} parent=5 // pred_region
      // Predicated region
      $region25: #{psa_forward.4} parent=23 // pred_check
        %p171 = pneg %p50
      $region26: #{psa_forward.4} parent=23 // pred_check_branch
        %173 = sbr.rel (%p171) target = $region28
      $region27: #{psa_forward.4} parent=23 // pred_region
        %p174 = scmp.lt.s32.totalorder %s17, 1
        %s175 = scalar_select %p174, %s17, 1
        %p176 = scmp.lt.s32.totalorder %s16, 0
        %s177 = scalar_select %p176, %s16, 0
        %s178 = smul.addr %s175, 32
        %s179 = sadd.s32 %s177, %s178
        %s180 = smul.addr %s179, 4
        %s181 = scalar_lea.vmem %s0, %s180
      $region28: #{psa_forward.4} parent=23 // pred_fallthru
        _
    $region24: #{psa_forward.4} parent=5 // pred_fallthru
      _
    %p182 = scmp.le.s32.totalorder 1, %s9
    %p183 = scmp.lt.s32.totalorder %s9, 3
    %p184 = pnand %p182, %p183
    %p185 = pneg %p184
    // Predicated region
    $region29: #{psa_forward.4} parent=5 // pred_check
      _
    $region30: #{psa_forward.4} parent=5 // pred_check_branch
      %187 = sbr.rel (%p184) target = $region32
    $region31: #{psa_forward.4} parent=5 // pred_region
      %s188 = ssub.s32 %s9, 1
      %p189 = scmp.lt.s32.totalorder %s20, 1
      %s190 = scalar_select %p189, %s20, 1
      %p191 = scmp.lt.s32.totalorder %s19, 0
      %s192 = scalar_select %p191, %s19, 0
      %s193 = smul.addr %s190, 32
      %s194 = sadd.s32 %s192, %s193
      %s195 = smul.addr %s194, 4
      %s196 = scalar_lea.vmem %s0, %s195
      %p197 = pneg %p56
      %p198 = pneg %p53
      %p199 = scmp.lt.s32.totalorder %s19, 0
      %s200 = scalar_select %p199, %s19, 0
      %s201 = smul.addr %s200, 2
      %s202 = smul.addr %s201, 8
      %s203 = scalar_lea.vmem %s1, %s202
      %p204 = pneg %p82
      %p205 = pneg %p79
      %p206 = scmp.lt.s32.totalorder %s19, 0
      %s207 = scalar_select %p206, %s19, 0
      %s208 = scalar_lea.vmem %s2, %s207
      %p209 = pneg %p108
      %p210 = pneg %p105
      %p211 = pneg %p138
      %p212 = pneg %p135
      %s213 = smul.u32 32, %s21
      %p214 = scmp.lt.s32.totalorder %s19, 0
      %s215 = scalar_select %p214, %s19, 0
      %p216 = scmp.lt.s32.totalorder %s20, 1
      %s217 = scalar_select %p216, %s20, 1
      %p218 = scmp.lt.s32.totalorder %s213, 31
      %s219 = scalar_select %p218, %s213, 31
      %s220 = smul.addr %s217, 32
      %s221 = sadd.s32 %s219, %s220
      %s222 = smul.addr %s215, 64
      %s223 = sadd.s32 %s221, %s222
      %s224 = smul.addr %s223, 4
      %s225 = scalar_lea.vmem %s3, %s224
      %p226 = scmp.lt.s32.totalorder %s20, 1
      %s227 = scalar_select %p226, %s20, 1
      %p228 = scmp.lt.s32.totalorder %s19, 0
      %s229 = scalar_select %p228, %s19, 0
      %s230 = smul.addr %s227, 32
      %s231 = sadd.s32 %s229, %s230
      %s232 = smul.addr %s231, 4
      %s233 = scalar_lea.vmem %s0, %s232
      %p234 = scmp.lt.s32.totalorder %s19, 0
      %s235 = scalar_select %p234, %s19, 0
      %s236 = smul.addr %s235, 2
      %s237 = smul.addr %s236, 8
      %s238 = scalar_lea.vmem %s1, %s237
      %p239 = scmp.lt.s32.totalorder %s19, 0
      %s240 = scalar_select %p239, %s19, 0
      %s241 = scalar_lea.vmem %s2, %s240
      %s242 = smul.u32 32, %s21
      %p243 = scmp.lt.s32.totalorder %s19, 0
      %s244 = scalar_select %p243, %s19, 0
      %p245 = scmp.lt.s32.totalorder %s20, 1
      %s246 = scalar_select %p245, %s20, 1
      %p247 = scmp.lt.s32.totalorder %s242, 31
      %s248 = scalar_select %p247, %s242, 31
      %s249 = smul.addr %s246, 32
      %s250 = sadd.s32 %s248, %s249
      %s251 = smul.addr %s244, 64
      %s252 = sadd.s32 %s250, %s251
      %s253 = smul.addr %s252, 4
      %s254 = scalar_lea.vmem %s3, %s253
      %s255 = smul.u32 32, %s21
      %v257 = vld [vmem:[%s233] sm:$0xf]
      %v258 = vld [vmem:[%s233 + $0x4] sm:$0xf]
      %v259 = vld [vmem:[%s233 + $0x8] sm:$0xf]
      %v260 = vld [vmem:[%s233 + $0xc] sm:$0xf]
      %v261 = vld [vmem:[%s233 + $0x10] sm:$0xf]
      %v262 = vld [vmem:[%s233 + $0x14] sm:$0xf]
      %v263 = vld [vmem:[%s233 + $0x18] sm:$0xf]
      %v264 = vld [vmem:[%s233 + $0x1c] sm:$0xf]
      %v265 = vld [vmem:[%s233 + $0x20] sm:$0xf]
      %v266 = vld [vmem:[%s233 + $0x24] sm:$0xf]
      %v267 = vld [vmem:[%s233 + $0x28] sm:$0xf]
      %v268 = vld [vmem:[%s233 + $0x2c] sm:$0xf]
      %v269 = vld [vmem:[%s233 + $0x30] sm:$0xf]
      %v270 = vld [vmem:[%s233 + $0x34] sm:$0xf]
      %v271 = vld [vmem:[%s233 + $0x38] sm:$0xf]
      %v272 = vld [vmem:[%s233 + $0x3c] sm:$0xf]
      %v273 = vld [vmem:[%s233 + $0x40] sm:$0xf]
      %v274 = vld [vmem:[%s233 + $0x44] sm:$0xf]
      %v275 = vld [vmem:[%s233 + $0x48] sm:$0xf]
      %v276 = vld [vmem:[%s233 + $0x4c] sm:$0xf]
      %v277 = vld [vmem:[%s233 + $0x50] sm:$0xf]
      %v278 = vld [vmem:[%s233 + $0x54] sm:$0xf]
      %v279 = vld [vmem:[%s233 + $0x58] sm:$0xf]
      %v280 = vld [vmem:[%s233 + $0x5c] sm:$0xf]
      %v281 = vld [vmem:[%s233 + $0x60] sm:$0xf]
      %v282 = vld [vmem:[%s233 + $0x64] sm:$0xf]
      %v283 = vld [vmem:[%s233 + $0x68] sm:$0xf]
      %v284 = vld [vmem:[%s233 + $0x6c] sm:$0xf]
      %v285 = vld [vmem:[%s233 + $0x70] sm:$0xf]
      %v286 = vld [vmem:[%s233 + $0x74] sm:$0xf]
      %v287 = vld [vmem:[%s233 + $0x78] sm:$0xf]
      %v288 = vld [vmem:[%s233 + $0x7c] sm:$0xf]
      %p289 = scmp.eq.s32.totalorder %s21, 0
      // Predicated region
      $region33: #{psa_forward.4} parent=31 // pred_check
        %p290 = pneg %p289
      $region34: #{psa_forward.4} parent=31 // pred_check_branch
        %292 = sbr.rel (%p290) target = $region36
      $region35: #{psa_forward.4} parent=31 // pred_region
        %vm293 = vcmask 523264
        %294 = vst.msk [vmem:[#allocation3] sm:$0xff] %vm293, 0.0
        %295 = vst.msk [vmem:[#allocation3 + $0x8] sm:$0xff] %vm293, 0.0
        %vm296 = vcmask 517120
        %297 = vst.msk [vmem:[#allocation3 + $0x10] sm:$0x3] %vm296, 0.0
        %298 = vst.msk [vmem:[#allocation3 + $0x18] sm:$0xff] %vm293, 0.0
        %299 = vst.msk [vmem:[#allocation3 + $0x20] sm:$0xff] %vm293, 0.0
        %300 = vst.msk [vmem:[#allocation3 + $0x28] sm:$0x3] %vm296, 0.0
        %301 = vst.msk [vmem:[#allocation3 + $0x30] sm:$0xff] %vm293, 0.0
        %302 = vst.msk [vmem:[#allocation3 + $0x38] sm:$0xff] %vm293, 0.0
        %303 = vst.msk [vmem:[#allocation3 + $0x40] sm:$0x3] %vm296, 0.0
        %304 = vst.msk [vmem:[#allocation3 + $0x48] sm:$0xff] %vm293, 0.0
        %305 = vst.msk [vmem:[#allocation3 + $0x50] sm:$0xff] %vm293, 0.0
        %306 = vst.msk [vmem:[#allocation3 + $0x58] sm:$0x3] %vm296, 0.0
        %307 = vst.msk [vmem:[#allocation3 + $0x60] sm:$0xff] %vm293, 0.0
        %308 = vst.msk [vmem:[#allocation3 + $0x68] sm:$0xff] %vm293, 0.0
        %309 = vst.msk [vmem:[#allocation3 + $0x70] sm:$0x3] %vm296, 0.0
        %310 = vst.msk [vmem:[#allocation3 + $0x78] sm:$0xff] %vm293, 0.0
        %311 = vst.msk [vmem:[#allocation3 + $0x80] sm:$0xff] %vm293, 0.0
        %312 = vst.msk [vmem:[#allocation3 + $0x88] sm:$0x3] %vm296, 0.0
        %313 = vst.msk [vmem:[#allocation3 + $0x90] sm:$0xff] %vm293, 0.0
        %314 = vst.msk [vmem:[#allocation3 + $0x98] sm:$0xff] %vm293, 0.0
        %315 = vst.msk [vmem:[#allocation3 + $0xa0] sm:$0x3] %vm296, 0.0
        %316 = vst.msk [vmem:[#allocation3 + $0xa8] sm:$0xff] %vm293, 0.0
        %317 = vst.msk [vmem:[#allocation3 + $0xb0] sm:$0xff] %vm293, 0.0
        %318 = vst.msk [vmem:[#allocation3 + $0xb8] sm:$0x3] %vm296, 0.0
        %319 = vst.msk [vmem:[#allocation3 + $0xc0] sm:$0xff] %vm293, 0.0
        %320 = vst.msk [vmem:[#allocation3 + $0xc8] sm:$0xff] %vm293, 0.0
        %321 = vst.msk [vmem:[#allocation3 + $0xd0] sm:$0x3] %vm296, 0.0
        %322 = vst.msk [vmem:[#allocation3 + $0xd8] sm:$0xff] %vm293, 0.0
        %323 = vst.msk [vmem:[#allocation3 + $0xe0] sm:$0xff] %vm293, 0.0
        %324 = vst.msk [vmem:[#allocation3 + $0xe8] sm:$0x3] %vm296, 0.0
        %325 = vst.msk [vmem:[#allocation3 + $0xf0] sm:$0xff] %vm293, 0.0
        %326 = vst.msk [vmem:[#allocation3 + $0xf8] sm:$0xff] %vm293, 0.0
        %327 = vst.msk [vmem:[#allocation3 + $0x100] sm:$0x3] %vm296, 0.0
        %328 = vst.msk [vmem:[#allocation3 + $0x108] sm:$0xff] %vm293, 0.0
        %329 = vst.msk [vmem:[#allocation3 + $0x110] sm:$0xff] %vm293, 0.0
        %330 = vst.msk [vmem:[#allocation3 + $0x118] sm:$0x3] %vm296, 0.0
        %331 = vst.msk [vmem:[#allocation3 + $0x120] sm:$0xff] %vm293, 0.0
        %332 = vst.msk [vmem:[#allocation3 + $0x128] sm:$0xff] %vm293, 0.0
        %333 = vst.msk [vmem:[#allocation3 + $0x130] sm:$0x3] %vm296, 0.0
        %334 = vst.msk [vmem:[#allocation3 + $0x138] sm:$0xff] %vm293, 0.0
        %335 = vst.msk [vmem:[#allocation3 + $0x140] sm:$0xff] %vm293, 0.0
        %336 = vst.msk [vmem:[#allocation3 + $0x148] sm:$0x3] %vm296, 0.0
        %337 = vst.msk [vmem:[#allocation3 + $0x150] sm:$0xff] %vm293, 0.0
        %338 = vst.msk [vmem:[#allocation3 + $0x158] sm:$0xff] %vm293, 0.0
        %339 = vst.msk [vmem:[#allocation3 + $0x160] sm:$0x3] %vm296, 0.0
        %340 = vst.msk [vmem:[#allocation3 + $0x168] sm:$0xff] %vm293, 0.0
        %341 = vst.msk [vmem:[#allocation3 + $0x170] sm:$0xff] %vm293, 0.0
        %342 = vst.msk [vmem:[#allocation3 + $0x178] sm:$0x3] %vm296, 0.0
        %343 = vst.msk [vmem:[#allocation3 + $0x180] sm:$0xff] %vm293, 0.0
        %344 = vst.msk [vmem:[#allocation3 + $0x188] sm:$0xff] %vm293, 0.0
        %345 = vst.msk [vmem:[#allocation3 + $0x190] sm:$0x3] %vm296, 0.0
        %346 = vst.msk [vmem:[#allocation3 + $0x198] sm:$0xff] %vm293, 0.0
        %347 = vst.msk [vmem:[#allocation3 + $0x1a0] sm:$0xff] %vm293, 0.0
        %348 = vst.msk [vmem:[#allocation3 + $0x1a8] sm:$0x3] %vm296, 0.0
        %v349 = vunpack.c.l.bf16 %v257
        %v350 = vunpack.c.l.bf16 %v258
        %v351 = vunpack.c.l.bf16 %v259
        %v352 = vunpack.c.l.bf16 %v260
        %v353 = vunpack.c.l.bf16 %v261
        %v354 = vunpack.c.l.bf16 %v262
        %v355 = vunpack.c.l.bf16 %v263
        %v356 = vunpack.c.l.bf16 %v264
        %v357 = vunpack.c.l.bf16 %v265
        %v358 = vunpack.c.l.bf16 %v266
        %v359 = vunpack.c.l.bf16 %v267
        %v360 = vunpack.c.l.bf16 %v268
        %v361 = vunpack.c.l.bf16 %v269
        %v362 = vunpack.c.l.bf16 %v270
        %v363 = vunpack.c.l.bf16 %v271
        %v364 = vunpack.c.l.bf16 %v272
        %v365 = vunpack.c.l.bf16 %v273
        %v366 = vunpack.c.l.bf16 %v274
        %v367 = vunpack.c.l.bf16 %v275
        %v368 = vunpack.c.l.bf16 %v276
        %v369 = vunpack.c.l.bf16 %v277
        %v370 = vunpack.c.l.bf16 %v278
        %v371 = vunpack.c.l.bf16 %v279
        %v372 = vunpack.c.l.bf16 %v280
        %v373 = vunpack.c.l.bf16 %v281
        %v374 = vunpack.c.l.bf16 %v282
        %v375 = vunpack.c.l.bf16 %v283
        %v376 = vunpack.c.l.bf16 %v284
        %v377 = vunpack.c.l.bf16 %v285
        %v378 = vunpack.c.l.bf16 %v286
        %v379 = vunpack.c.l.bf16 %v287
        %v380 = vunpack.c.l.bf16 %v288
        %413 = vrot.lane.b32.xlu0 %v349, 64
        %v414 = vpop.permute.xlu0 %413
        %415 = vrot.lane.b32.xlu0 %v350, 64
        %v416 = vpop.permute.xlu0 %415
        %417 = vrot.lane.b32.xlu0 %v351, 64
        %v418 = vpop.permute.xlu0 %417
        %419 = vrot.lane.b32.xlu0 %v352, 64
        %v420 = vpop.permute.xlu0 %419
        %421 = vrot.lane.b32.xlu0 %v353, 64
        %v422 = vpop.permute.xlu0 %421
        %423 = vrot.lane.b32.xlu0 %v354, 64
        %v424 = vpop.permute.xlu0 %423
        %425 = vrot.lane.b32.xlu0 %v355, 64
        %v426 = vpop.permute.xlu0 %425
        %427 = vrot.lane.b32.xlu0 %v356, 64
        %v428 = vpop.permute.xlu0 %427
        %429 = vrot.lane.b32.xlu0 %v357, 64
        %v430 = vpop.permute.xlu0 %429
        %431 = vrot.lane.b32.xlu0 %v358, 64
        %v432 = vpop.permute.xlu0 %431
        %433 = vrot.lane.b32.xlu0 %v359, 64
        %v434 = vpop.permute.xlu0 %433
        %435 = vrot.lane.b32.xlu0 %v360, 64
        %v436 = vpop.permute.xlu0 %435
        %437 = vrot.lane.b32.xlu0 %v361, 64
        %v438 = vpop.permute.xlu0 %437
        %439 = vrot.lane.b32.xlu0 %v362, 64
        %v440 = vpop.permute.xlu0 %439
        %441 = vrot.lane.b32.xlu0 %v363, 64
        %v442 = vpop.permute.xlu0 %441
        %443 = vrot.lane.b32.xlu0 %v364, 64
        %v444 = vpop.permute.xlu0 %443
        %445 = vrot.lane.b32.xlu0 %v365, 64
        %v446 = vpop.permute.xlu0 %445
        %447 = vrot.lane.b32.xlu0 %v366, 64
        %v448 = vpop.permute.xlu0 %447
        %449 = vrot.lane.b32.xlu0 %v367, 64
        %v450 = vpop.permute.xlu0 %449
        %451 = vrot.lane.b32.xlu0 %v368, 64
        %v452 = vpop.permute.xlu0 %451
        %453 = vrot.lane.b32.xlu0 %v369, 64
        %v454 = vpop.permute.xlu0 %453
        %455 = vrot.lane.b32.xlu0 %v370, 64
        %v456 = vpop.permute.xlu0 %455
        %457 = vrot.lane.b32.xlu0 %v371, 64
        %v458 = vpop.permute.xlu0 %457
        %459 = vrot.lane.b32.xlu0 %v372, 64
        %v460 = vpop.permute.xlu0 %459
        %461 = vrot.lane.b32.xlu0 %v373, 64
        %v462 = vpop.permute.xlu0 %461
        %463 = vrot.lane.b32.xlu0 %v374, 64
        %v464 = vpop.permute.xlu0 %463
        %465 = vrot.lane.b32.xlu0 %v375, 64
        %v466 = vpop.permute.xlu0 %465
        %467 = vrot.lane.b32.xlu0 %v376, 64
        %v468 = vpop.permute.xlu0 %467
        %469 = vrot.lane.b32.xlu0 %v377, 64
        %v470 = vpop.permute.xlu0 %469
        %471 = vrot.lane.b32.xlu0 %v378, 64
        %v472 = vpop.permute.xlu0 %471
        %473 = vrot.lane.b32.xlu0 %v379, 64
        %v474 = vpop.permute.xlu0 %473
        %475 = vrot.lane.b32.xlu0 %v380, 64
        %v476 = vpop.permute.xlu0 %475
        %s509 = scalar_lea.vmem [#allocation3], 24
        %510 = vst.msk [vmem:[%s509 + $0x1] sm:$0xff] %vm293, %v414
        %511 = vst.msk [vmem:[%s509 + $0x9] sm:$0xff] %vm293, %v416
        %512 = vst.msk [vmem:[%s509 + $0x19] sm:$0xff] %vm293, %v418
        %513 = vst.msk [vmem:[%s509 + $0x21] sm:$0xff] %vm293, %v420
        %514 = vst.msk [vmem:[%s509 + $0x31] sm:$0xff] %vm293, %v422
        %515 = vst.msk [vmem:[%s509 + $0x39] sm:$0xff] %vm293, %v424
        %516 = vst.msk [vmem:[%s509 + $0x49] sm:$0xff] %vm293, %v426
        %517 = vst.msk [vmem:[%s509 + $0x51] sm:$0xff] %vm293, %v428
        %518 = vst.msk [vmem:[%s509 + $0x61] sm:$0xff] %vm293, %v430
        %519 = vst.msk [vmem:[%s509 + $0x69] sm:$0xff] %vm293, %v432
        %520 = vst.msk [vmem:[%s509 + $0x79] sm:$0xff] %vm293, %v434
        %521 = vst.msk [vmem:[%s509 + $0x81] sm:$0xff] %vm293, %v436
        %522 = vst.msk [vmem:[%s509 + $0x91] sm:$0xff] %vm293, %v438
        %523 = vst.msk [vmem:[%s509 + $0x99] sm:$0xff] %vm293, %v440
        %524 = vst.msk [vmem:[%s509 + $0xa9] sm:$0xff] %vm293, %v442
        %525 = vst.msk [vmem:[%s509 + $0xb1] sm:$0xff] %vm293, %v444
        %526 = vst.msk [vmem:[%s509 + $0xc1] sm:$0xff] %vm293, %v446
        %527 = vst.msk [vmem:[%s509 + $0xc9] sm:$0xff] %vm293, %v448
        %528 = vst.msk [vmem:[%s509 + $0xd9] sm:$0xff] %vm293, %v450
        %529 = vst.msk [vmem:[%s509 + $0xe1] sm:$0xff] %vm293, %v452
        %530 = vst.msk [vmem:[%s509 + $0xf1] sm:$0xff] %vm293, %v454
        %531 = vst.msk [vmem:[%s509 + $0xf9] sm:$0xff] %vm293, %v456
        %532 = vst.msk [vmem:[%s509 + $0x109] sm:$0xff] %vm293, %v458
        %533 = vst.msk [vmem:[%s509 + $0x111] sm:$0xff] %vm293, %v460
        %534 = vst.msk [vmem:[%s509 + $0x121] sm:$0xff] %vm293, %v462
        %535 = vst.msk [vmem:[%s509 + $0x129] sm:$0xff] %vm293, %v464
        %536 = vst.msk [vmem:[%s509 + $0x139] sm:$0xff] %vm293, %v466
        %537 = vst.msk [vmem:[%s509 + $0x141] sm:$0xff] %vm293, %v468
        %538 = vst.msk [vmem:[%s509 + $0x151] sm:$0xff] %vm293, %v470
        %539 = vst.msk [vmem:[%s509 + $0x159] sm:$0xff] %vm293, %v472
        %540 = vst.msk [vmem:[%s509 + $0x169] sm:$0xff] %vm293, %v474
        %541 = vst.msk [vmem:[%s509 + $0x171] sm:$0xff] %vm293, %v476
        %v542 = vld [vmem:[%s238] sm:$0xff]
        %v543 = vld [vmem:[%s238 + $0x8] sm:$0x1]
        %v544 = vld [vmem:[%s241] sm:$0x1]
        %v546 = vlaneseq
        %v547 = vshrl.u32 %v546, 7
        %v548 = vsub.s32 0, %v547
        %v549 = vrot.slane %v544, %v548
        %v551 = vadd.f32 %v549, 0.0
        %v552 = vld [vmem:[#allocation3] sm:$0xff]
        %v553 = vld [vmem:[#allocation3 + $0x8] sm:$0xff]
        %v554 = vld [vmem:[#allocation3 + $0x18] sm:$0xff]
        %v555 = vld [vmem:[#allocation3 + $0x20] sm:$0xff]
        %v556 = vld [vmem:[#allocation3 + $0x30] sm:$0xff]
        %v557 = vld [vmem:[#allocation3 + $0x38] sm:$0xff]
        %v558 = vld [vmem:[#allocation3 + $0x48] sm:$0xff]
        %v559 = vld [vmem:[#allocation3 + $0x50] sm:$0xff]
        %v560 = vld [vmem:[#allocation3 + $0x60] sm:$0xff]
        %v561 = vld [vmem:[#allocation3 + $0x68] sm:$0xff]
        %v562 = vld [vmem:[#allocation3 + $0x78] sm:$0xff]
        %v563 = vld [vmem:[#allocation3 + $0x80] sm:$0xff]
        %v564 = vld [vmem:[#allocation3 + $0x90] sm:$0xff]
        %v565 = vld [vmem:[#allocation3 + $0x98] sm:$0xff]
        %v566 = vld [vmem:[#allocation3 + $0xa8] sm:$0xff]
        %v567 = vld [vmem:[#allocation3 + $0xb0] sm:$0xff]
        %v568 = vld [vmem:[#allocation3 + $0xc0] sm:$0xff]
        %v569 = vld [vmem:[#allocation3 + $0xc8] sm:$0xff]
        %v570 = vld [vmem:[#allocation3 + $0xd8] sm:$0xff]
        %v571 = vld [vmem:[#allocation3 + $0xe0] sm:$0xff]
        %v572 = vld [vmem:[#allocation3 + $0xf0] sm:$0xff]
        %v573 = vld [vmem:[#allocation3 + $0xf8] sm:$0xff]
        %v574 = vld [vmem:[#allocation3 + $0x108] sm:$0xff]
        %v575 = vld [vmem:[#allocation3 + $0x110] sm:$0xff]
        %v576 = vld [vmem:[#allocation3 + $0x120] sm:$0xff]
        %v577 = vld [vmem:[#allocation3 + $0x128] sm:$0xff]
        %v578 = vld [vmem:[#allocation3 + $0x138] sm:$0xff]
        %v579 = vld [vmem:[#allocation3 + $0x140] sm:$0xff]
        %v580 = vld [vmem:[#allocation3 + $0x150] sm:$0xff]
        %v581 = vld [vmem:[#allocation3 + $0x158] sm:$0xff]
        %v582 = vld [vmem:[#allocation3 + $0x168] sm:$0xff]
        %v583 = vld [vmem:[#allocation3 + $0x170] sm:$0xff]
        %v584 = vlaneseq
        %v585 = vshrl.u32 %v584, 7
        %v586 = vsub.s32 0, %v585
        %v587 = vrot.slane %v542, %v586
        %v588 = vmul.f32 %v552, %v587
        %v589 = vmul.f32 %v553, %v587
        %v590 = vmul.f32 %v554, %v587
        %v591 = vmul.f32 %v555, %v587
        %v592 = vmul.f32 %v556, %v587
        %v593 = vmul.f32 %v557, %v587
        %v594 = vmul.f32 %v558, %v587
        %v595 = vmul.f32 %v559, %v587
        %v596 = vmul.f32 %v560, %v587
        %v597 = vmul.f32 %v561, %v587
        %v598 = vmul.f32 %v562, %v587
        %v599 = vmul.f32 %v563, %v587
        %v600 = vmul.f32 %v564, %v587
        %v601 = vmul.f32 %v565, %v587
        %v602 = vmul.f32 %v566, %v587
        %v603 = vmul.f32 %v567, %v587
        %v604 = vmul.f32 %v568, %v587
        %v605 = vmul.f32 %v569, %v587
        %v606 = vmul.f32 %v570, %v587
        %v607 = vmul.f32 %v571, %v587
        %v608 = vmul.f32 %v572, %v587
        %v609 = vmul.f32 %v573, %v587
        %v610 = vmul.f32 %v574, %v587
        %v611 = vmul.f32 %v575, %v587
        %v612 = vmul.f32 %v576, %v587
        %v613 = vmul.f32 %v577, %v587
        %v614 = vmul.f32 %v578, %v587
        %v615 = vmul.f32 %v579, %v587
        %v616 = vmul.f32 %v580, %v587
        %v617 = vmul.f32 %v581, %v587
        %v618 = vmul.f32 %v582, %v587
        %v619 = vmul.f32 %v583, %v587
        %v620 = vadd.f32 %v551, %v588
        %v621 = vadd.f32 %v551, %v589
        %v622 = vadd.f32 %v551, %v590
        %v623 = vadd.f32 %v551, %v591
        %v624 = vadd.f32 %v551, %v592
        %v625 = vadd.f32 %v551, %v593
        %v626 = vadd.f32 %v551, %v594
        %v627 = vadd.f32 %v551, %v595
        %v628 = vadd.f32 %v551, %v596
        %v629 = vadd.f32 %v551, %v597
        %v630 = vadd.f32 %v551, %v598
        %v631 = vadd.f32 %v551, %v599
        %v632 = vadd.f32 %v551, %v600
        %v633 = vadd.f32 %v551, %v601
        %v634 = vadd.f32 %v551, %v602
        %v635 = vadd.f32 %v551, %v603
        %v636 = vadd.f32 %v551, %v604
        %v637 = vadd.f32 %v551, %v605
        %v638 = vadd.f32 %v551, %v606
        %v639 = vadd.f32 %v551, %v607
        %v640 = vadd.f32 %v551, %v608
        %v641 = vadd.f32 %v551, %v609
        %v642 = vadd.f32 %v551, %v610
        %v643 = vadd.f32 %v551, %v611
        %v644 = vadd.f32 %v551, %v612
        %v645 = vadd.f32 %v551, %v613
        %v646 = vadd.f32 %v551, %v614
        %v647 = vadd.f32 %v551, %v615
        %v648 = vadd.f32 %v551, %v616
        %v649 = vadd.f32 %v551, %v617
        %v650 = vadd.f32 %v551, %v618
        %v651 = vadd.f32 %v551, %v619
        %v652 = vld [vmem:[#allocation3 + $0x1] sm:$0xff]
        %v653 = vld [vmem:[#allocation3 + $0x9] sm:$0xff]
        %v654 = vld [vmem:[#allocation3 + $0x19] sm:$0xff]
        %v655 = vld [vmem:[#allocation3 + $0x21] sm:$0xff]
        %v656 = vld [vmem:[#allocation3 + $0x31] sm:$0xff]
        %v657 = vld [vmem:[#allocation3 + $0x39] sm:$0xff]
        %v658 = vld [vmem:[#allocation3 + $0x49] sm:$0xff]
        %v659 = vld [vmem:[#allocation3 + $0x51] sm:$0xff]
        %v660 = vld [vmem:[#allocation3 + $0x61] sm:$0xff]
        %v661 = vld [vmem:[#allocation3 + $0x69] sm:$0xff]
        %v662 = vld [vmem:[#allocation3 + $0x79] sm:$0xff]
        %v663 = vld [vmem:[#allocation3 + $0x81] sm:$0xff]
        %v664 = vld [vmem:[#allocation3 + $0x91] sm:$0xff]
        %v665 = vld [vmem:[#allocation3 + $0x99] sm:$0xff]
        %v666 = vld [vmem:[#allocation3 + $0xa9] sm:$0xff]
        %v667 = vld [vmem:[#allocation3 + $0xb1] sm:$0xff]
        %v668 = vld [vmem:[#allocation3 + $0xc1] sm:$0xff]
        %v669 = vld [vmem:[#allocation3 + $0xc9] sm:$0xff]
        %v670 = vld [vmem:[#allocation3 + $0xd9] sm:$0xff]
        %v671 = vld [vmem:[#allocation3 + $0xe1] sm:$0xff]
        %v672 = vld [vmem:[#allocation3 + $0xf1] sm:$0xff]
        %v673 = vld [vmem:[#allocation3 + $0xf9] sm:$0xff]
        %v674 = vld [vmem:[#allocation3 + $0x109] sm:$0xff]
        %v675 = vld [vmem:[#allocation3 + $0x111] sm:$0xff]
        %v676 = vld [vmem:[#allocation3 + $0x121] sm:$0xff]
        %v677 = vld [vmem:[#allocation3 + $0x129] sm:$0xff]
        %v678 = vld [vmem:[#allocation3 + $0x139] sm:$0xff]
        %v679 = vld [vmem:[#allocation3 + $0x141] sm:$0xff]
        %v680 = vld [vmem:[#allocation3 + $0x151] sm:$0xff]
        %v681 = vld [vmem:[#allocation3 + $0x159] sm:$0xff]
        %v682 = vld [vmem:[#allocation3 + $0x169] sm:$0xff]
        %v683 = vld [vmem:[#allocation3 + $0x171] sm:$0xff]
        %v684 = vlaneseq
        %v685 = vshrl.u32 %v684, 7
        %v686 = vsub.s32 1, %v685
        %v687 = vrot.slane %v542, %v686
        %v688 = vmul.f32 %v652, %v687
        %v689 = vmul.f32 %v653, %v687
        %v690 = vmul.f32 %v654, %v687
        %v691 = vmul.f32 %v655, %v687
        %v692 = vmul.f32 %v656, %v687
        %v693 = vmul.f32 %v657, %v687
        %v694 = vmul.f32 %v658, %v687
        %v695 = vmul.f32 %v659, %v687
        %v696 = vmul.f32 %v660, %v687
        %v697 = vmul.f32 %v661, %v687
        %v698 = vmul.f32 %v662, %v687
        %v699 = vmul.f32 %v663, %v687
        %v700 = vmul.f32 %v664, %v687
        %v701 = vmul.f32 %v665, %v687
        %v702 = vmul.f32 %v666, %v687
        %v703 = vmul.f32 %v667, %v687
        %v704 = vmul.f32 %v668, %v687
        %v705 = vmul.f32 %v669, %v687
        %v706 = vmul.f32 %v670, %v687
        %v707 = vmul.f32 %v671, %v687
        %v708 = vmul.f32 %v672, %v687
        %v709 = vmul.f32 %v673, %v687
        %v710 = vmul.f32 %v674, %v687
        %v711 = vmul.f32 %v675, %v687
        %v712 = vmul.f32 %v676, %v687
        %v713 = vmul.f32 %v677, %v687
        %v714 = vmul.f32 %v678, %v687
        %v715 = vmul.f32 %v679, %v687
        %v716 = vmul.f32 %v680, %v687
        %v717 = vmul.f32 %v681, %v687
        %v718 = vmul.f32 %v682, %v687
        %v719 = vmul.f32 %v683, %v687
        %v720 = vadd.f32 %v620, %v688
        %v721 = vadd.f32 %v621, %v689
        %v722 = vadd.f32 %v622, %v690
        %v723 = vadd.f32 %v623, %v691
        %v724 = vadd.f32 %v624, %v692
        %v725 = vadd.f32 %v625, %v693
        %v726 = vadd.f32 %v626, %v694
        %v727 = vadd.f32 %v627, %v695
        %v728 = vadd.f32 %v628, %v696
        %v729 = vadd.f32 %v629, %v697
        %v730 = vadd.f32 %v630, %v698
        %v731 = vadd.f32 %v631, %v699
        %v732 = vadd.f32 %v632, %v700
        %v733 = vadd.f32 %v633, %v701
        %v734 = vadd.f32 %v634, %v702
        %v735 = vadd.f32 %v635, %v703
        %v736 = vadd.f32 %v636, %v704
        %v737 = vadd.f32 %v637, %v705
        %v738 = vadd.f32 %v638, %v706
        %v739 = vadd.f32 %v639, %v707
        %v740 = vadd.f32 %v640, %v708
        %v741 = vadd.f32 %v641, %v709
        %v742 = vadd.f32 %v642, %v710
        %v743 = vadd.f32 %v643, %v711
        %v744 = vadd.f32 %v644, %v712
        %v745 = vadd.f32 %v645, %v713
        %v746 = vadd.f32 %v646, %v714
        %v747 = vadd.f32 %v647, %v715
        %v748 = vadd.f32 %v648, %v716
        %v749 = vadd.f32 %v649, %v717
        %v750 = vadd.f32 %v650, %v718
        %v751 = vadd.f32 %v651, %v719
        %v752 = vld [vmem:[#allocation3 + $0x2] sm:$0xff]
        %v753 = vld [vmem:[#allocation3 + $0xa] sm:$0xff]
        %v754 = vld [vmem:[#allocation3 + $0x1a] sm:$0xff]
        %v755 = vld [vmem:[#allocation3 + $0x22] sm:$0xff]
        %v756 = vld [vmem:[#allocation3 + $0x32] sm:$0xff]
        %v757 = vld [vmem:[#allocation3 + $0x3a] sm:$0xff]
        %v758 = vld [vmem:[#allocation3 + $0x4a] sm:$0xff]
        %v759 = vld [vmem:[#allocation3 + $0x52] sm:$0xff]
        %v760 = vld [vmem:[#allocation3 + $0x62] sm:$0xff]
        %v761 = vld [vmem:[#allocation3 + $0x6a] sm:$0xff]
        %v762 = vld [vmem:[#allocation3 + $0x7a] sm:$0xff]
        %v763 = vld [vmem:[#allocation3 + $0x82] sm:$0xff]
        %v764 = vld [vmem:[#allocation3 + $0x92] sm:$0xff]
        %v765 = vld [vmem:[#allocation3 + $0x9a] sm:$0xff]
        %v766 = vld [vmem:[#allocation3 + $0xaa] sm:$0xff]
        %v767 = vld [vmem:[#allocation3 + $0xb2] sm:$0xff]
        %v768 = vld [vmem:[#allocation3 + $0xc2] sm:$0xff]
        %v769 = vld [vmem:[#allocation3 + $0xca] sm:$0xff]
        %v770 = vld [vmem:[#allocation3 + $0xda] sm:$0xff]
        %v771 = vld [vmem:[#allocation3 + $0xe2] sm:$0xff]
        %v772 = vld [vmem:[#allocation3 + $0xf2] sm:$0xff]
        %v773 = vld [vmem:[#allocation3 + $0xfa] sm:$0xff]
        %v774 = vld [vmem:[#allocation3 + $0x10a] sm:$0xff]
        %v775 = vld [vmem:[#allocation3 + $0x112] sm:$0xff]
        %v776 = vld [vmem:[#allocation3 + $0x122] sm:$0xff]
        %v777 = vld [vmem:[#allocation3 + $0x12a] sm:$0xff]
        %v778 = vld [vmem:[#allocation3 + $0x13a] sm:$0xff]
        %v779 = vld [vmem:[#allocation3 + $0x142] sm:$0xff]
        %v780 = vld [vmem:[#allocation3 + $0x152] sm:$0xff]
        %v781 = vld [vmem:[#allocation3 + $0x15a] sm:$0xff]
        %v782 = vld [vmem:[#allocation3 + $0x16a] sm:$0xff]
        %v783 = vld [vmem:[#allocation3 + $0x172] sm:$0xff]
        %v784 = vlaneseq
        %v785 = vshrl.u32 %v784, 7
        %v786 = vsub.s32 2, %v785
        %v787 = vrot.slane %v542, %v786
        %v788 = vmul.f32 %v752, %v787
        %v789 = vmul.f32 %v753, %v787
        %v790 = vmul.f32 %v754, %v787
        %v791 = vmul.f32 %v755, %v787
        %v792 = vmul.f32 %v756, %v787
        %v793 = vmul.f32 %v757, %v787
        %v794 = vmul.f32 %v758, %v787
        %v795 = vmul.f32 %v759, %v787
        %v796 = vmul.f32 %v760, %v787
        %v797 = vmul.f32 %v761, %v787
        %v798 = vmul.f32 %v762, %v787
        %v799 = vmul.f32 %v763, %v787
        %v800 = vmul.f32 %v764, %v787
        %v801 = vmul.f32 %v765, %v787
        %v802 = vmul.f32 %v766, %v787
        %v803 = vmul.f32 %v767, %v787
        %v804 = vmul.f32 %v768, %v787
        %v805 = vmul.f32 %v769, %v787
        %v806 = vmul.f32 %v770, %v787
        %v807 = vmul.f32 %v771, %v787
        %v808 = vmul.f32 %v772, %v787
        %v809 = vmul.f32 %v773, %v787
        %v810 = vmul.f32 %v774, %v787
        %v811 = vmul.f32 %v775, %v787
        %v812 = vmul.f32 %v776, %v787
        %v813 = vmul.f32 %v777, %v787
        %v814 = vmul.f32 %v778, %v787
        %v815 = vmul.f32 %v779, %v787
        %v816 = vmul.f32 %v780, %v787
        %v817 = vmul.f32 %v781, %v787
        %v818 = vmul.f32 %v782, %v787
        %v819 = vmul.f32 %v783, %v787
        %v820 = vadd.f32 %v720, %v788
        %v821 = vadd.f32 %v721, %v789
        %v822 = vadd.f32 %v722, %v790
        %v823 = vadd.f32 %v723, %v791
        %v824 = vadd.f32 %v724, %v792
        %v825 = vadd.f32 %v725, %v793
        %v826 = vadd.f32 %v726, %v794
        %v827 = vadd.f32 %v727, %v795
        %v828 = vadd.f32 %v728, %v796
        %v829 = vadd.f32 %v729, %v797
        %v830 = vadd.f32 %v730, %v798
        %v831 = vadd.f32 %v731, %v799
        %v832 = vadd.f32 %v732, %v800
        %v833 = vadd.f32 %v733, %v801
        %v834 = vadd.f32 %v734, %v802
        %v835 = vadd.f32 %v735, %v803
        %v836 = vadd.f32 %v736, %v804
        %v837 = vadd.f32 %v737, %v805
        %v838 = vadd.f32 %v738, %v806
        %v839 = vadd.f32 %v739, %v807
        %v840 = vadd.f32 %v740, %v808
        %v841 = vadd.f32 %v741, %v809
        %v842 = vadd.f32 %v742, %v810
        %v843 = vadd.f32 %v743, %v811
        %v844 = vadd.f32 %v744, %v812
        %v845 = vadd.f32 %v745, %v813
        %v846 = vadd.f32 %v746, %v814
        %v847 = vadd.f32 %v747, %v815
        %v848 = vadd.f32 %v748, %v816
        %v849 = vadd.f32 %v749, %v817
        %v850 = vadd.f32 %v750, %v818
        %v851 = vadd.f32 %v751, %v819
        %v852 = vld [vmem:[%s509] sm:$0xff]
        %v853 = vld [vmem:[%s509 + $0x8] sm:$0xff]
        %v854 = vld [vmem:[%s509 + $0x18] sm:$0xff]
        %v855 = vld [vmem:[%s509 + $0x20] sm:$0xff]
        %v856 = vld [vmem:[%s509 + $0x30] sm:$0xff]
        %v857 = vld [vmem:[%s509 + $0x38] sm:$0xff]
        %v858 = vld [vmem:[%s509 + $0x48] sm:$0xff]
        %v859 = vld [vmem:[%s509 + $0x50] sm:$0xff]
        %v860 = vld [vmem:[%s509 + $0x60] sm:$0xff]
        %v861 = vld [vmem:[%s509 + $0x68] sm:$0xff]
        %v862 = vld [vmem:[%s509 + $0x78] sm:$0xff]
        %v863 = vld [vmem:[%s509 + $0x80] sm:$0xff]
        %v864 = vld [vmem:[%s509 + $0x90] sm:$0xff]
        %v865 = vld [vmem:[%s509 + $0x98] sm:$0xff]
        %v866 = vld [vmem:[%s509 + $0xa8] sm:$0xff]
        %v867 = vld [vmem:[%s509 + $0xb0] sm:$0xff]
        %v868 = vld [vmem:[%s509 + $0xc0] sm:$0xff]
        %v869 = vld [vmem:[%s509 + $0xc8] sm:$0xff]
        %v870 = vld [vmem:[%s509 + $0xd8] sm:$0xff]
        %v871 = vld [vmem:[%s509 + $0xe0] sm:$0xff]
        %v872 = vld [vmem:[%s509 + $0xf0] sm:$0xff]
        %v873 = vld [vmem:[%s509 + $0xf8] sm:$0xff]
        %v874 = vld [vmem:[%s509 + $0x108] sm:$0xff]
        %v875 = vld [vmem:[%s509 + $0x110] sm:$0xff]
        %v876 = vld [vmem:[%s509 + $0x120] sm:$0xff]
        %v877 = vld [vmem:[%s509 + $0x128] sm:$0xff]
        %v878 = vld [vmem:[%s509 + $0x138] sm:$0xff]
        %v879 = vld [vmem:[%s509 + $0x140] sm:$0xff]
        %v880 = vld [vmem:[%s509 + $0x150] sm:$0xff]
        %v881 = vld [vmem:[%s509 + $0x158] sm:$0xff]
        %v882 = vld [vmem:[%s509 + $0x168] sm:$0xff]
        %v883 = vld [vmem:[%s509 + $0x170] sm:$0xff]
        %v884 = vlaneseq
        %v885 = vshrl.u32 %v884, 7
        %v886 = vsub.s32 3, %v885
        %v887 = vrot.slane %v542, %v886
        %v888 = vmul.f32 %v852, %v887
        %v889 = vmul.f32 %v853, %v887
        %v890 = vmul.f32 %v854, %v887
        %v891 = vmul.f32 %v855, %v887
        %v892 = vmul.f32 %v856, %v887
        %v893 = vmul.f32 %v857, %v887
        %v894 = vmul.f32 %v858, %v887
        %v895 = vmul.f32 %v859, %v887
        %v896 = vmul.f32 %v860, %v887
        %v897 = vmul.f32 %v861, %v887
        %v898 = vmul.f32 %v862, %v887
        %v899 = vmul.f32 %v863, %v887
        %v900 = vmul.f32 %v864, %v887
        %v901 = vmul.f32 %v865, %v887
        %v902 = vmul.f32 %v866, %v887
        %v903 = vmul.f32 %v867, %v887
        %v904 = vmul.f32 %v868, %v887
        %v905 = vmul.f32 %v869, %v887
        %v906 = vmul.f32 %v870, %v887
        %v907 = vmul.f32 %v871, %v887
        %v908 = vmul.f32 %v872, %v887
        %v909 = vmul.f32 %v873, %v887
        %v910 = vmul.f32 %v874, %v887
        %v911 = vmul.f32 %v875, %v887
        %v912 = vmul.f32 %v876, %v887
        %v913 = vmul.f32 %v877, %v887
        %v914 = vmul.f32 %v878, %v887
        %v915 = vmul.f32 %v879, %v887
        %v916 = vmul.f32 %v880, %v887
        %v917 = vmul.f32 %v881, %v887
        %v918 = vmul.f32 %v882, %v887
        %v919 = vmul.f32 %v883, %v887
        %v920 = vadd.f32 %v820, %v888
        %v921 = vadd.f32 %v821, %v889
        %v922 = vadd.f32 %v822, %v890
        %v923 = vadd.f32 %v823, %v891
        %v924 = vadd.f32 %v824, %v892
        %v925 = vadd.f32 %v825, %v893
        %v926 = vadd.f32 %v826, %v894
        %v927 = vadd.f32 %v827, %v895
        %v928 = vadd.f32 %v828, %v896
        %v929 = vadd.f32 %v829, %v897
        %v930 = vadd.f32 %v830, %v898
        %v931 = vadd.f32 %v831, %v899
        %v932 = vadd.f32 %v832, %v900
        %v933 = vadd.f32 %v833, %v901
        %v934 = vadd.f32 %v834, %v902
        %v935 = vadd.f32 %v835, %v903
        %v936 = vadd.f32 %v836, %v904
        %v937 = vadd.f32 %v837, %v905
        %v938 = vadd.f32 %v838, %v906
        %v939 = vadd.f32 %v839, %v907
        %v940 = vadd.f32 %v840, %v908
        %v941 = vadd.f32 %v841, %v909
        %v942 = vadd.f32 %v842, %v910
        %v943 = vadd.f32 %v843, %v911
        %v944 = vadd.f32 %v844, %v912
        %v945 = vadd.f32 %v845, %v913
        %v946 = vadd.f32 %v846, %v914
        %v947 = vadd.f32 %v847, %v915
        %v948 = vadd.f32 %v848, %v916
        %v949 = vadd.f32 %v849, %v917
        %v950 = vadd.f32 %v850, %v918
        %v951 = vadd.f32 %v851, %v919
        %v952 = vld [vmem:[%s509 + $0x1] sm:$0xff]
        %v953 = vld [vmem:[%s509 + $0x9] sm:$0xff]
        %v954 = vld [vmem:[%s509 + $0x19] sm:$0xff]
        %v955 = vld [vmem:[%s509 + $0x21] sm:$0xff]
        %v956 = vld [vmem:[%s509 + $0x31] sm:$0xff]
        %v957 = vld [vmem:[%s509 + $0x39] sm:$0xff]
        %v958 = vld [vmem:[%s509 + $0x49] sm:$0xff]
        %v959 = vld [vmem:[%s509 + $0x51] sm:$0xff]
        %v960 = vld [vmem:[%s509 + $0x61] sm:$0xff]
        %v961 = vld [vmem:[%s509 + $0x69] sm:$0xff]
        %v962 = vld [vmem:[%s509 + $0x79] sm:$0xff]
        %v963 = vld [vmem:[%s509 + $0x81] sm:$0xff]
        %v964 = vld [vmem:[%s509 + $0x91] sm:$0xff]
        %v965 = vld [vmem:[%s509 + $0x99] sm:$0xff]
        %v966 = vld [vmem:[%s509 + $0xa9] sm:$0xff]
        %v967 = vld [vmem:[%s509 + $0xb1] sm:$0xff]
        %v968 = vld [vmem:[%s509 + $0xc1] sm:$0xff]
        %v969 = vld [vmem:[%s509 + $0xc9] sm:$0xff]
        %v970 = vld [vmem:[%s509 + $0xd9] sm:$0xff]
        %v971 = vld [vmem:[%s509 + $0xe1] sm:$0xff]
        %v972 = vld [vmem:[%s509 + $0xf1] sm:$0xff]
        %v973 = vld [vmem:[%s509 + $0xf9] sm:$0xff]
        %v974 = vld [vmem:[%s509 + $0x109] sm:$0xff]
        %v975 = vld [vmem:[%s509 + $0x111] sm:$0xff]
        %v976 = vld [vmem:[%s509 + $0x121] sm:$0xff]
        %v977 = vld [vmem:[%s509 + $0x129] sm:$0xff]
        %v978 = vld [vmem:[%s509 + $0x139] sm:$0xff]
        %v979 = vld [vmem:[%s509 + $0x141] sm:$0xff]
        %v980 = vld [vmem:[%s509 + $0x151] sm:$0xff]
        %v981 = vld [vmem:[%s509 + $0x159] sm:$0xff]
        %v982 = vld [vmem:[%s509 + $0x169] sm:$0xff]
        %v983 = vld [vmem:[%s509 + $0x171] sm:$0xff]
        %v984 = vlaneseq
        %v985 = vshrl.u32 %v984, 7
        %v986 = vsub.s32 4, %v985
        %v987 = vrot.slane %v542, %v986
        %v988 = vmul.f32 %v952, %v987
        %v989 = vmul.f32 %v953, %v987
        %v990 = vmul.f32 %v954, %v987
        %v991 = vmul.f32 %v955, %v987
        %v992 = vmul.f32 %v956, %v987
        %v993 = vmul.f32 %v957, %v987
        %v994 = vmul.f32 %v958, %v987
        %v995 = vmul.f32 %v959, %v987
        %v996 = vmul.f32 %v960, %v987
        %v997 = vmul.f32 %v961, %v987
        %v998 = vmul.f32 %v962, %v987
        %v999 = vmul.f32 %v963, %v987
        %v1000 = vmul.f32 %v964, %v987
        %v1001 = vmul.f32 %v965, %v987
        %v1002 = vmul.f32 %v966, %v987
        %v1003 = vmul.f32 %v967, %v987
        %v1004 = vmul.f32 %v968, %v987
        %v1005 = vmul.f32 %v969, %v987
        %v1006 = vmul.f32 %v970, %v987
        %v1007 = vmul.f32 %v971, %v987
        %v1008 = vmul.f32 %v972, %v987
        %v1009 = vmul.f32 %v973, %v987
        %v1010 = vmul.f32 %v974, %v987
        %v1011 = vmul.f32 %v975, %v987
        %v1012 = vmul.f32 %v976, %v987
        %v1013 = vmul.f32 %v977, %v987
        %v1014 = vmul.f32 %v978, %v987
        %v1015 = vmul.f32 %v979, %v987
        %v1016 = vmul.f32 %v980, %v987
        %v1017 = vmul.f32 %v981, %v987
        %v1018 = vmul.f32 %v982, %v987
        %v1019 = vmul.f32 %v983, %v987
        %v1020 = vadd.f32 %v920, %v988
        %v1021 = vadd.f32 %v921, %v989
        %v1022 = vadd.f32 %v922, %v990
        %v1023 = vadd.f32 %v923, %v991
        %v1024 = vadd.f32 %v924, %v992
        %v1025 = vadd.f32 %v925, %v993
        %v1026 = vadd.f32 %v926, %v994
        %v1027 = vadd.f32 %v927, %v995
        %v1028 = vadd.f32 %v928, %v996
        %v1029 = vadd.f32 %v929, %v997
        %v1030 = vadd.f32 %v930, %v998
        %v1031 = vadd.f32 %v931, %v999
        %v1032 = vadd.f32 %v932, %v1000
        %v1033 = vadd.f32 %v933, %v1001
        %v1034 = vadd.f32 %v934, %v1002
        %v1035 = vadd.f32 %v935, %v1003
        %v1036 = vadd.f32 %v936, %v1004
        %v1037 = vadd.f32 %v937, %v1005
        %v1038 = vadd.f32 %v938, %v1006
        %v1039 = vadd.f32 %v939, %v1007
        %v1040 = vadd.f32 %v940, %v1008
        %v1041 = vadd.f32 %v941, %v1009
        %v1042 = vadd.f32 %v942, %v1010
        %v1043 = vadd.f32 %v943, %v1011
        %v1044 = vadd.f32 %v944, %v1012
        %v1045 = vadd.f32 %v945, %v1013
        %v1046 = vadd.f32 %v946, %v1014
        %v1047 = vadd.f32 %v947, %v1015
        %v1048 = vadd.f32 %v948, %v1016
        %v1049 = vadd.f32 %v949, %v1017
        %v1050 = vadd.f32 %v950, %v1018
        %v1051 = vadd.f32 %v951, %v1019
        %v1052 = vld [vmem:[%s509 + $0x2] sm:$0xff]
        %v1053 = vld [vmem:[%s509 + $0xa] sm:$0xff]
        %v1054 = vld [vmem:[%s509 + $0x1a] sm:$0xff]
        %v1055 = vld [vmem:[%s509 + $0x22] sm:$0xff]
        %v1056 = vld [vmem:[%s509 + $0x32] sm:$0xff]
        %v1057 = vld [vmem:[%s509 + $0x3a] sm:$0xff]
        %v1058 = vld [vmem:[%s509 + $0x4a] sm:$0xff]
        %v1059 = vld [vmem:[%s509 + $0x52] sm:$0xff]
        %v1060 = vld [vmem:[%s509 + $0x62] sm:$0xff]
        %v1061 = vld [vmem:[%s509 + $0x6a] sm:$0xff]
        %v1062 = vld [vmem:[%s509 + $0x7a] sm:$0xff]
        %v1063 = vld [vmem:[%s509 + $0x82] sm:$0xff]
        %v1064 = vld [vmem:[%s509 + $0x92] sm:$0xff]
        %v1065 = vld [vmem:[%s509 + $0x9a] sm:$0xff]
        %v1066 = vld [vmem:[%s509 + $0xaa] sm:$0xff]
        %v1067 = vld [vmem:[%s509 + $0xb2] sm:$0xff]
        %v1068 = vld [vmem:[%s509 + $0xc2] sm:$0xff]
        %v1069 = vld [vmem:[%s509 + $0xca] sm:$0xff]
        %v1070 = vld [vmem:[%s509 + $0xda] sm:$0xff]
        %v1071 = vld [vmem:[%s509 + $0xe2] sm:$0xff]
        %v1072 = vld [vmem:[%s509 + $0xf2] sm:$0xff]
        %v1073 = vld [vmem:[%s509 + $0xfa] sm:$0xff]
        %v1074 = vld [vmem:[%s509 + $0x10a] sm:$0xff]
        %v1075 = vld [vmem:[%s509 + $0x112] sm:$0xff]
        %v1076 = vld [vmem:[%s509 + $0x122] sm:$0xff]
        %v1077 = vld [vmem:[%s509 + $0x12a] sm:$0xff]
        %v1078 = vld [vmem:[%s509 + $0x13a] sm:$0xff]
        %v1079 = vld [vmem:[%s509 + $0x142] sm:$0xff]
        %v1080 = vld [vmem:[%s509 + $0x152] sm:$0xff]
        %v1081 = vld [vmem:[%s509 + $0x15a] sm:$0xff]
        %v1082 = vld [vmem:[%s509 + $0x16a] sm:$0xff]
        %v1083 = vld [vmem:[%s509 + $0x172] sm:$0xff]
        %v1084 = vlaneseq
        %v1085 = vshrl.u32 %v1084, 7
        %v1086 = vsub.s32 5, %v1085
        %v1087 = vrot.slane %v542, %v1086
        %v1088 = vmul.f32 %v1052, %v1087
        %v1089 = vmul.f32 %v1053, %v1087
        %v1090 = vmul.f32 %v1054, %v1087
        %v1091 = vmul.f32 %v1055, %v1087
        %v1092 = vmul.f32 %v1056, %v1087
        %v1093 = vmul.f32 %v1057, %v1087
        %v1094 = vmul.f32 %v1058, %v1087
        %v1095 = vmul.f32 %v1059, %v1087
        %v1096 = vmul.f32 %v1060, %v1087
        %v1097 = vmul.f32 %v1061, %v1087
        %v1098 = vmul.f32 %v1062, %v1087
        %v1099 = vmul.f32 %v1063, %v1087
        %v1100 = vmul.f32 %v1064, %v1087
        %v1101 = vmul.f32 %v1065, %v1087
        %v1102 = vmul.f32 %v1066, %v1087
        %v1103 = vmul.f32 %v1067, %v1087
        %v1104 = vmul.f32 %v1068, %v1087
        %v1105 = vmul.f32 %v1069, %v1087
        %v1106 = vmul.f32 %v1070, %v1087
        %v1107 = vmul.f32 %v1071, %v1087
        %v1108 = vmul.f32 %v1072, %v1087
        %v1109 = vmul.f32 %v1073, %v1087
        %v1110 = vmul.f32 %v1074, %v1087
        %v1111 = vmul.f32 %v1075, %v1087
        %v1112 = vmul.f32 %v1076, %v1087
        %v1113 = vmul.f32 %v1077, %v1087
        %v1114 = vmul.f32 %v1078, %v1087
        %v1115 = vmul.f32 %v1079, %v1087
        %v1116 = vmul.f32 %v1080, %v1087
        %v1117 = vmul.f32 %v1081, %v1087
        %v1118 = vmul.f32 %v1082, %v1087
        %v1119 = vmul.f32 %v1083, %v1087
        %v1120 = vadd.f32 %v1020, %v1088
        %v1121 = vadd.f32 %v1021, %v1089
        %v1122 = vadd.f32 %v1022, %v1090
        %v1123 = vadd.f32 %v1023, %v1091
        %v1124 = vadd.f32 %v1024, %v1092
        %v1125 = vadd.f32 %v1025, %v1093
        %v1126 = vadd.f32 %v1026, %v1094
        %v1127 = vadd.f32 %v1027, %v1095
        %v1128 = vadd.f32 %v1028, %v1096
        %v1129 = vadd.f32 %v1029, %v1097
        %v1130 = vadd.f32 %v1030, %v1098
        %v1131 = vadd.f32 %v1031, %v1099
        %v1132 = vadd.f32 %v1032, %v1100
        %v1133 = vadd.f32 %v1033, %v1101
        %v1134 = vadd.f32 %v1034, %v1102
        %v1135 = vadd.f32 %v1035, %v1103
        %v1136 = vadd.f32 %v1036, %v1104
        %v1137 = vadd.f32 %v1037, %v1105
        %v1138 = vadd.f32 %v1038, %v1106
        %v1139 = vadd.f32 %v1039, %v1107
        %v1140 = vadd.f32 %v1040, %v1108
        %v1141 = vadd.f32 %v1041, %v1109
        %v1142 = vadd.f32 %v1042, %v1110
        %v1143 = vadd.f32 %v1043, %v1111
        %v1144 = vadd.f32 %v1044, %v1112
        %v1145 = vadd.f32 %v1045, %v1113
        %v1146 = vadd.f32 %v1046, %v1114
        %v1147 = vadd.f32 %v1047, %v1115
        %v1148 = vadd.f32 %v1048, %v1116
        %v1149 = vadd.f32 %v1049, %v1117
        %v1150 = vadd.f32 %v1050, %v1118
        %v1151 = vadd.f32 %v1051, %v1119
        %s1152 = scalar_lea.vmem [#allocation3], 48
        %v1153 = vld [vmem:[%s1152] sm:$0xff]
        %v1154 = vld [vmem:[%s1152 + $0x8] sm:$0xff]
        %v1155 = vld [vmem:[%s1152 + $0x18] sm:$0xff]
        %v1156 = vld [vmem:[%s1152 + $0x20] sm:$0xff]
        %v1157 = vld [vmem:[%s1152 + $0x30] sm:$0xff]
        %v1158 = vld [vmem:[%s1152 + $0x38] sm:$0xff]
        %v1159 = vld [vmem:[%s1152 + $0x48] sm:$0xff]
        %v1160 = vld [vmem:[%s1152 + $0x50] sm:$0xff]
        %v1161 = vld [vmem:[%s1152 + $0x60] sm:$0xff]
        %v1162 = vld [vmem:[%s1152 + $0x68] sm:$0xff]
        %v1163 = vld [vmem:[%s1152 + $0x78] sm:$0xff]
        %v1164 = vld [vmem:[%s1152 + $0x80] sm:$0xff]
        %v1165 = vld [vmem:[%s1152 + $0x90] sm:$0xff]
        %v1166 = vld [vmem:[%s1152 + $0x98] sm:$0xff]
        %v1167 = vld [vmem:[%s1152 + $0xa8] sm:$0xff]
        %v1168 = vld [vmem:[%s1152 + $0xb0] sm:$0xff]
        %v1169 = vld [vmem:[%s1152 + $0xc0] sm:$0xff]
        %v1170 = vld [vmem:[%s1152 + $0xc8] sm:$0xff]
        %v1171 = vld [vmem:[%s1152 + $0xd8] sm:$0xff]
        %v1172 = vld [vmem:[%s1152 + $0xe0] sm:$0xff]
        %v1173 = vld [vmem:[%s1152 + $0xf0] sm:$0xff]
        %v1174 = vld [vmem:[%s1152 + $0xf8] sm:$0xff]
        %v1175 = vld [vmem:[%s1152 + $0x108] sm:$0xff]
        %v1176 = vld [vmem:[%s1152 + $0x110] sm:$0xff]
        %v1177 = vld [vmem:[%s1152 + $0x120] sm:$0xff]
        %v1178 = vld [vmem:[%s1152 + $0x128] sm:$0xff]
        %v1179 = vld [vmem:[%s1152 + $0x138] sm:$0xff]
        %v1180 = vld [vmem:[%s1152 + $0x140] sm:$0xff]
        %v1181 = vld [vmem:[%s1152 + $0x150] sm:$0xff]
        %v1182 = vld [vmem:[%s1152 + $0x158] sm:$0xff]
        %v1183 = vld [vmem:[%s1152 + $0x168] sm:$0xff]
        %v1184 = vld [vmem:[%s1152 + $0x170] sm:$0xff]
        %v1185 = vlaneseq
        %v1186 = vshrl.u32 %v1185, 7
        %v1187 = vsub.s32 6, %v1186
        %v1188 = vrot.slane %v542, %v1187
        %v1189 = vmul.f32 %v1153, %v1188
        %v1190 = vmul.f32 %v1154, %v1188
        %v1191 = vmul.f32 %v1155, %v1188
        %v1192 = vmul.f32 %v1156, %v1188
        %v1193 = vmul.f32 %v1157, %v1188
        %v1194 = vmul.f32 %v1158, %v1188
        %v1195 = vmul.f32 %v1159, %v1188
        %v1196 = vmul.f32 %v1160, %v1188
        %v1197 = vmul.f32 %v1161, %v1188
        %v1198 = vmul.f32 %v1162, %v1188
        %v1199 = vmul.f32 %v1163, %v1188
        %v1200 = vmul.f32 %v1164, %v1188
        %v1201 = vmul.f32 %v1165, %v1188
        %v1202 = vmul.f32 %v1166, %v1188
        %v1203 = vmul.f32 %v1167, %v1188
        %v1204 = vmul.f32 %v1168, %v1188
        %v1205 = vmul.f32 %v1169, %v1188
        %v1206 = vmul.f32 %v1170, %v1188
        %v1207 = vmul.f32 %v1171, %v1188
        %v1208 = vmul.f32 %v1172, %v1188
        %v1209 = vmul.f32 %v1173, %v1188
        %v1210 = vmul.f32 %v1174, %v1188
        %v1211 = vmul.f32 %v1175, %v1188
        %v1212 = vmul.f32 %v1176, %v1188
        %v1213 = vmul.f32 %v1177, %v1188
        %v1214 = vmul.f32 %v1178, %v1188
        %v1215 = vmul.f32 %v1179, %v1188
        %v1216 = vmul.f32 %v1180, %v1188
        %v1217 = vmul.f32 %v1181, %v1188
        %v1218 = vmul.f32 %v1182, %v1188
        %v1219 = vmul.f32 %v1183, %v1188
        %v1220 = vmul.f32 %v1184, %v1188
        %v1221 = vadd.f32 %v1120, %v1189
        %v1222 = vadd.f32 %v1121, %v1190
        %v1223 = vadd.f32 %v1122, %v1191
        %v1224 = vadd.f32 %v1123, %v1192
        %v1225 = vadd.f32 %v1124, %v1193
        %v1226 = vadd.f32 %v1125, %v1194
        %v1227 = vadd.f32 %v1126, %v1195
        %v1228 = vadd.f32 %v1127, %v1196
        %v1229 = vadd.f32 %v1128, %v1197
        %v1230 = vadd.f32 %v1129, %v1198
        %v1231 = vadd.f32 %v1130, %v1199
        %v1232 = vadd.f32 %v1131, %v1200
        %v1233 = vadd.f32 %v1132, %v1201
        %v1234 = vadd.f32 %v1133, %v1202
        %v1235 = vadd.f32 %v1134, %v1203
        %v1236 = vadd.f32 %v1135, %v1204
        %v1237 = vadd.f32 %v1136, %v1205
        %v1238 = vadd.f32 %v1137, %v1206
        %v1239 = vadd.f32 %v1138, %v1207
        %v1240 = vadd.f32 %v1139, %v1208
        %v1241 = vadd.f32 %v1140, %v1209
        %v1242 = vadd.f32 %v1141, %v1210
        %v1243 = vadd.f32 %v1142, %v1211
        %v1244 = vadd.f32 %v1143, %v1212
        %v1245 = vadd.f32 %v1144, %v1213
        %v1246 = vadd.f32 %v1145, %v1214
        %v1247 = vadd.f32 %v1146, %v1215
        %v1248 = vadd.f32 %v1147, %v1216
        %v1249 = vadd.f32 %v1148, %v1217
        %v1250 = vadd.f32 %v1149, %v1218
        %v1251 = vadd.f32 %v1150, %v1219
        %v1252 = vadd.f32 %v1151, %v1220
        %v1253 = vld [vmem:[%s1152 + $0x1] sm:$0xff]
        %v1254 = vld [vmem:[%s1152 + $0x9] sm:$0xff]
        %v1255 = vld [vmem:[%s1152 + $0x19] sm:$0xff]
        %v1256 = vld [vmem:[%s1152 + $0x21] sm:$0xff]
        %v1257 = vld [vmem:[%s1152 + $0x31] sm:$0xff]
        %v1258 = vld [vmem:[%s1152 + $0x39] sm:$0xff]
        %v1259 = vld [vmem:[%s1152 + $0x49] sm:$0xff]
        %v1260 = vld [vmem:[%s1152 + $0x51] sm:$0xff]
        %v1261 = vld [vmem:[%s1152 + $0x61] sm:$0xff]
        %v1262 = vld [vmem:[%s1152 + $0x69] sm:$0xff]
        %v1263 = vld [vmem:[%s1152 + $0x79] sm:$0xff]
        %v1264 = vld [vmem:[%s1152 + $0x81] sm:$0xff]
        %v1265 = vld [vmem:[%s1152 + $0x91] sm:$0xff]
        %v1266 = vld [vmem:[%s1152 + $0x99] sm:$0xff]
        %v1267 = vld [vmem:[%s1152 + $0xa9] sm:$0xff]
        %v1268 = vld [vmem:[%s1152 + $0xb1] sm:$0xff]
        %v1269 = vld [vmem:[%s1152 + $0xc1] sm:$0xff]
        %v1270 = vld [vmem:[%s1152 + $0xc9] sm:$0xff]
        %v1271 = vld [vmem:[%s1152 + $0xd9] sm:$0xff]
        %v1272 = vld [vmem:[%s1152 + $0xe1] sm:$0xff]
        %v1273 = vld [vmem:[%s1152 + $0xf1] sm:$0xff]
        %v1274 = vld [vmem:[%s1152 + $0xf9] sm:$0xff]
        %v1275 = vld [vmem:[%s1152 + $0x109] sm:$0xff]
        %v1276 = vld [vmem:[%s1152 + $0x111] sm:$0xff]
        %v1277 = vld [vmem:[%s1152 + $0x121] sm:$0xff]
        %v1278 = vld [vmem:[%s1152 + $0x129] sm:$0xff]
        %v1279 = vld [vmem:[%s1152 + $0x139] sm:$0xff]
        %v1280 = vld [vmem:[%s1152 + $0x141] sm:$0xff]
        %v1281 = vld [vmem:[%s1152 + $0x151] sm:$0xff]
        %v1282 = vld [vmem:[%s1152 + $0x159] sm:$0xff]
        %v1283 = vld [vmem:[%s1152 + $0x169] sm:$0xff]
        %v1284 = vld [vmem:[%s1152 + $0x171] sm:$0xff]
        %v1285 = vlaneseq
        %v1286 = vshrl.u32 %v1285, 7
        %v1287 = vsub.s32 7, %v1286
        %v1288 = vrot.slane %v542, %v1287
        %v1289 = vmul.f32 %v1253, %v1288
        %v1290 = vmul.f32 %v1254, %v1288
        %v1291 = vmul.f32 %v1255, %v1288
        %v1292 = vmul.f32 %v1256, %v1288
        %v1293 = vmul.f32 %v1257, %v1288
        %v1294 = vmul.f32 %v1258, %v1288
        %v1295 = vmul.f32 %v1259, %v1288
        %v1296 = vmul.f32 %v1260, %v1288
        %v1297 = vmul.f32 %v1261, %v1288
        %v1298 = vmul.f32 %v1262, %v1288
        %v1299 = vmul.f32 %v1263, %v1288
        %v1300 = vmul.f32 %v1264, %v1288
        %v1301 = vmul.f32 %v1265, %v1288
        %v1302 = vmul.f32 %v1266, %v1288
        %v1303 = vmul.f32 %v1267, %v1288
        %v1304 = vmul.f32 %v1268, %v1288
        %v1305 = vmul.f32 %v1269, %v1288
        %v1306 = vmul.f32 %v1270, %v1288
        %v1307 = vmul.f32 %v1271, %v1288
        %v1308 = vmul.f32 %v1272, %v1288
        %v1309 = vmul.f32 %v1273, %v1288
        %v1310 = vmul.f32 %v1274, %v1288
        %v1311 = vmul.f32 %v1275, %v1288
        %v1312 = vmul.f32 %v1276, %v1288
        %v1313 = vmul.f32 %v1277, %v1288
        %v1314 = vmul.f32 %v1278, %v1288
        %v1315 = vmul.f32 %v1279, %v1288
        %v1316 = vmul.f32 %v1280, %v1288
        %v1317 = vmul.f32 %v1281, %v1288
        %v1318 = vmul.f32 %v1282, %v1288
        %v1319 = vmul.f32 %v1283, %v1288
        %v1320 = vmul.f32 %v1284, %v1288
        %v1321 = vadd.f32 %v1221, %v1289
        %v1322 = vadd.f32 %v1222, %v1290
        %v1323 = vadd.f32 %v1223, %v1291
        %v1324 = vadd.f32 %v1224, %v1292
        %v1325 = vadd.f32 %v1225, %v1293
        %v1326 = vadd.f32 %v1226, %v1294
        %v1327 = vadd.f32 %v1227, %v1295
        %v1328 = vadd.f32 %v1228, %v1296
        %v1329 = vadd.f32 %v1229, %v1297
        %v1330 = vadd.f32 %v1230, %v1298
        %v1331 = vadd.f32 %v1231, %v1299
        %v1332 = vadd.f32 %v1232, %v1300
        %v1333 = vadd.f32 %v1233, %v1301
        %v1334 = vadd.f32 %v1234, %v1302
        %v1335 = vadd.f32 %v1235, %v1303
        %v1336 = vadd.f32 %v1236, %v1304
        %v1337 = vadd.f32 %v1237, %v1305
        %v1338 = vadd.f32 %v1238, %v1306
        %v1339 = vadd.f32 %v1239, %v1307
        %v1340 = vadd.f32 %v1240, %v1308
        %v1341 = vadd.f32 %v1241, %v1309
        %v1342 = vadd.f32 %v1242, %v1310
        %v1343 = vadd.f32 %v1243, %v1311
        %v1344 = vadd.f32 %v1244, %v1312
        %v1345 = vadd.f32 %v1245, %v1313
        %v1346 = vadd.f32 %v1246, %v1314
        %v1347 = vadd.f32 %v1247, %v1315
        %v1348 = vadd.f32 %v1248, %v1316
        %v1349 = vadd.f32 %v1249, %v1317
        %v1350 = vadd.f32 %v1250, %v1318
        %v1351 = vadd.f32 %v1251, %v1319
        %v1352 = vadd.f32 %v1252, %v1320
        %v1353 = vld [vmem:[%s1152 + $0x2] sm:$0xff]
        %v1354 = vld [vmem:[%s1152 + $0xa] sm:$0xff]
        %v1355 = vld [vmem:[%s1152 + $0x1a] sm:$0xff]
        %v1356 = vld [vmem:[%s1152 + $0x22] sm:$0xff]
        %v1357 = vld [vmem:[%s1152 + $0x32] sm:$0xff]
        %v1358 = vld [vmem:[%s1152 + $0x3a] sm:$0xff]
        %v1359 = vld [vmem:[%s1152 + $0x4a] sm:$0xff]
        %v1360 = vld [vmem:[%s1152 + $0x52] sm:$0xff]
        %v1361 = vld [vmem:[%s1152 + $0x62] sm:$0xff]
        %v1362 = vld [vmem:[%s1152 + $0x6a] sm:$0xff]
        %v1363 = vld [vmem:[%s1152 + $0x7a] sm:$0xff]
        %v1364 = vld [vmem:[%s1152 + $0x82] sm:$0xff]
        %v1365 = vld [vmem:[%s1152 + $0x92] sm:$0xff]
        %v1366 = vld [vmem:[%s1152 + $0x9a] sm:$0xff]
        %v1367 = vld [vmem:[%s1152 + $0xaa] sm:$0xff]
        %v1368 = vld [vmem:[%s1152 + $0xb2] sm:$0xff]
        %v1369 = vld [vmem:[%s1152 + $0xc2] sm:$0xff]
        %v1370 = vld [vmem:[%s1152 + $0xca] sm:$0xff]
        %v1371 = vld [vmem:[%s1152 + $0xda] sm:$0xff]
        %v1372 = vld [vmem:[%s1152 + $0xe2] sm:$0xff]
        %v1373 = vld [vmem:[%s1152 + $0xf2] sm:$0xff]
        %v1374 = vld [vmem:[%s1152 + $0xfa] sm:$0xff]
        %v1375 = vld [vmem:[%s1152 + $0x10a] sm:$0xff]
        %v1376 = vld [vmem:[%s1152 + $0x112] sm:$0xff]
        %v1377 = vld [vmem:[%s1152 + $0x122] sm:$0xff]
        %v1378 = vld [vmem:[%s1152 + $0x12a] sm:$0xff]
        %v1379 = vld [vmem:[%s1152 + $0x13a] sm:$0xff]
        %v1380 = vld [vmem:[%s1152 + $0x142] sm:$0xff]
        %v1381 = vld [vmem:[%s1152 + $0x152] sm:$0xff]
        %v1382 = vld [vmem:[%s1152 + $0x15a] sm:$0xff]
        %v1383 = vld [vmem:[%s1152 + $0x16a] sm:$0xff]
        %v1384 = vld [vmem:[%s1152 + $0x172] sm:$0xff]
        %v1385 = vlaneseq
        %v1386 = vshrl.u32 %v1385, 7
        %v1387 = vsub.s32 0, %v1386
        %v1388 = vrot.slane %v543, %v1387
        %v1389 = vmul.f32 %v1353, %v1388
        %v1390 = vmul.f32 %v1354, %v1388
        %v1391 = vmul.f32 %v1355, %v1388
        %v1392 = vmul.f32 %v1356, %v1388
        %v1393 = vmul.f32 %v1357, %v1388
        %v1394 = vmul.f32 %v1358, %v1388
        %v1395 = vmul.f32 %v1359, %v1388
        %v1396 = vmul.f32 %v1360, %v1388
        %v1397 = vmul.f32 %v1361, %v1388
        %v1398 = vmul.f32 %v1362, %v1388
        %v1399 = vmul.f32 %v1363, %v1388
        %v1400 = vmul.f32 %v1364, %v1388
        %v1401 = vmul.f32 %v1365, %v1388
        %v1402 = vmul.f32 %v1366, %v1388
        %v1403 = vmul.f32 %v1367, %v1388
        %v1404 = vmul.f32 %v1368, %v1388
        %v1405 = vmul.f32 %v1369, %v1388
        %v1406 = vmul.f32 %v1370, %v1388
        %v1407 = vmul.f32 %v1371, %v1388
        %v1408 = vmul.f32 %v1372, %v1388
        %v1409 = vmul.f32 %v1373, %v1388
        %v1410 = vmul.f32 %v1374, %v1388
        %v1411 = vmul.f32 %v1375, %v1388
        %v1412 = vmul.f32 %v1376, %v1388
        %v1413 = vmul.f32 %v1377, %v1388
        %v1414 = vmul.f32 %v1378, %v1388
        %v1415 = vmul.f32 %v1379, %v1388
        %v1416 = vmul.f32 %v1380, %v1388
        %v1417 = vmul.f32 %v1381, %v1388
        %v1418 = vmul.f32 %v1382, %v1388
        %v1419 = vmul.f32 %v1383, %v1388
        %v1420 = vmul.f32 %v1384, %v1388
        %v1421 = vadd.f32 %v1321, %v1389
        %v1422 = vadd.f32 %v1322, %v1390
        %v1423 = vadd.f32 %v1323, %v1391
        %v1424 = vadd.f32 %v1324, %v1392
        %v1425 = vadd.f32 %v1325, %v1393
        %v1426 = vadd.f32 %v1326, %v1394
        %v1427 = vadd.f32 %v1327, %v1395
        %v1428 = vadd.f32 %v1328, %v1396
        %v1429 = vadd.f32 %v1329, %v1397
        %v1430 = vadd.f32 %v1330, %v1398
        %v1431 = vadd.f32 %v1331, %v1399
        %v1432 = vadd.f32 %v1332, %v1400
        %v1433 = vadd.f32 %v1333, %v1401
        %v1434 = vadd.f32 %v1334, %v1402
        %v1435 = vadd.f32 %v1335, %v1403
        %v1436 = vadd.f32 %v1336, %v1404
        %v1437 = vadd.f32 %v1337, %v1405
        %v1438 = vadd.f32 %v1338, %v1406
        %v1439 = vadd.f32 %v1339, %v1407
        %v1440 = vadd.f32 %v1340, %v1408
        %v1441 = vadd.f32 %v1341, %v1409
        %v1442 = vadd.f32 %v1342, %v1410
        %v1443 = vadd.f32 %v1343, %v1411
        %v1444 = vadd.f32 %v1344, %v1412
        %v1445 = vadd.f32 %v1345, %v1413
        %v1446 = vadd.f32 %v1346, %v1414
        %v1447 = vadd.f32 %v1347, %v1415
        %v1448 = vadd.f32 %v1348, %v1416
        %v1449 = vadd.f32 %v1349, %v1417
        %v1450 = vadd.f32 %v1350, %v1418
        %v1451 = vadd.f32 %v1351, %v1419
        %v1452 = vadd.f32 %v1352, %v1420
        %1453 = vst.msk [vmem:[#allocation2] sm:$0xff] %vm293, %v1421
        %1454 = vst.msk [vmem:[#allocation2 + $0x8] sm:$0xff] %vm293, %v1422
        %1455 = vst.msk [vmem:[#allocation2 + $0x10] sm:$0xff] %vm293, %v1423
        %1456 = vst.msk [vmem:[#allocation2 + $0x18] sm:$0xff] %vm293, %v1424
        %1457 = vst.msk [vmem:[#allocation2 + $0x20] sm:$0xff] %vm293, %v1425
        %1458 = vst.msk [vmem:[#allocation2 + $0x28] sm:$0xff] %vm293, %v1426
        %1459 = vst.msk [vmem:[#allocation2 + $0x30] sm:$0xff] %vm293, %v1427
        %1460 = vst.msk [vmem:[#allocation2 + $0x38] sm:$0xff] %vm293, %v1428
        %1461 = vst.msk [vmem:[#allocation2 + $0x40] sm:$0xff] %vm293, %v1429
        %1462 = vst.msk [vmem:[#allocation2 + $0x48] sm:$0xff] %vm293, %v1430
        %1463 = vst.msk [vmem:[#allocation2 + $0x50] sm:$0xff] %vm293, %v1431
        %1464 = vst.msk [vmem:[#allocation2 + $0x58] sm:$0xff] %vm293, %v1432
        %1465 = vst.msk [vmem:[#allocation2 + $0x60] sm:$0xff] %vm293, %v1433
        %1466 = vst.msk [vmem:[#allocation2 + $0x68] sm:$0xff] %vm293, %v1434
        %1467 = vst.msk [vmem:[#allocation2 + $0x70] sm:$0xff] %vm293, %v1435
        %1468 = vst.msk [vmem:[#allocation2 + $0x78] sm:$0xff] %vm293, %v1436
        %1469 = vst.msk [vmem:[#allocation2 + $0x80] sm:$0xff] %vm293, %v1437
        %1470 = vst.msk [vmem:[#allocation2 + $0x88] sm:$0xff] %vm293, %v1438
        %1471 = vst.msk [vmem:[#allocation2 + $0x90] sm:$0xff] %vm293, %v1439
        %1472 = vst.msk [vmem:[#allocation2 + $0x98] sm:$0xff] %vm293, %v1440
        %1473 = vst.msk [vmem:[#allocation2 + $0xa0] sm:$0xff] %vm293, %v1441
        %1474 = vst.msk [vmem:[#allocation2 + $0xa8] sm:$0xff] %vm293, %v1442
        %1475 = vst.msk [vmem:[#allocation2 + $0xb0] sm:$0xff] %vm293, %v1443
        %1476 = vst.msk [vmem:[#allocation2 + $0xb8] sm:$0xff] %vm293, %v1444
        %1477 = vst.msk [vmem:[#allocation2 + $0xc0] sm:$0xff] %vm293, %v1445
        %1478 = vst.msk [vmem:[#allocation2 + $0xc8] sm:$0xff] %vm293, %v1446
        %1479 = vst.msk [vmem:[#allocation2 + $0xd0] sm:$0xff] %vm293, %v1447
        %1480 = vst.msk [vmem:[#allocation2 + $0xd8] sm:$0xff] %vm293, %v1448
        %1481 = vst.msk [vmem:[#allocation2 + $0xe0] sm:$0xff] %vm293, %v1449
        %1482 = vst.msk [vmem:[#allocation2 + $0xe8] sm:$0xff] %vm293, %v1450
        %1483 = vst.msk [vmem:[#allocation2 + $0xf0] sm:$0xff] %vm293, %v1451
        %1484 = vst.msk [vmem:[#allocation2 + $0xf8] sm:$0xff] %vm293, %v1452
      $region36: #{psa_forward.4} parent=31 // pred_fallthru
        _
      %s1485 = smul.u32 %s21, 256
      %s1486 = sshra.s32 %s1485, 3
      %s1487 = sand.u32 %s1485, 7
      %s1488 = smul.addr %s1486, 4
      %s1489 = scalar_lea.vmem %s233, %s1488
      %v1490 = vld [vmem:[%s1489] sm:$0xf]
      %v1491 = vld [vmem:[%s1489 + $0x4] sm:$0xf]
      %v1492 = vld [vmem:[%s1489 + $0x8] sm:$0xf]
      %v1493 = vld [vmem:[%s1489 + $0xc] sm:$0xf]
      %v1494 = vld [vmem:[%s1489 + $0x10] sm:$0xf]
      %v1495 = vld [vmem:[%s1489 + $0x14] sm:$0xf]
      %v1496 = vld [vmem:[%s1489 + $0x18] sm:$0xf]
      %v1497 = vld [vmem:[%s1489 + $0x1c] sm:$0xf]
      %v1498 = vld [vmem:[%s1489 + $0x20] sm:$0xf]
      %v1499 = vld [vmem:[%s1489 + $0x24] sm:$0xf]
      %v1500 = vld [vmem:[%s1489 + $0x28] sm:$0xf]
      %v1501 = vld [vmem:[%s1489 + $0x2c] sm:$0xf]
      %v1502 = vld [vmem:[%s1489 + $0x30] sm:$0xf]
      %v1503 = vld [vmem:[%s1489 + $0x34] sm:$0xf]
      %v1504 = vld [vmem:[%s1489 + $0x38] sm:$0xf]
      %v1505 = vld [vmem:[%s1489 + $0x3c] sm:$0xf]
      %v1506 = vld [vmem:[%s1489 + $0x40] sm:$0xf]
      %v1507 = vld [vmem:[%s1489 + $0x44] sm:$0xf]
      %v1508 = vld [vmem:[%s1489 + $0x48] sm:$0xf]
      %v1509 = vld [vmem:[%s1489 + $0x4c] sm:$0xf]
      %v1510 = vld [vmem:[%s1489 + $0x50] sm:$0xf]
      %v1511 = vld [vmem:[%s1489 + $0x54] sm:$0xf]
      %v1512 = vld [vmem:[%s1489 + $0x58] sm:$0xf]
      %v1513 = vld [vmem:[%s1489 + $0x5c] sm:$0xf]
      %v1514 = vld [vmem:[%s1489 + $0x60] sm:$0xf]
      %v1515 = vld [vmem:[%s1489 + $0x64] sm:$0xf]
      %v1516 = vld [vmem:[%s1489 + $0x68] sm:$0xf]
      %v1517 = vld [vmem:[%s1489 + $0x6c] sm:$0xf]
      %v1518 = vld [vmem:[%s1489 + $0x70] sm:$0xf]
      %v1519 = vld [vmem:[%s1489 + $0x74] sm:$0xf]
      %v1520 = vld [vmem:[%s1489 + $0x78] sm:$0xf]
      %v1521 = vld [vmem:[%s1489 + $0x7c] sm:$0xf]
      %v1522 = vunpack.c.l.bf16 %v1490
      %v1523 = vunpack.c.l.bf16 %v1491
      %v1524 = vunpack.c.l.bf16 %v1492
      %v1525 = vunpack.c.l.bf16 %v1493
      %v1526 = vunpack.c.l.bf16 %v1494
      %v1527 = vunpack.c.l.bf16 %v1495
      %v1528 = vunpack.c.l.bf16 %v1496
      %v1529 = vunpack.c.l.bf16 %v1497
      %v1530 = vunpack.c.l.bf16 %v1498
      %v1531 = vunpack.c.l.bf16 %v1499
      %v1532 = vunpack.c.l.bf16 %v1500
      %v1533 = vunpack.c.l.bf16 %v1501
      %v1534 = vunpack.c.l.bf16 %v1502
      %v1535 = vunpack.c.l.bf16 %v1503
      %v1536 = vunpack.c.l.bf16 %v1504
      %v1537 = vunpack.c.l.bf16 %v1505
      %v1538 = vunpack.c.l.bf16 %v1506
      %v1539 = vunpack.c.l.bf16 %v1507
      %v1540 = vunpack.c.l.bf16 %v1508
      %v1541 = vunpack.c.l.bf16 %v1509
      %v1542 = vunpack.c.l.bf16 %v1510
      %v1543 = vunpack.c.l.bf16 %v1511
      %v1544 = vunpack.c.l.bf16 %v1512
      %v1545 = vunpack.c.l.bf16 %v1513
      %v1546 = vunpack.c.l.bf16 %v1514
      %v1547 = vunpack.c.l.bf16 %v1515
      %v1548 = vunpack.c.l.bf16 %v1516
      %v1549 = vunpack.c.l.bf16 %v1517
      %v1550 = vunpack.c.l.bf16 %v1518
      %v1551 = vunpack.c.l.bf16 %v1519
      %v1552 = vunpack.c.l.bf16 %v1520
      %v1553 = vunpack.c.l.bf16 %v1521
      %v1554 = vmul.f32 %v1522, 0.17677669
      %v1555 = vmul.f32 %v1523, 0.17677669
      %v1556 = vmul.f32 %v1524, 0.17677669
      %v1557 = vmul.f32 %v1525, 0.17677669
      %v1558 = vmul.f32 %v1526, 0.17677669
      %v1559 = vmul.f32 %v1527, 0.17677669
      %v1560 = vmul.f32 %v1528, 0.17677669
      %v1561 = vmul.f32 %v1529, 0.17677669
      %v1562 = vmul.f32 %v1530, 0.17677669
      %v1563 = vmul.f32 %v1531, 0.17677669
      %v1564 = vmul.f32 %v1532, 0.17677669
      %v1565 = vmul.f32 %v1533, 0.17677669
      %v1566 = vmul.f32 %v1534, 0.17677669
      %v1567 = vmul.f32 %v1535, 0.17677669
      %v1568 = vmul.f32 %v1536, 0.17677669
      %v1569 = vmul.f32 %v1537, 0.17677669
      %v1570 = vmul.f32 %v1538, 0.17677669
      %v1571 = vmul.f32 %v1539, 0.17677669
      %v1572 = vmul.f32 %v1540, 0.17677669
      %v1573 = vmul.f32 %v1541, 0.17677669
      %v1574 = vmul.f32 %v1542, 0.17677669
      %v1575 = vmul.f32 %v1543, 0.17677669
      %v1576 = vmul.f32 %v1544, 0.17677669
      %v1577 = vmul.f32 %v1545, 0.17677669
      %v1578 = vmul.f32 %v1546, 0.17677669
      %v1579 = vmul.f32 %v1547, 0.17677669
      %v1580 = vmul.f32 %v1548, 0.17677669
      %v1581 = vmul.f32 %v1549, 0.17677669
      %v1582 = vmul.f32 %v1550, 0.17677669
      %v1583 = vmul.f32 %v1551, 0.17677669
      %v1584 = vmul.f32 %v1552, 0.17677669
      %v1585 = vmul.f32 %v1553, 0.17677669
      %v1586 = vpack.c.bf16 %v1555, %v1554
      %v1587 = vpack.c.bf16 %v1557, %v1556
      %v1588 = vpack.c.bf16 %v1559, %v1558
      %v1589 = vpack.c.bf16 %v1561, %v1560
      %v1590 = vpack.c.bf16 %v1563, %v1562
      %v1591 = vpack.c.bf16 %v1565, %v1564
      %v1592 = vpack.c.bf16 %v1567, %v1566
      %v1593 = vpack.c.bf16 %v1569, %v1568
      %v1594 = vpack.c.bf16 %v1571, %v1570
      %v1595 = vpack.c.bf16 %v1573, %v1572
      %v1596 = vpack.c.bf16 %v1575, %v1574
      %v1597 = vpack.c.bf16 %v1577, %v1576
      %v1598 = vpack.c.bf16 %v1579, %v1578
      %v1599 = vpack.c.bf16 %v1581, %v1580
      %v1600 = vpack.c.bf16 %v1583, %v1582
      %v1601 = vpack.c.bf16 %v1585, %v1584
      %v1634 = vunpack.c.l.b16 %v257
      %v1635 = vunpack.c.l.b16 %v258
      %v1636 = vunpack.c.l.b16 %v259
      %v1637 = vunpack.c.l.b16 %v260
      %v1638 = vunpack.c.l.b16 %v261
      %v1639 = vunpack.c.l.b16 %v262
      %v1640 = vunpack.c.l.b16 %v263
      %v1641 = vunpack.c.l.b16 %v264
      %v1642 = vunpack.c.l.b16 %v265
      %v1643 = vunpack.c.l.b16 %v266
      %v1644 = vunpack.c.l.b16 %v267
      %v1645 = vunpack.c.l.b16 %v268
      %v1646 = vunpack.c.l.b16 %v269
      %v1647 = vunpack.c.l.b16 %v270
      %v1648 = vunpack.c.l.b16 %v271
      %v1649 = vunpack.c.l.b16 %v272
      %v1650 = vunpack.c.l.b16 %v273
      %v1651 = vunpack.c.l.b16 %v274
      %v1652 = vunpack.c.l.b16 %v275
      %v1653 = vunpack.c.l.b16 %v276
      %v1654 = vunpack.c.l.b16 %v277
      %v1655 = vunpack.c.l.b16 %v278
      %v1656 = vunpack.c.l.b16 %v279
      %v1657 = vunpack.c.l.b16 %v280
      %v1658 = vunpack.c.l.b16 %v281
      %v1659 = vunpack.c.l.b16 %v282
      %v1660 = vunpack.c.l.b16 %v283
      %v1661 = vunpack.c.l.b16 %v284
      %v1662 = vunpack.c.l.b16 %v285
      %v1663 = vunpack.c.l.b16 %v286
      %v1664 = vunpack.c.l.b16 %v287
      %v1665 = vunpack.c.l.b16 %v288
      %v1666 = vpack.c.b16 %v1635, %v1634
      %v1667 = vpack.c.b16 %v1637, %v1636
      %v1668 = vpack.c.b16 %v1639, %v1638
      %v1669 = vpack.c.b16 %v1641, %v1640
      %v1670 = vpack.c.b16 %v1643, %v1642
      %v1671 = vpack.c.b16 %v1645, %v1644
      %v1672 = vpack.c.b16 %v1647, %v1646
      %v1673 = vpack.c.b16 %v1649, %v1648
      %v1674 = vpack.c.b16 %v1651, %v1650
      %v1675 = vpack.c.b16 %v1653, %v1652
      %v1676 = vpack.c.b16 %v1655, %v1654
      %v1677 = vpack.c.b16 %v1657, %v1656
      %v1678 = vpack.c.b16 %v1659, %v1658
      %v1679 = vpack.c.b16 %v1661, %v1660
      %v1680 = vpack.c.b16 %v1663, %v1662
      %v1681 = vpack.c.b16 %v1665, %v1664
      %1682 = vrot.lane.b32.xlu0 %v1666, 96
      %v1683 = vpop.permute.xlu0 %1682
      %1684 = vrot.lane.b32.xlu0 %v1667, 96
      %v1685 = vpop.permute.xlu0 %1684
      %1686 = vrot.lane.b32.xlu0 %v1668, 96
      %v1687 = vpop.permute.xlu0 %1686
      %1688 = vrot.lane.b32.xlu0 %v1669, 96
      %v1689 = vpop.permute.xlu0 %1688
      %1690 = vrot.lane.b32.xlu0 %v1670, 96
      %v1691 = vpop.permute.xlu0 %1690
      %1692 = vrot.lane.b32.xlu0 %v1671, 96
      %v1693 = vpop.permute.xlu0 %1692
      %1694 = vrot.lane.b32.xlu0 %v1672, 96
      %v1695 = vpop.permute.xlu0 %1694
      %1696 = vrot.lane.b32.xlu0 %v1673, 96
      %v1697 = vpop.permute.xlu0 %1696
      %1698 = vrot.lane.b32.xlu0 %v1674, 96
      %v1699 = vpop.permute.xlu0 %1698
      %1700 = vrot.lane.b32.xlu0 %v1675, 96
      %v1701 = vpop.permute.xlu0 %1700
      %1702 = vrot.lane.b32.xlu0 %v1676, 96
      %v1703 = vpop.permute.xlu0 %1702
      %1704 = vrot.lane.b32.xlu0 %v1677, 96
      %v1705 = vpop.permute.xlu0 %1704
      %1706 = vrot.lane.b32.xlu0 %v1678, 96
      %v1707 = vpop.permute.xlu0 %1706
      %1708 = vrot.lane.b32.xlu0 %v1679, 96
      %v1709 = vpop.permute.xlu0 %1708
      %1710 = vrot.lane.b32.xlu0 %v1680, 96
      %v1711 = vpop.permute.xlu0 %1710
      %1712 = vrot.lane.b32.xlu0 %v1681, 96
      %v1713 = vpop.permute.xlu0 %1712
      %vm1714 = vcmask 261120
      %v1716 = vsel %vm1714, %v1586, 0
      %v1719 = vsel %vm1714, %v1587, 0
      %v1722 = vsel %vm1714, %v1588, 0
      %v1725 = vsel %vm1714, %v1589, 0
      %v1728 = vsel %vm1714, %v1590, 0
      %v1731 = vsel %vm1714, %v1591, 0
      %v1734 = vsel %vm1714, %v1592, 0
      %v1737 = vsel %vm1714, %v1593, 0
      %v1740 = vsel %vm1714, %v1594, 0
      %v1743 = vsel %vm1714, %v1595, 0
      %v1746 = vsel %vm1714, %v1596, 0
      %v1749 = vsel %vm1714, %v1597, 0
      %v1752 = vsel %vm1714, %v1598, 0
      %v1755 = vsel %vm1714, %v1599, 0
      %v1758 = vsel %vm1714, %v1600, 0
      %v1761 = vsel %vm1714, %v1601, 0
      %v1764 = vsel %vm1714, %v1683, 0
      %v1767 = vsel %vm1714, %v1685, 0
      %v1770 = vsel %vm1714, %v1687, 0
      %v1773 = vsel %vm1714, %v1689, 0
      %v1776 = vsel %vm1714, %v1691, 0
      %v1779 = vsel %vm1714, %v1693, 0
      %v1782 = vsel %vm1714, %v1695, 0
      %v1785 = vsel %vm1714, %v1697, 0
      %v1788 = vsel %vm1714, %v1699, 0
      %v1791 = vsel %vm1714, %v1701, 0
      %v1794 = vsel %vm1714, %v1703, 0
      %v1797 = vsel %vm1714, %v1705, 0
      %v1800 = vsel %vm1714, %v1707, 0
      %v1803 = vsel %vm1714, %v1709, 0
      %v1806 = vsel %vm1714, %v1711, 0
      %v1809 = vsel %vm1714, %v1713, 0
      %1811 = vmatprep.subr.bf16.mxu0 0
      %1812 = vmatpush1.bf16.xpose.msra.mxu0 %v1785
      %1813 = vmatprep.subr.bf16.mxu0 0
      %1814 = vmatpush1.bf16.xpose.msra.mxu0 %v1782
      %1815 = vmatprep.subr.bf16.mxu0 0
      %1816 = vmatpush1.bf16.xpose.msra.mxu0 %v1779
      %1817 = vmatprep.subr.bf16.mxu0 0
      %1818 = vmatpush1.bf16.xpose.msra.mxu0 %v1776
      %1819 = vmatprep.subr.bf16.mxu0 0
      %1820 = vmatpush1.bf16.xpose.msra.mxu0 %v1773
      %1821 = vmatprep.subr.bf16.mxu0 0
      %1822 = vmatpush1.bf16.xpose.msra.mxu0 %v1770
      %1823 = vmatprep.subr.bf16.mxu0 0
      %1824 = vmatpush1.bf16.xpose.msra.mxu0 %v1767
      %1825 = vmatprep.subr.bf16.mxu0 0
      %1826 = vmatpush1.bf16.xpose.msra.mxu0 %v1764
      %1827 = vmatprep.subr.bf16.mxu0 0
      %1828 = vmatpush2.bf16.xpose.msra.mxu0 %v1809
      %1829 = vmatprep.subr.bf16.mxu0 0
      %1830 = vmatpush2.bf16.xpose.msra.mxu0 %v1806
      %1831 = vmatprep.subr.bf16.mxu0 0
      %1832 = vmatpush2.bf16.xpose.msra.mxu0 %v1803
      %1833 = vmatprep.subr.bf16.mxu0 0
      %1834 = vmatpush2.bf16.xpose.msra.mxu0 %v1800
      %1835 = vmatprep.subr.bf16.mxu0 0
      %1836 = vmatpush2.bf16.xpose.msra.mxu0 %v1797
      %1837 = vmatprep.subr.bf16.mxu0 0
      %1838 = vmatpush2.bf16.xpose.msra.mxu0 %v1794
      %1839 = vmatprep.subr.bf16.mxu0 0
      %1840 = vmatpush2.bf16.xpose.msra.mxu0 %v1791
      %1841 = vmatprep.subr.bf16.mxu0 0
      %1842 = vmatpush2.bf16.xpose.msra.mxu0 %v1788
      %1843 = vmatprep.mubr.bf16.mxu0 0
      %1844 = vmatmul.mubr.bf16.gmra.mxu0 %v1716
      %v1845 = vpop.f32.mrf.mxu0
      %v1846 = vadd.f32 0.0, %v1845
      %v1847 = vpop.f32.mrf.mxu0
      %v1848 = vadd.f32 0.0, %v1847
      %v1849 = vpop.f32.mrf.mxu0
      %v1850 = vadd.f32 0.0, %v1849
      %v1851 = vpop.f32.mrf.mxu0
      %v1852 = vadd.f32 0.0, %v1851
      %1853 = vmatprep.mubr.bf16.mxu0 0
      %1854 = vmatmul.mubr.bf16.gmra.mxu0 %v1719
      %v1855 = vpop.f32.mrf.mxu0
      %v1856 = vadd.f32 0.0, %v1855
      %v1857 = vpop.f32.mrf.mxu0
      %v1858 = vadd.f32 0.0, %v1857
      %v1859 = vpop.f32.mrf.mxu0
      %v1860 = vadd.f32 0.0, %v1859
      %v1861 = vpop.f32.mrf.mxu0
      %v1862 = vadd.f32 0.0, %v1861
      %1863 = vmatprep.mubr.bf16.mxu0 0
      %1864 = vmatmul.mubr.bf16.gmra.mxu0 %v1722
      %v1865 = vpop.f32.mrf.mxu0
      %v1866 = vadd.f32 0.0, %v1865
      %v1867 = vpop.f32.mrf.mxu0
      %v1868 = vadd.f32 0.0, %v1867
      %v1869 = vpop.f32.mrf.mxu0
      %v1870 = vadd.f32 0.0, %v1869
      %v1871 = vpop.f32.mrf.mxu0
      %v1872 = vadd.f32 0.0, %v1871
      %1873 = vmatprep.mubr.bf16.mxu0 0
      %1874 = vmatmul.mubr.bf16.gmra.mxu0 %v1725
      %v1875 = vpop.f32.mrf.mxu0
      %v1876 = vadd.f32 0.0, %v1875
      %v1877 = vpop.f32.mrf.mxu0
      %v1878 = vadd.f32 0.0, %v1877
      %v1879 = vpop.f32.mrf.mxu0
      %v1880 = vadd.f32 0.0, %v1879
      %v1881 = vpop.f32.mrf.mxu0
      %v1882 = vadd.f32 0.0, %v1881
      %1883 = vmatprep.mubr.bf16.mxu0 0
      %1884 = vmatmul.mubr.bf16.gmra.mxu0 %v1728
      %v1885 = vpop.f32.mrf.mxu0
      %v1886 = vadd.f32 0.0, %v1885
      %v1887 = vpop.f32.mrf.mxu0
      %v1888 = vadd.f32 0.0, %v1887
      %v1889 = vpop.f32.mrf.mxu0
      %v1890 = vadd.f32 0.0, %v1889
      %v1891 = vpop.f32.mrf.mxu0
      %v1892 = vadd.f32 0.0, %v1891
      %1893 = vmatprep.mubr.bf16.mxu0 0
      %1894 = vmatmul.mubr.bf16.gmra.mxu0 %v1731
      %v1895 = vpop.f32.mrf.mxu0
      %v1896 = vadd.f32 0.0, %v1895
      %v1897 = vpop.f32.mrf.mxu0
      %v1898 = vadd.f32 0.0, %v1897
      %v1899 = vpop.f32.mrf.mxu0
      %v1900 = vadd.f32 0.0, %v1899
      %v1901 = vpop.f32.mrf.mxu0
      %v1902 = vadd.f32 0.0, %v1901
      %1903 = vmatprep.mubr.bf16.mxu0 0
      %1904 = vmatmul.mubr.bf16.gmra.mxu0 %v1734
      %v1905 = vpop.f32.mrf.mxu0
      %v1906 = vadd.f32 0.0, %v1905
      %v1907 = vpop.f32.mrf.mxu0
      %v1908 = vadd.f32 0.0, %v1907
      %v1909 = vpop.f32.mrf.mxu0
      %v1910 = vadd.f32 0.0, %v1909
      %v1911 = vpop.f32.mrf.mxu0
      %v1912 = vadd.f32 0.0, %v1911
      %1913 = vmatprep.mubr.bf16.mxu0 0
      %1914 = vmatmul.mubr.bf16.gmra.mxu0 %v1737
      %v1915 = vpop.f32.mrf.mxu0
      %v1916 = vadd.f32 0.0, %v1915
      %v1917 = vpop.f32.mrf.mxu0
      %v1918 = vadd.f32 0.0, %v1917
      %v1919 = vpop.f32.mrf.mxu0
      %v1920 = vadd.f32 0.0, %v1919
      %v1921 = vpop.f32.mrf.mxu0
      %v1922 = vadd.f32 0.0, %v1921
      %1923 = vmatprep.mubr.bf16.mxu0 0
      %1924 = vmatmul.mubr.bf16.gmra.mxu0 %v1740
      %v1925 = vpop.f32.mrf.mxu0
      %v1926 = vadd.f32 0.0, %v1925
      %v1927 = vpop.f32.mrf.mxu0
      %v1928 = vadd.f32 0.0, %v1927
      %v1929 = vpop.f32.mrf.mxu0
      %v1930 = vadd.f32 0.0, %v1929
      %v1931 = vpop.f32.mrf.mxu0
      %v1932 = vadd.f32 0.0, %v1931
      %1933 = vmatprep.mubr.bf16.mxu0 0
      %1934 = vmatmul.mubr.bf16.gmra.mxu0 %v1743
      %v1935 = vpop.f32.mrf.mxu0
      %v1936 = vadd.f32 0.0, %v1935
      %v1937 = vpop.f32.mrf.mxu0
      %v1938 = vadd.f32 0.0, %v1937
      %v1939 = vpop.f32.mrf.mxu0
      %v1940 = vadd.f32 0.0, %v1939
      %v1941 = vpop.f32.mrf.mxu0
      %v1942 = vadd.f32 0.0, %v1941
      %1943 = vmatprep.mubr.bf16.mxu0 0
      %1944 = vmatmul.mubr.bf16.gmra.mxu0 %v1746
      %v1945 = vpop.f32.mrf.mxu0
      %v1946 = vadd.f32 0.0, %v1945
      %v1947 = vpop.f32.mrf.mxu0
      %v1948 = vadd.f32 0.0, %v1947
      %v1949 = vpop.f32.mrf.mxu0
      %v1950 = vadd.f32 0.0, %v1949
      %v1951 = vpop.f32.mrf.mxu0
      %v1952 = vadd.f32 0.0, %v1951
      %1953 = vmatprep.mubr.bf16.mxu0 0
      %1954 = vmatmul.mubr.bf16.gmra.mxu0 %v1749
      %v1955 = vpop.f32.mrf.mxu0
      %v1956 = vadd.f32 0.0, %v1955
      %v1957 = vpop.f32.mrf.mxu0
      %v1958 = vadd.f32 0.0, %v1957
      %v1959 = vpop.f32.mrf.mxu0
      %v1960 = vadd.f32 0.0, %v1959
      %v1961 = vpop.f32.mrf.mxu0
      %v1962 = vadd.f32 0.0, %v1961
      %1963 = vmatprep.mubr.bf16.mxu0 0
      %1964 = vmatmul.mubr.bf16.gmra.mxu0 %v1752
      %v1965 = vpop.f32.mrf.mxu0
      %v1966 = vadd.f32 0.0, %v1965
      %v1967 = vpop.f32.mrf.mxu0
      %v1968 = vadd.f32 0.0, %v1967
      %v1969 = vpop.f32.mrf.mxu0
      %v1970 = vadd.f32 0.0, %v1969
      %v1971 = vpop.f32.mrf.mxu0
      %v1972 = vadd.f32 0.0, %v1971
      %1973 = vmatprep.mubr.bf16.mxu0 0
      %1974 = vmatmul.mubr.bf16.gmra.mxu0 %v1755
      %v1975 = vpop.f32.mrf.mxu0
      %v1976 = vadd.f32 0.0, %v1975
      %v1977 = vpop.f32.mrf.mxu0
      %v1978 = vadd.f32 0.0, %v1977
      %v1979 = vpop.f32.mrf.mxu0
      %v1980 = vadd.f32 0.0, %v1979
      %v1981 = vpop.f32.mrf.mxu0
      %v1982 = vadd.f32 0.0, %v1981
      %1983 = vmatprep.mubr.bf16.mxu0 0
      %1984 = vmatmul.mubr.bf16.gmra.mxu0 %v1758
      %v1985 = vpop.f32.mrf.mxu0
      %v1986 = vadd.f32 0.0, %v1985
      %v1987 = vpop.f32.mrf.mxu0
      %v1988 = vadd.f32 0.0, %v1987
      %v1989 = vpop.f32.mrf.mxu0
      %v1990 = vadd.f32 0.0, %v1989
      %v1991 = vpop.f32.mrf.mxu0
      %v1992 = vadd.f32 0.0, %v1991
      %1993 = vmatprep.mubr.bf16.mxu0 0
      %1994 = vmatmul.mubr.bf16.gmra.mxu0 %v1761
      %v1995 = vpop.f32.mrf.mxu0
      %v1996 = vadd.f32 0.0, %v1995
      %v1997 = vpop.f32.mrf.mxu0
      %v1998 = vadd.f32 0.0, %v1997
      %v1999 = vpop.f32.mrf.mxu0
      %v2000 = vadd.f32 0.0, %v1999
      %v2001 = vpop.f32.mrf.mxu0
      %v2002 = vadd.f32 0.0, %v2001
      %2003 = vdwg.mxu0
      %v2004 = vmax.f32 %v1846, %v1848
      %2005 = vmax.xlane.f32.xlu0 %v2004
      %v2006 = vpop.xlane.xlu0 %2005
      %v2007 = vmax.f32 %v1850, %v1852
      %2008 = vmax.xlane.f32.xlu0 %v2007
      %v2009 = vpop.xlane.xlu0 %2008
      %v2010 = vmax.f32 %v1856, %v1858
      %2011 = vmax.xlane.f32.xlu0 %v2010
      %v2012 = vpop.xlane.xlu0 %2011
      %v2013 = vmax.f32 %v1860, %v1862
      %2014 = vmax.xlane.f32.xlu0 %v2013
      %v2015 = vpop.xlane.xlu0 %2014
      %v2016 = vmax.f32 %v1866, %v1868
      %2017 = vmax.xlane.f32.xlu0 %v2016
      %v2018 = vpop.xlane.xlu0 %2017
      %v2019 = vmax.f32 %v1870, %v1872
      %2020 = vmax.xlane.f32.xlu0 %v2019
      %v2021 = vpop.xlane.xlu0 %2020
      %v2022 = vmax.f32 %v1876, %v1878
      %2023 = vmax.xlane.f32.xlu0 %v2022
      %v2024 = vpop.xlane.xlu0 %2023
      %v2025 = vmax.f32 %v1880, %v1882
      %2026 = vmax.xlane.f32.xlu0 %v2025
      %v2027 = vpop.xlane.xlu0 %2026
      %v2028 = vmax.f32 %v1886, %v1888
      %2029 = vmax.xlane.f32.xlu0 %v2028
      %v2030 = vpop.xlane.xlu0 %2029
      %v2031 = vmax.f32 %v1890, %v1892
      %2032 = vmax.xlane.f32.xlu0 %v2031
      %v2033 = vpop.xlane.xlu0 %2032
      %v2034 = vmax.f32 %v1896, %v1898
      %2035 = vmax.xlane.f32.xlu0 %v2034
      %v2036 = vpop.xlane.xlu0 %2035
      %v2037 = vmax.f32 %v1900, %v1902
      %2038 = vmax.xlane.f32.xlu0 %v2037
      %v2039 = vpop.xlane.xlu0 %2038
      %v2040 = vmax.f32 %v1906, %v1908
      %2041 = vmax.xlane.f32.xlu0 %v2040
      %v2042 = vpop.xlane.xlu0 %2041
      %v2043 = vmax.f32 %v1910, %v1912
      %2044 = vmax.xlane.f32.xlu0 %v2043
      %v2045 = vpop.xlane.xlu0 %2044
      %v2046 = vmax.f32 %v1916, %v1918
      %2047 = vmax.xlane.f32.xlu0 %v2046
      %v2048 = vpop.xlane.xlu0 %2047
      %v2049 = vmax.f32 %v1920, %v1922
      %2050 = vmax.xlane.f32.xlu0 %v2049
      %v2051 = vpop.xlane.xlu0 %2050
      %v2052 = vmax.f32 %v1926, %v1928
      %2053 = vmax.xlane.f32.xlu0 %v2052
      %v2054 = vpop.xlane.xlu0 %2053
      %v2055 = vmax.f32 %v1930, %v1932
      %2056 = vmax.xlane.f32.xlu0 %v2055
      %v2057 = vpop.xlane.xlu0 %2056
      %v2058 = vmax.f32 %v1936, %v1938
      %2059 = vmax.xlane.f32.xlu0 %v2058
      %v2060 = vpop.xlane.xlu0 %2059
      %v2061 = vmax.f32 %v1940, %v1942
      %2062 = vmax.xlane.f32.xlu0 %v2061
      %v2063 = vpop.xlane.xlu0 %2062
      %v2064 = vmax.f32 %v1946, %v1948
      %2065 = vmax.xlane.f32.xlu0 %v2064
      %v2066 = vpop.xlane.xlu0 %2065
      %v2067 = vmax.f32 %v1950, %v1952
      %2068 = vmax.xlane.f32.xlu0 %v2067
      %v2069 = vpop.xlane.xlu0 %2068
      %v2070 = vmax.f32 %v1956, %v1958
      %2071 = vmax.xlane.f32.xlu0 %v2070
      %v2072 = vpop.xlane.xlu0 %2071
      %v2073 = vmax.f32 %v1960, %v1962
      %2074 = vmax.xlane.f32.xlu0 %v2073
      %v2075 = vpop.xlane.xlu0 %2074
      %v2076 = vmax.f32 %v1966, %v1968
      %2077 = vmax.xlane.f32.xlu0 %v2076
      %v2078 = vpop.xlane.xlu0 %2077
      %v2079 = vmax.f32 %v1970, %v1972
      %2080 = vmax.xlane.f32.xlu0 %v2079
      %v2081 = vpop.xlane.xlu0 %2080
      %v2082 = vmax.f32 %v1976, %v1978
      %2083 = vmax.xlane.f32.xlu0 %v2082
      %v2084 = vpop.xlane.xlu0 %2083
      %v2085 = vmax.f32 %v1980, %v1982
      %2086 = vmax.xlane.f32.xlu0 %v2085
      %v2087 = vpop.xlane.xlu0 %2086
      %v2088 = vmax.f32 %v1986, %v1988
      %2089 = vmax.xlane.f32.xlu0 %v2088
      %v2090 = vpop.xlane.xlu0 %2089
      %v2091 = vmax.f32 %v1990, %v1992
      %2092 = vmax.xlane.f32.xlu0 %v2091
      %v2093 = vpop.xlane.xlu0 %2092
      %v2094 = vmax.f32 %v1996, %v1998
      %2095 = vmax.xlane.f32.xlu0 %v2094
      %v2096 = vpop.xlane.xlu0 %2095
      %v2097 = vmax.f32 %v2000, %v2002
      %2098 = vmax.xlane.f32.xlu0 %v2097
      %v2099 = vpop.xlane.xlu0 %2098
      %v2100 = vsub.f32 %v1846, %v2006
      %v2101 = vsub.f32 %v1848, %v2006
      %v2102 = vsub.f32 %v1850, %v2009
      %v2103 = vsub.f32 %v1852, %v2009
      %v2104 = vsub.f32 %v1856, %v2012
      %v2105 = vsub.f32 %v1858, %v2012
      %v2106 = vsub.f32 %v1860, %v2015
      %v2107 = vsub.f32 %v1862, %v2015
      %v2108 = vsub.f32 %v1866, %v2018
      %v2109 = vsub.f32 %v1868, %v2018
      %v2110 = vsub.f32 %v1870, %v2021
      %v2111 = vsub.f32 %v1872, %v2021
      %v2112 = vsub.f32 %v1876, %v2024
      %v2113 = vsub.f32 %v1878, %v2024
      %v2114 = vsub.f32 %v1880, %v2027
      %v2115 = vsub.f32 %v1882, %v2027
      %v2116 = vsub.f32 %v1886, %v2030
      %v2117 = vsub.f32 %v1888, %v2030
      %v2118 = vsub.f32 %v1890, %v2033
      %v2119 = vsub.f32 %v1892, %v2033
      %v2120 = vsub.f32 %v1896, %v2036
      %v2121 = vsub.f32 %v1898, %v2036
      %v2122 = vsub.f32 %v1900, %v2039
      %v2123 = vsub.f32 %v1902, %v2039
      %v2124 = vsub.f32 %v1906, %v2042
      %v2125 = vsub.f32 %v1908, %v2042
      %v2126 = vsub.f32 %v1910, %v2045
      %v2127 = vsub.f32 %v1912, %v2045
      %v2128 = vsub.f32 %v1916, %v2048
      %v2129 = vsub.f32 %v1918, %v2048
      %v2130 = vsub.f32 %v1920, %v2051
      %v2131 = vsub.f32 %v1922, %v2051
      %v2132 = vsub.f32 %v1926, %v2054
      %v2133 = vsub.f32 %v1928, %v2054
      %v2134 = vsub.f32 %v1930, %v2057
      %v2135 = vsub.f32 %v1932, %v2057
      %v2136 = vsub.f32 %v1936, %v2060
      %v2137 = vsub.f32 %v1938, %v2060
      %v2138 = vsub.f32 %v1940, %v2063
      %v2139 = vsub.f32 %v1942, %v2063
      %v2140 = vsub.f32 %v1946, %v2066
      %v2141 = vsub.f32 %v1948, %v2066
      %v2142 = vsub.f32 %v1950, %v2069
      %v2143 = vsub.f32 %v1952, %v2069
      %v2144 = vsub.f32 %v1956, %v2072
      %v2145 = vsub.f32 %v1958, %v2072
      %v2146 = vsub.f32 %v1960, %v2075
      %v2147 = vsub.f32 %v1962, %v2075
      %v2148 = vsub.f32 %v1966, %v2078
      %v2149 = vsub.f32 %v1968, %v2078
      %v2150 = vsub.f32 %v1970, %v2081
      %v2151 = vsub.f32 %v1972, %v2081
      %v2152 = vsub.f32 %v1976, %v2084
      %v2153 = vsub.f32 %v1978, %v2084
      %v2154 = vsub.f32 %v1980, %v2087
      %v2155 = vsub.f32 %v1982, %v2087
      %v2156 = vsub.f32 %v1986, %v2090
      %v2157 = vsub.f32 %v1988, %v2090
      %v2158 = vsub.f32 %v1990, %v2093
      %v2159 = vsub.f32 %v1992, %v2093
      %v2160 = vsub.f32 %v1996, %v2096
      %v2161 = vsub.f32 %v1998, %v2096
      %v2162 = vsub.f32 %v2000, %v2099
      %v2163 = vsub.f32 %v2002, %v2099
      %v2164 = vmul.f32 %v2100, 1.442695
      %v2165 = vpow.pop %v2164
      %v2166 = vmul.f32 %v2101, 1.442695
      %v2167 = vpow.pop %v2166
      %v2168 = vmul.f32 %v2102, 1.442695
      %v2169 = vpow.pop %v2168
      %v2170 = vmul.f32 %v2103, 1.442695
      %v2171 = vpow.pop %v2170
      %v2172 = vmul.f32 %v2104, 1.442695
      %v2173 = vpow.pop %v2172
      %v2174 = vmul.f32 %v2105, 1.442695
      %v2175 = vpow.pop %v2174
      %v2176 = vmul.f32 %v2106, 1.442695
      %v2177 = vpow.pop %v2176
      %v2178 = vmul.f32 %v2107, 1.442695
      %v2179 = vpow.pop %v2178
      %v2180 = vmul.f32 %v2108, 1.442695
      %v2181 = vpow.pop %v2180
      %v2182 = vmul.f32 %v2109, 1.442695
      %v2183 = vpow.pop %v2182
      %v2184 = vmul.f32 %v2110, 1.442695
      %v2185 = vpow.pop %v2184
      %v2186 = vmul.f32 %v2111, 1.442695
      %v2187 = vpow.pop %v2186
      %v2188 = vmul.f32 %v2112, 1.442695
      %v2189 = vpow.pop %v2188
      %v2190 = vmul.f32 %v2113, 1.442695
      %v2191 = vpow.pop %v2190
      %v2192 = vmul.f32 %v2114, 1.442695
      %v2193 = vpow.pop %v2192
      %v2194 = vmul.f32 %v2115, 1.442695
      %v2195 = vpow.pop %v2194
      %v2196 = vmul.f32 %v2116, 1.442695
      %v2197 = vpow.pop %v2196
      %v2198 = vmul.f32 %v2117, 1.442695
      %v2199 = vpow.pop %v2198
      %v2200 = vmul.f32 %v2118, 1.442695
      %v2201 = vpow.pop %v2200
      %v2202 = vmul.f32 %v2119, 1.442695
      %v2203 = vpow.pop %v2202
      %v2204 = vmul.f32 %v2120, 1.442695
      %v2205 = vpow.pop %v2204
      %v2206 = vmul.f32 %v2121, 1.442695
      %v2207 = vpow.pop %v2206
      %v2208 = vmul.f32 %v2122, 1.442695
      %v2209 = vpow.pop %v2208
      %v2210 = vmul.f32 %v2123, 1.442695
      %v2211 = vpow.pop %v2210
      %v2212 = vmul.f32 %v2124, 1.442695
      %v2213 = vpow.pop %v2212
      %v2214 = vmul.f32 %v2125, 1.442695
      %v2215 = vpow.pop %v2214
      %v2216 = vmul.f32 %v2126, 1.442695
      %v2217 = vpow.pop %v2216
      %v2218 = vmul.f32 %v2127, 1.442695
      %v2219 = vpow.pop %v2218
      %v2220 = vmul.f32 %v2128, 1.442695
      %v2221 = vpow.pop %v2220
      %v2222 = vmul.f32 %v2129, 1.442695
      %v2223 = vpow.pop %v2222
      %v2224 = vmul.f32 %v2130, 1.442695
      %v2225 = vpow.pop %v2224
      %v2226 = vmul.f32 %v2131, 1.442695
      %v2227 = vpow.pop %v2226
      %v2228 = vmul.f32 %v2132, 1.442695
      %v2229 = vpow.pop %v2228
      %v2230 = vmul.f32 %v2133, 1.442695
      %v2231 = vpow.pop %v2230
      %v2232 = vmul.f32 %v2134, 1.442695
      %v2233 = vpow.pop %v2232
      %v2234 = vmul.f32 %v2135, 1.442695
      %v2235 = vpow.pop %v2234
      %v2236 = vmul.f32 %v2136, 1.442695
      %v2237 = vpow.pop %v2236
      %v2238 = vmul.f32 %v2137, 1.442695
      %v2239 = vpow.pop %v2238
      %v2240 = vmul.f32 %v2138, 1.442695
      %v2241 = vpow.pop %v2240
      %v2242 = vmul.f32 %v2139, 1.442695
      %v2243 = vpow.pop %v2242
      %v2244 = vmul.f32 %v2140, 1.442695
      %v2245 = vpow.pop %v2244
      %v2246 = vmul.f32 %v2141, 1.442695
      %v2247 = vpow.pop %v2246
      %v2248 = vmul.f32 %v2142, 1.442695
      %v2249 = vpow.pop %v2248
      %v2250 = vmul.f32 %v2143, 1.442695
      %v2251 = vpow.pop %v2250
      %v2252 = vmul.f32 %v2144, 1.442695
      %v2253 = vpow.pop %v2252
      %v2254 = vmul.f32 %v2145, 1.442695
      %v2255 = vpow.pop %v2254
      %v2256 = vmul.f32 %v2146, 1.442695
      %v2257 = vpow.pop %v2256
      %v2258 = vmul.f32 %v2147, 1.442695
      %v2259 = vpow.pop %v2258
      %v2260 = vmul.f32 %v2148, 1.442695
      %v2261 = vpow.pop %v2260
      %v2262 = vmul.f32 %v2149, 1.442695
      %v2263 = vpow.pop %v2262
      %v2264 = vmul.f32 %v2150, 1.442695
      %v2265 = vpow.pop %v2264
      %v2266 = vmul.f32 %v2151, 1.442695
      %v2267 = vpow.pop %v2266
      %v2268 = vmul.f32 %v2152, 1.442695
      %v2269 = vpow.pop %v2268
      %v2270 = vmul.f32 %v2153, 1.442695
      %v2271 = vpow.pop %v2270
      %v2272 = vmul.f32 %v2154, 1.442695
      %v2273 = vpow.pop %v2272
      %v2274 = vmul.f32 %v2155, 1.442695
      %v2275 = vpow.pop %v2274
      %v2276 = vmul.f32 %v2156, 1.442695
      %v2277 = vpow.pop %v2276
      %v2278 = vmul.f32 %v2157, 1.442695
      %v2279 = vpow.pop %v2278
      %v2280 = vmul.f32 %v2158, 1.442695
      %v2281 = vpow.pop %v2280
      %v2282 = vmul.f32 %v2159, 1.442695
      %v2283 = vpow.pop %v2282
      %v2284 = vmul.f32 %v2160, 1.442695
      %v2285 = vpow.pop %v2284
      %v2286 = vmul.f32 %v2161, 1.442695
      %v2287 = vpow.pop %v2286
      %v2288 = vmul.f32 %v2162, 1.442695
      %v2289 = vpow.pop %v2288
      %v2290 = vmul.f32 %v2163, 1.442695
      %v2291 = vpow.pop %v2290
      %v2292 = vadd.f32 %v2165, %v2167
      %2293 = vadd.xlane.f32.xlu0 %v2292
      %v2294 = vpop.xlane.xlu0 %2293
      %v2295 = vadd.f32 %v2169, %v2171
      %2296 = vadd.xlane.f32.xlu0 %v2295
      %v2297 = vpop.xlane.xlu0 %2296
      %v2298 = vadd.f32 %v2173, %v2175
      %2299 = vadd.xlane.f32.xlu0 %v2298
      %v2300 = vpop.xlane.xlu0 %2299
      %v2301 = vadd.f32 %v2177, %v2179
      %2302 = vadd.xlane.f32.xlu0 %v2301
      %v2303 = vpop.xlane.xlu0 %2302
      %v2304 = vadd.f32 %v2181, %v2183
      %2305 = vadd.xlane.f32.xlu0 %v2304
      %v2306 = vpop.xlane.xlu0 %2305
      %v2307 = vadd.f32 %v2185, %v2187
      %2308 = vadd.xlane.f32.xlu0 %v2307
      %v2309 = vpop.xlane.xlu0 %2308
      %v2310 = vadd.f32 %v2189, %v2191
      %2311 = vadd.xlane.f32.xlu0 %v2310
      %v2312 = vpop.xlane.xlu0 %2311
      %v2313 = vadd.f32 %v2193, %v2195
      %2314 = vadd.xlane.f32.xlu0 %v2313
      %v2315 = vpop.xlane.xlu0 %2314
      %v2316 = vadd.f32 %v2197, %v2199
      %2317 = vadd.xlane.f32.xlu0 %v2316
      %v2318 = vpop.xlane.xlu0 %2317
      %v2319 = vadd.f32 %v2201, %v2203
      %2320 = vadd.xlane.f32.xlu0 %v2319
      %v2321 = vpop.xlane.xlu0 %2320
      %v2322 = vadd.f32 %v2205, %v2207
      %2323 = vadd.xlane.f32.xlu0 %v2322
      %v2324 = vpop.xlane.xlu0 %2323
      %v2325 = vadd.f32 %v2209, %v2211
      %2326 = vadd.xlane.f32.xlu0 %v2325
      %v2327 = vpop.xlane.xlu0 %2326
      %v2328 = vadd.f32 %v2213, %v2215
      %2329 = vadd.xlane.f32.xlu0 %v2328
      %v2330 = vpop.xlane.xlu0 %2329
      %v2331 = vadd.f32 %v2217, %v2219
      %2332 = vadd.xlane.f32.xlu0 %v2331
      %v2333 = vpop.xlane.xlu0 %2332
      %v2334 = vadd.f32 %v2221, %v2223
      %2335 = vadd.xlane.f32.xlu0 %v2334
      %v2336 = vpop.xlane.xlu0 %2335
      %v2337 = vadd.f32 %v2225, %v2227
      %2338 = vadd.xlane.f32.xlu0 %v2337
      %v2339 = vpop.xlane.xlu0 %2338
      %v2340 = vadd.f32 %v2229, %v2231
      %2341 = vadd.xlane.f32.xlu0 %v2340
      %v2342 = vpop.xlane.xlu0 %2341
      %v2343 = vadd.f32 %v2233, %v2235
      %2344 = vadd.xlane.f32.xlu0 %v2343
      %v2345 = vpop.xlane.xlu0 %2344
      %v2346 = vadd.f32 %v2237, %v2239
      %2347 = vadd.xlane.f32.xlu0 %v2346
      %v2348 = vpop.xlane.xlu0 %2347
      %v2349 = vadd.f32 %v2241, %v2243
      %2350 = vadd.xlane.f32.xlu0 %v2349
      %v2351 = vpop.xlane.xlu0 %2350
      %v2352 = vadd.f32 %v2245, %v2247
      %2353 = vadd.xlane.f32.xlu0 %v2352
      %v2354 = vpop.xlane.xlu0 %2353
      %v2355 = vadd.f32 %v2249, %v2251
      %2356 = vadd.xlane.f32.xlu0 %v2355
      %v2357 = vpop.xlane.xlu0 %2356
      %v2358 = vadd.f32 %v2253, %v2255
      %2359 = vadd.xlane.f32.xlu0 %v2358
      %v2360 = vpop.xlane.xlu0 %2359
      %v2361 = vadd.f32 %v2257, %v2259
      %2362 = vadd.xlane.f32.xlu0 %v2361
      %v2363 = vpop.xlane.xlu0 %2362
      %v2364 = vadd.f32 %v2261, %v2263
      %2365 = vadd.xlane.f32.xlu0 %v2364
      %v2366 = vpop.xlane.xlu0 %2365
      %v2367 = vadd.f32 %v2265, %v2267
      %2368 = vadd.xlane.f32.xlu0 %v2367
      %v2369 = vpop.xlane.xlu0 %2368
      %v2370 = vadd.f32 %v2269, %v2271
      %2371 = vadd.xlane.f32.xlu0 %v2370
      %v2372 = vpop.xlane.xlu0 %2371
      %v2373 = vadd.f32 %v2273, %v2275
      %2374 = vadd.xlane.f32.xlu0 %v2373
      %v2375 = vpop.xlane.xlu0 %2374
      %v2376 = vadd.f32 %v2277, %v2279
      %2377 = vadd.xlane.f32.xlu0 %v2376
      %v2378 = vpop.xlane.xlu0 %2377
      %v2379 = vadd.f32 %v2281, %v2283
      %2380 = vadd.xlane.f32.xlu0 %v2379
      %v2381 = vpop.xlane.xlu0 %2380
      %v2382 = vadd.f32 %v2285, %v2287
      %2383 = vadd.xlane.f32.xlu0 %v2382
      %v2384 = vpop.xlane.xlu0 %2383
      %v2385 = vadd.f32 %v2289, %v2291
      %2386 = vadd.xlane.f32.xlu0 %v2385
      %v2387 = vpop.xlane.xlu0 %2386
      %v2388 = vrcp.pop %v2294
      %v2389 = vrcp.pop %v2297
      %v2390 = vrcp.pop %v2300
      %v2391 = vrcp.pop %v2303
      %v2392 = vrcp.pop %v2306
      %v2393 = vrcp.pop %v2309
      %v2394 = vrcp.pop %v2312
      %v2395 = vrcp.pop %v2315
      %v2396 = vrcp.pop %v2318
      %v2397 = vrcp.pop %v2321
      %v2398 = vrcp.pop %v2324
      %v2399 = vrcp.pop %v2327
      %v2400 = vrcp.pop %v2330
      %v2401 = vrcp.pop %v2333
      %v2402 = vrcp.pop %v2336
      %v2403 = vrcp.pop %v2339
      %v2404 = vrcp.pop %v2342
      %v2405 = vrcp.pop %v2345
      %v2406 = vrcp.pop %v2348
      %v2407 = vrcp.pop %v2351
      %v2408 = vrcp.pop %v2354
      %v2409 = vrcp.pop %v2357
      %v2410 = vrcp.pop %v2360
      %v2411 = vrcp.pop %v2363
      %v2412 = vrcp.pop %v2366
      %v2413 = vrcp.pop %v2369
      %v2414 = vrcp.pop %v2372
      %v2415 = vrcp.pop %v2375
      %v2416 = vrcp.pop %v2378
      %v2417 = vrcp.pop %v2381
      %v2418 = vrcp.pop %v2384
      %v2419 = vrcp.pop %v2387
      %v2420 = vmul.f32 %v2165, %v2388
      %v2421 = vmul.f32 %v2167, %v2388
      %v2422 = vmul.f32 %v2169, %v2389
      %v2423 = vmul.f32 %v2171, %v2389
      %v2424 = vmul.f32 %v2173, %v2390
      %v2425 = vmul.f32 %v2175, %v2390
      %v2426 = vmul.f32 %v2177, %v2391
      %v2427 = vmul.f32 %v2179, %v2391
      %v2428 = vmul.f32 %v2181, %v2392
      %v2429 = vmul.f32 %v2183, %v2392
      %v2430 = vmul.f32 %v2185, %v2393
      %v2431 = vmul.f32 %v2187, %v2393
      %v2432 = vmul.f32 %v2189, %v2394
      %v2433 = vmul.f32 %v2191, %v2394
      %v2434 = vmul.f32 %v2193, %v2395
      %v2435 = vmul.f32 %v2195, %v2395
      %v2436 = vmul.f32 %v2197, %v2396
      %v2437 = vmul.f32 %v2199, %v2396
      %v2438 = vmul.f32 %v2201, %v2397
      %v2439 = vmul.f32 %v2203, %v2397
      %v2440 = vmul.f32 %v2205, %v2398
      %v2441 = vmul.f32 %v2207, %v2398
      %v2442 = vmul.f32 %v2209, %v2399
      %v2443 = vmul.f32 %v2211, %v2399
      %v2444 = vmul.f32 %v2213, %v2400
      %v2445 = vmul.f32 %v2215, %v2400
      %v2446 = vmul.f32 %v2217, %v2401
      %v2447 = vmul.f32 %v2219, %v2401
      %v2448 = vmul.f32 %v2221, %v2402
      %v2449 = vmul.f32 %v2223, %v2402
      %v2450 = vmul.f32 %v2225, %v2403
      %v2451 = vmul.f32 %v2227, %v2403
      %v2452 = vmul.f32 %v2229, %v2404
      %v2453 = vmul.f32 %v2231, %v2404
      %v2454 = vmul.f32 %v2233, %v2405
      %v2455 = vmul.f32 %v2235, %v2405
      %v2456 = vmul.f32 %v2237, %v2406
      %v2457 = vmul.f32 %v2239, %v2406
      %v2458 = vmul.f32 %v2241, %v2407
      %v2459 = vmul.f32 %v2243, %v2407
      %v2460 = vmul.f32 %v2245, %v2408
      %v2461 = vmul.f32 %v2247, %v2408
      %v2462 = vmul.f32 %v2249, %v2409
      %v2463 = vmul.f32 %v2251, %v2409
      %v2464 = vmul.f32 %v2253, %v2410
      %v2465 = vmul.f32 %v2255, %v2410
      %v2466 = vmul.f32 %v2257, %v2411
      %v2467 = vmul.f32 %v2259, %v2411
      %v2468 = vmul.f32 %v2261, %v2412
      %v2469 = vmul.f32 %v2263, %v2412
      %v2470 = vmul.f32 %v2265, %v2413
      %v2471 = vmul.f32 %v2267, %v2413
      %v2472 = vmul.f32 %v2269, %v2414
      %v2473 = vmul.f32 %v2271, %v2414
      %v2474 = vmul.f32 %v2273, %v2415
      %v2475 = vmul.f32 %v2275, %v2415
      %v2476 = vmul.f32 %v2277, %v2416
      %v2477 = vmul.f32 %v2279, %v2416
      %v2478 = vmul.f32 %v2281, %v2417
      %v2479 = vmul.f32 %v2283, %v2417
      %v2480 = vmul.f32 %v2285, %v2418
      %v2481 = vmul.f32 %v2287, %v2418
      %v2482 = vmul.f32 %v2289, %v2419
      %v2483 = vmul.f32 %v2291, %v2419
      %v2484 = vpack.c.bf16 %v2422, %v2420
      %v2485 = vpack.c.bf16 %v2423, %v2421
      %v2486 = vpack.c.bf16 %v2426, %v2424
      %v2487 = vpack.c.bf16 %v2427, %v2425
      %v2488 = vpack.c.bf16 %v2430, %v2428
      %v2489 = vpack.c.bf16 %v2431, %v2429
      %v2490 = vpack.c.bf16 %v2434, %v2432
      %v2491 = vpack.c.bf16 %v2435, %v2433
      %v2492 = vpack.c.bf16 %v2438, %v2436
      %v2493 = vpack.c.bf16 %v2439, %v2437
      %v2494 = vpack.c.bf16 %v2442, %v2440
      %v2495 = vpack.c.bf16 %v2443, %v2441
      %v2496 = vpack.c.bf16 %v2446, %v2444
      %v2497 = vpack.c.bf16 %v2447, %v2445
      %v2498 = vpack.c.bf16 %v2450, %v2448
      %v2499 = vpack.c.bf16 %v2451, %v2449
      %v2500 = vpack.c.bf16 %v2454, %v2452
      %v2501 = vpack.c.bf16 %v2455, %v2453
      %v2502 = vpack.c.bf16 %v2458, %v2456
      %v2503 = vpack.c.bf16 %v2459, %v2457
      %v2504 = vpack.c.bf16 %v2462, %v2460
      %v2505 = vpack.c.bf16 %v2463, %v2461
      %v2506 = vpack.c.bf16 %v2466, %v2464
      %v2507 = vpack.c.bf16 %v2467, %v2465
      %v2508 = vpack.c.bf16 %v2470, %v2468
      %v2509 = vpack.c.bf16 %v2471, %v2469
      %v2510 = vpack.c.bf16 %v2474, %v2472
      %v2511 = vpack.c.bf16 %v2475, %v2473
      %v2512 = vpack.c.bf16 %v2478, %v2476
      %v2513 = vpack.c.bf16 %v2479, %v2477
      %v2514 = vpack.c.bf16 %v2482, %v2480
      %v2515 = vpack.c.bf16 %v2483, %v2481
      %s2516 = scalar_lea.vmem [#allocation2], %s1485
      %v2517 = vld [vmem:[%s2516] sm:$0xff]
      %v2518 = vld [vmem:[%s2516 + $0x8] sm:$0xff]
      %v2519 = vld [vmem:[%s2516 + $0x10] sm:$0xff]
      %v2520 = vld [vmem:[%s2516 + $0x18] sm:$0xff]
      %v2521 = vld [vmem:[%s2516 + $0x20] sm:$0xff]
      %v2522 = vld [vmem:[%s2516 + $0x28] sm:$0xff]
      %v2523 = vld [vmem:[%s2516 + $0x30] sm:$0xff]
      %v2524 = vld [vmem:[%s2516 + $0x38] sm:$0xff]
      %v2525 = vld [vmem:[%s2516 + $0x40] sm:$0xff]
      %v2526 = vld [vmem:[%s2516 + $0x48] sm:$0xff]
      %v2527 = vld [vmem:[%s2516 + $0x50] sm:$0xff]
      %v2528 = vld [vmem:[%s2516 + $0x58] sm:$0xff]
      %v2529 = vld [vmem:[%s2516 + $0x60] sm:$0xff]
      %v2530 = vld [vmem:[%s2516 + $0x68] sm:$0xff]
      %v2531 = vld [vmem:[%s2516 + $0x70] sm:$0xff]
      %v2532 = vld [vmem:[%s2516 + $0x78] sm:$0xff]
      %v2533 = vld [vmem:[%s2516 + $0x80] sm:$0xff]
      %v2534 = vld [vmem:[%s2516 + $0x88] sm:$0xff]
      %v2535 = vld [vmem:[%s2516 + $0x90] sm:$0xff]
      %v2536 = vld [vmem:[%s2516 + $0x98] sm:$0xff]
      %v2537 = vld [vmem:[%s2516 + $0xa0] sm:$0xff]
      %v2538 = vld [vmem:[%s2516 + $0xa8] sm:$0xff]
      %v2539 = vld [vmem:[%s2516 + $0xb0] sm:$0xff]
      %v2540 = vld [vmem:[%s2516 + $0xb8] sm:$0xff]
      %v2541 = vld [vmem:[%s2516 + $0xc0] sm:$0xff]
      %v2542 = vld [vmem:[%s2516 + $0xc8] sm:$0xff]
      %v2543 = vld [vmem:[%s2516 + $0xd0] sm:$0xff]
      %v2544 = vld [vmem:[%s2516 + $0xd8] sm:$0xff]
      %v2545 = vld [vmem:[%s2516 + $0xe0] sm:$0xff]
      %v2546 = vld [vmem:[%s2516 + $0xe8] sm:$0xff]
      %v2547 = vld [vmem:[%s2516 + $0xf0] sm:$0xff]
      %v2548 = vld [vmem:[%s2516 + $0xf8] sm:$0xff]
      %2549 = vrot.lane.b32.xlu0 %v1666, 64
      %v2550 = vpop.permute.xlu0 %2549
      %2551 = vrot.lane.b32.xlu0 %v1667, 64
      %v2552 = vpop.permute.xlu0 %2551
      %2553 = vrot.lane.b32.xlu0 %v1668, 64
      %v2554 = vpop.permute.xlu0 %2553
      %2555 = vrot.lane.b32.xlu0 %v1669, 64
      %v2556 = vpop.permute.xlu0 %2555
      %2557 = vrot.lane.b32.xlu0 %v1670, 64
      %v2558 = vpop.permute.xlu0 %2557
      %2559 = vrot.lane.b32.xlu0 %v1671, 64
      %v2560 = vpop.permute.xlu0 %2559
      %2561 = vrot.lane.b32.xlu0 %v1672, 64
      %v2562 = vpop.permute.xlu0 %2561
      %2563 = vrot.lane.b32.xlu0 %v1673, 64
      %v2564 = vpop.permute.xlu0 %2563
      %2565 = vrot.lane.b32.xlu0 %v1674, 64
      %v2566 = vpop.permute.xlu0 %2565
      %2567 = vrot.lane.b32.xlu0 %v1675, 64
      %v2568 = vpop.permute.xlu0 %2567
      %2569 = vrot.lane.b32.xlu0 %v1676, 64
      %v2570 = vpop.permute.xlu0 %2569
      %2571 = vrot.lane.b32.xlu0 %v1677, 64
      %v2572 = vpop.permute.xlu0 %2571
      %2573 = vrot.lane.b32.xlu0 %v1678, 64
      %v2574 = vpop.permute.xlu0 %2573
      %2575 = vrot.lane.b32.xlu0 %v1679, 64
      %v2576 = vpop.permute.xlu0 %2575
      %2577 = vrot.lane.b32.xlu0 %v1680, 64
      %v2578 = vpop.permute.xlu0 %2577
      %2579 = vrot.lane.b32.xlu0 %v1681, 64
      %v2580 = vpop.permute.xlu0 %2579
      %2597 = vmatprep.subr.bf16.mxu0 0
      %2598 = vmatpush1.bf16.msra.mxu0 %v2564
      %2599 = vmatprep.subr.bf16.mxu0 0
      %2600 = vmatpush1.bf16.msra.mxu0 %v2562
      %2601 = vmatprep.subr.bf16.mxu0 0
      %2602 = vmatpush1.bf16.msra.mxu0 %v2560
      %2603 = vmatprep.subr.bf16.mxu0 0
      %2604 = vmatpush1.bf16.msra.mxu0 %v2558
      %2605 = vmatprep.subr.bf16.mxu0 0
      %2606 = vmatpush1.bf16.msra.mxu0 %v2556
      %2607 = vmatprep.subr.bf16.mxu0 0
      %2608 = vmatpush1.bf16.msra.mxu0 %v2554
      %2609 = vmatprep.subr.bf16.mxu0 0
      %2610 = vmatpush1.bf16.msra.mxu0 %v2552
      %2611 = vmatprep.subr.bf16.mxu0 0
      %2612 = vmatpush1.bf16.msra.mxu0 %v2550
      %2613 = vmatprep.subr.bf16.mxu0 0
      %2614 = vmatpush2.bf16.msra.mxu0 %v2580
      %2615 = vmatprep.subr.bf16.mxu0 0
      %2616 = vmatpush2.bf16.msra.mxu0 %v2578
      %2617 = vmatprep.subr.bf16.mxu0 0
      %2618 = vmatpush2.bf16.msra.mxu0 %v2576
      %2619 = vmatprep.subr.bf16.mxu0 0
      %2620 = vmatpush2.bf16.msra.mxu0 %v2574
      %2621 = vmatprep.subr.bf16.mxu0 0
      %2622 = vmatpush2.bf16.msra.mxu0 %v2572
      %2623 = vmatprep.subr.bf16.mxu0 0
      %2624 = vmatpush2.bf16.msra.mxu0 %v2570
      %2625 = vmatprep.subr.bf16.mxu0 0
      %2626 = vmatpush2.bf16.msra.mxu0 %v2568
      %2627 = vmatprep.subr.bf16.mxu0 0
      %2628 = vmatpush2.bf16.msra.mxu0 %v2566
      %2629 = vmatprep.mubr.bf16.mxu0 %v2485
      %2630 = vmatmul.mubr.bf16.gmra.mxu0 %v2484
      %v2631 = vpop.f32.mrf.mxu0
      %v2632 = vadd.f32 %v2517, %v2631
      %v2633 = vpop.f32.mrf.mxu0
      %v2634 = vpop.f32.mrf.mxu0
      %v2635 = vadd.f32 %v2518, %v2634
      %v2636 = vpop.f32.mrf.mxu0
      %2637 = vmatprep.mubr.bf16.mxu0 %v2487
      %2638 = vmatmul.mubr.bf16.gmra.mxu0 %v2486
      %v2639 = vpop.f32.mrf.mxu0
      %v2640 = vadd.f32 %v2519, %v2639
      %v2641 = vpop.f32.mrf.mxu0
      %v2642 = vpop.f32.mrf.mxu0
      %v2643 = vadd.f32 %v2520, %v2642
      %v2644 = vpop.f32.mrf.mxu0
      %2645 = vmatprep.mubr.bf16.mxu0 %v2489
      %2646 = vmatmul.mubr.bf16.gmra.mxu0 %v2488
      %v2647 = vpop.f32.mrf.mxu0
      %v2648 = vadd.f32 %v2521, %v2647
      %v2649 = vpop.f32.mrf.mxu0
      %v2650 = vpop.f32.mrf.mxu0
      %v2651 = vadd.f32 %v2522, %v2650
      %v2652 = vpop.f32.mrf.mxu0
      %2653 = vmatprep.mubr.bf16.mxu0 %v2491
      %2654 = vmatmul.mubr.bf16.gmra.mxu0 %v2490
      %v2655 = vpop.f32.mrf.mxu0
      %v2656 = vadd.f32 %v2523, %v2655
      %v2657 = vpop.f32.mrf.mxu0
      %v2658 = vpop.f32.mrf.mxu0
      %v2659 = vadd.f32 %v2524, %v2658
      %v2660 = vpop.f32.mrf.mxu0
      %2661 = vmatprep.mubr.bf16.mxu0 %v2493
      %2662 = vmatmul.mubr.bf16.gmra.mxu0 %v2492
      %v2663 = vpop.f32.mrf.mxu0
      %v2664 = vadd.f32 %v2525, %v2663
      %v2665 = vpop.f32.mrf.mxu0
      %v2666 = vpop.f32.mrf.mxu0
      %v2667 = vadd.f32 %v2526, %v2666
      %v2668 = vpop.f32.mrf.mxu0
      %2669 = vmatprep.mubr.bf16.mxu0 %v2495
      %2670 = vmatmul.mubr.bf16.gmra.mxu0 %v2494
      %v2671 = vpop.f32.mrf.mxu0
      %v2672 = vadd.f32 %v2527, %v2671
      %v2673 = vpop.f32.mrf.mxu0
      %v2674 = vpop.f32.mrf.mxu0
      %v2675 = vadd.f32 %v2528, %v2674
      %v2676 = vpop.f32.mrf.mxu0
      %2677 = vmatprep.mubr.bf16.mxu0 %v2497
      %2678 = vmatmul.mubr.bf16.gmra.mxu0 %v2496
      %v2679 = vpop.f32.mrf.mxu0
      %v2680 = vadd.f32 %v2529, %v2679
      %v2681 = vpop.f32.mrf.mxu0
      %v2682 = vpop.f32.mrf.mxu0
      %v2683 = vadd.f32 %v2530, %v2682
      %v2684 = vpop.f32.mrf.mxu0
      %2685 = vmatprep.mubr.bf16.mxu0 %v2499
      %2686 = vmatmul.mubr.bf16.gmra.mxu0 %v2498
      %v2687 = vpop.f32.mrf.mxu0
      %v2688 = vadd.f32 %v2531, %v2687
      %v2689 = vpop.f32.mrf.mxu0
      %v2690 = vpop.f32.mrf.mxu0
      %v2691 = vadd.f32 %v2532, %v2690
      %v2692 = vpop.f32.mrf.mxu0
      %2693 = vmatprep.mubr.bf16.mxu0 %v2501
      %2694 = vmatmul.mubr.bf16.gmra.mxu0 %v2500
      %v2695 = vpop.f32.mrf.mxu0
      %v2696 = vadd.f32 %v2533, %v2695
      %v2697 = vpop.f32.mrf.mxu0
      %v2698 = vpop.f32.mrf.mxu0
      %v2699 = vadd.f32 %v2534, %v2698
      %v2700 = vpop.f32.mrf.mxu0
      %2701 = vmatprep.mubr.bf16.mxu0 %v2503
      %2702 = vmatmul.mubr.bf16.gmra.mxu0 %v2502
      %v2703 = vpop.f32.mrf.mxu0
      %v2704 = vadd.f32 %v2535, %v2703
      %v2705 = vpop.f32.mrf.mxu0
      %v2706 = vpop.f32.mrf.mxu0
      %v2707 = vadd.f32 %v2536, %v2706
      %v2708 = vpop.f32.mrf.mxu0
      %2709 = vmatprep.mubr.bf16.mxu0 %v2505
      %2710 = vmatmul.mubr.bf16.gmra.mxu0 %v2504
      %v2711 = vpop.f32.mrf.mxu0
      %v2712 = vadd.f32 %v2537, %v2711
      %v2713 = vpop.f32.mrf.mxu0
      %v2714 = vpop.f32.mrf.mxu0
      %v2715 = vadd.f32 %v2538, %v2714
      %v2716 = vpop.f32.mrf.mxu0
      %2717 = vmatprep.mubr.bf16.mxu0 %v2507
      %2718 = vmatmul.mubr.bf16.gmra.mxu0 %v2506
      %v2719 = vpop.f32.mrf.mxu0
      %v2720 = vadd.f32 %v2539, %v2719
      %v2721 = vpop.f32.mrf.mxu0
      %v2722 = vpop.f32.mrf.mxu0
      %v2723 = vadd.f32 %v2540, %v2722
      %v2724 = vpop.f32.mrf.mxu0
      %2725 = vmatprep.mubr.bf16.mxu0 %v2509
      %2726 = vmatmul.mubr.bf16.gmra.mxu0 %v2508
      %v2727 = vpop.f32.mrf.mxu0
      %v2728 = vadd.f32 %v2541, %v2727
      %v2729 = vpop.f32.mrf.mxu0
      %v2730 = vpop.f32.mrf.mxu0
      %v2731 = vadd.f32 %v2542, %v2730
      %v2732 = vpop.f32.mrf.mxu0
      %2733 = vmatprep.mubr.bf16.mxu0 %v2511
      %2734 = vmatmul.mubr.bf16.gmra.mxu0 %v2510
      %v2735 = vpop.f32.mrf.mxu0
      %v2736 = vadd.f32 %v2543, %v2735
      %v2737 = vpop.f32.mrf.mxu0
      %v2738 = vpop.f32.mrf.mxu0
      %v2739 = vadd.f32 %v2544, %v2738
      %v2740 = vpop.f32.mrf.mxu0
      %2741 = vmatprep.mubr.bf16.mxu0 %v2513
      %2742 = vmatmul.mubr.bf16.gmra.mxu0 %v2512
      %v2743 = vpop.f32.mrf.mxu0
      %v2744 = vadd.f32 %v2545, %v2743
      %v2745 = vpop.f32.mrf.mxu0
      %v2746 = vpop.f32.mrf.mxu0
      %v2747 = vadd.f32 %v2546, %v2746
      %v2748 = vpop.f32.mrf.mxu0
      %2749 = vmatprep.mubr.bf16.mxu0 %v2515
      %2750 = vmatmul.mubr.bf16.gmra.mxu0 %v2514
      %v2751 = vpop.f32.mrf.mxu0
      %v2752 = vadd.f32 %v2547, %v2751
      %v2753 = vpop.f32.mrf.mxu0
      %v2754 = vpop.f32.mrf.mxu0
      %v2755 = vadd.f32 %v2548, %v2754
      %v2756 = vpop.f32.mrf.mxu0
      %2757 = vdwg.mxu0
      %v2758 = vpack.c.bf16 %v2635, %v2632
      %v2759 = vpack.c.bf16 %v2643, %v2640
      %v2760 = vpack.c.bf16 %v2651, %v2648
      %v2761 = vpack.c.bf16 %v2659, %v2656
      %v2762 = vpack.c.bf16 %v2667, %v2664
      %v2763 = vpack.c.bf16 %v2675, %v2672
      %v2764 = vpack.c.bf16 %v2683, %v2680
      %v2765 = vpack.c.bf16 %v2691, %v2688
      %v2766 = vpack.c.bf16 %v2699, %v2696
      %v2767 = vpack.c.bf16 %v2707, %v2704
      %v2768 = vpack.c.bf16 %v2715, %v2712
      %v2769 = vpack.c.bf16 %v2723, %v2720
      %v2770 = vpack.c.bf16 %v2731, %v2728
      %v2771 = vpack.c.bf16 %v2739, %v2736
      %v2772 = vpack.c.bf16 %v2747, %v2744
      %v2773 = vpack.c.bf16 %v2755, %v2752
      %v2790 = vunpack.c.l.b16 %v2758
      %v2791 = vunpack.c.h.b16 %v2758
      %v2792 = vunpack.c.l.b16 %v2759
      %v2793 = vunpack.c.h.b16 %v2759
      %v2794 = vunpack.c.l.b16 %v2760
      %v2795 = vunpack.c.h.b16 %v2760
      %v2796 = vunpack.c.l.b16 %v2761
      %v2797 = vunpack.c.h.b16 %v2761
      %v2798 = vunpack.c.l.b16 %v2762
      %v2799 = vunpack.c.h.b16 %v2762
      %v2800 = vunpack.c.l.b16 %v2763
      %v2801 = vunpack.c.h.b16 %v2763
      %v2802 = vunpack.c.l.b16 %v2764
      %v2803 = vunpack.c.h.b16 %v2764
      %v2804 = vunpack.c.l.b16 %v2765
      %v2805 = vunpack.c.h.b16 %v2765
      %v2806 = vunpack.c.l.b16 %v2766
      %v2807 = vunpack.c.h.b16 %v2766
      %v2808 = vunpack.c.l.b16 %v2767
      %v2809 = vunpack.c.h.b16 %v2767
      %v2810 = vunpack.c.l.b16 %v2768
      %v2811 = vunpack.c.h.b16 %v2768
      %v2812 = vunpack.c.l.b16 %v2769
      %v2813 = vunpack.c.h.b16 %v2769
      %v2814 = vunpack.c.l.b16 %v2770
      %v2815 = vunpack.c.h.b16 %v2770
      %v2816 = vunpack.c.l.b16 %v2771
      %v2817 = vunpack.c.h.b16 %v2771
      %v2818 = vunpack.c.l.b16 %v2772
      %v2819 = vunpack.c.h.b16 %v2772
      %v2820 = vunpack.c.l.b16 %v2773
      %v2821 = vunpack.c.h.b16 %v2773
      %v2822 = vpack.c.b16 %v2790, %v2790
      %v2823 = vpack.c.b16 %v2791, %v2791
      %v2824 = vpack.c.b16 %v2792, %v2792
      %v2825 = vpack.c.b16 %v2793, %v2793
      %v2826 = vpack.c.b16 %v2794, %v2794
      %v2827 = vpack.c.b16 %v2795, %v2795
      %v2828 = vpack.c.b16 %v2796, %v2796
      %v2829 = vpack.c.b16 %v2797, %v2797
      %v2830 = vpack.c.b16 %v2798, %v2798
      %v2831 = vpack.c.b16 %v2799, %v2799
      %v2832 = vpack.c.b16 %v2800, %v2800
      %v2833 = vpack.c.b16 %v2801, %v2801
      %v2834 = vpack.c.b16 %v2802, %v2802
      %v2835 = vpack.c.b16 %v2803, %v2803
      %v2836 = vpack.c.b16 %v2804, %v2804
      %v2837 = vpack.c.b16 %v2805, %v2805
      %v2838 = vpack.c.b16 %v2806, %v2806
      %v2839 = vpack.c.b16 %v2807, %v2807
      %v2840 = vpack.c.b16 %v2808, %v2808
      %v2841 = vpack.c.b16 %v2809, %v2809
      %v2842 = vpack.c.b16 %v2810, %v2810
      %v2843 = vpack.c.b16 %v2811, %v2811
      %v2844 = vpack.c.b16 %v2812, %v2812
      %v2845 = vpack.c.b16 %v2813, %v2813
      %v2846 = vpack.c.b16 %v2814, %v2814
      %v2847 = vpack.c.b16 %v2815, %v2815
      %v2848 = vpack.c.b16 %v2816, %v2816
      %v2849 = vpack.c.b16 %v2817, %v2817
      %v2850 = vpack.c.b16 %v2818, %v2818
      %v2851 = vpack.c.b16 %v2819, %v2819
      %v2852 = vpack.c.b16 %v2820, %v2820
      %v2853 = vpack.c.b16 %v2821, %v2821
      %vm2886 = vcmask 519168
      %2887 = vst.msk [vmem:[%s254] sm:$0xf] %vm2886, %v2822
      %2888 = vst.msk [vmem:[%s254 + $0x4] sm:$0xf] %vm2886, %v2823
      %2889 = vst.msk [vmem:[%s254 + $0x8] sm:$0xf] %vm2886, %v2824
      %2890 = vst.msk [vmem:[%s254 + $0xc] sm:$0xf] %vm2886, %v2825
      %2891 = vst.msk [vmem:[%s254 + $0x10] sm:$0xf] %vm2886, %v2826
      %2892 = vst.msk [vmem:[%s254 + $0x14] sm:$0xf] %vm2886, %v2827
      %2893 = vst.msk [vmem:[%s254 + $0x18] sm:$0xf] %vm2886, %v2828
      %2894 = vst.msk [vmem:[%s254 + $0x1c] sm:$0xf] %vm2886, %v2829
      %2895 = vst.msk [vmem:[%s254 + $0x20] sm:$0xf] %vm2886, %v2830
      %2896 = vst.msk [vmem:[%s254 + $0x24] sm:$0xf] %vm2886, %v2831
      %2897 = vst.msk [vmem:[%s254 + $0x28] sm:$0xf] %vm2886, %v2832
      %2898 = vst.msk [vmem:[%s254 + $0x2c] sm:$0xf] %vm2886, %v2833
      %2899 = vst.msk [vmem:[%s254 + $0x30] sm:$0xf] %vm2886, %v2834
      %2900 = vst.msk [vmem:[%s254 + $0x34] sm:$0xf] %vm2886, %v2835
      %2901 = vst.msk [vmem:[%s254 + $0x38] sm:$0xf] %vm2886, %v2836
      %2902 = vst.msk [vmem:[%s254 + $0x3c] sm:$0xf] %vm2886, %v2837
      %2903 = vst.msk [vmem:[%s254 + $0x40] sm:$0xf] %vm2886, %v2838
      %2904 = vst.msk [vmem:[%s254 + $0x44] sm:$0xf] %vm2886, %v2839
      %2905 = vst.msk [vmem:[%s254 + $0x48] sm:$0xf] %vm2886, %v2840
      %2906 = vst.msk [vmem:[%s254 + $0x4c] sm:$0xf] %vm2886, %v2841
      %2907 = vst.msk [vmem:[%s254 + $0x50] sm:$0xf] %vm2886, %v2842
      %2908 = vst.msk [vmem:[%s254 + $0x54] sm:$0xf] %vm2886, %v2843
      %2909 = vst.msk [vmem:[%s254 + $0x58] sm:$0xf] %vm2886, %v2844
      %2910 = vst.msk [vmem:[%s254 + $0x5c] sm:$0xf] %vm2886, %v2845
      %2911 = vst.msk [vmem:[%s254 + $0x60] sm:$0xf] %vm2886, %v2846
      %2912 = vst.msk [vmem:[%s254 + $0x64] sm:$0xf] %vm2886, %v2847
      %2913 = vst.msk [vmem:[%s254 + $0x68] sm:$0xf] %vm2886, %v2848
      %2914 = vst.msk [vmem:[%s254 + $0x6c] sm:$0xf] %vm2886, %v2849
      %2915 = vst.msk [vmem:[%s254 + $0x70] sm:$0xf] %vm2886, %v2850
      %2916 = vst.msk [vmem:[%s254 + $0x74] sm:$0xf] %vm2886, %v2851
      %2917 = vst.msk [vmem:[%s254 + $0x78] sm:$0xf] %vm2886, %v2852
      %2918 = vst.msk [vmem:[%s254 + $0x7c] sm:$0xf] %vm2886, %v2853
      %s2919 = smul.u32 32, %s21
      %p2920 = scmp.lt.s32.totalorder %s19, 0
      %s2921 = scalar_select %p2920, %s19, 0
      %p2922 = scmp.lt.s32.totalorder %s20, 1
      %s2923 = scalar_select %p2922, %s20, 1
      %p2924 = scmp.lt.s32.totalorder %s2919, 31
      %s2925 = scalar_select %p2924, %s2919, 31
      %s2926 = smul.addr %s2923, 32
      %s2927 = sadd.s32 %s2925, %s2926
      %s2928 = smul.addr %s2921, 64
      %s2929 = sadd.s32 %s2927, %s2928
      %s2930 = smul.addr %s2929, 4
      %s2931 = scalar_lea.vmem %s3, %s2930
      // Predicated region
      $region37: #{psa_forward.4} parent=31 // pred_check
        %p2932 = pneg %p135
      $region38: #{psa_forward.4} parent=31 // pred_check_branch
        %2934 = sbr.rel (%p2932) target = $region40
      $region39: #{psa_forward.4} parent=31 // pred_region
        %s2935 = smul.u32 32, %s21
      $region40: #{psa_forward.4} parent=31 // pred_fallthru
        _
    $region32: #{psa_forward.4} parent=5 // pred_fallthru
      _
    %p2936 = scmp.le.s32.totalorder 2, %s9
    // Predicated region
    $region41: #{psa_forward.4} parent=5 // pred_check
      %p2937 = pneg %p2936
    $region42: #{psa_forward.4} parent=5 // pred_check_branch
      %2939 = sbr.rel (%p2937) target = $region44
    $region43: #{psa_forward.4} parent=5 // pred_region
      %s2940 = ssub.s32 %s9, 2
      // Predicated region
      $region45: #{psa_forward.4} parent=43 // pred_check
        %p2941 = pneg %p141
      $region46: #{psa_forward.4} parent=43 // pred_check_branch
        %2943 = sbr.rel (%p2941) target = $region48
      $region47: #{psa_forward.4} parent=43 // pred_region
        %s2944 = smul.u32 32, %s24
        %p2945 = scmp.lt.s32.totalorder %s22, 0
        %s2946 = scalar_select %p2945, %s22, 0
        %p2947 = scmp.lt.s32.totalorder %s23, 1
        %s2948 = scalar_select %p2947, %s23, 1
        %p2949 = scmp.lt.s32.totalorder %s2944, 31
        %s2950 = scalar_select %p2949, %s2944, 31
        %s2951 = smul.addr %s2948, 32
        %s2952 = sadd.s32 %s2950, %s2951
        %s2953 = smul.addr %s2946, 64
        %s2954 = sadd.s32 %s2952, %s2953
        %s2955 = smul.addr %s2954, 4
        %s2956 = scalar_lea.vmem %s3, %s2955
      $region48: #{psa_forward.4} parent=43 // pred_fallthru
        _
    $region44: #{psa_forward.4} parent=5 // pred_fallthru
      _
  $region6: #{psa_forward.4} parent=0 // loop_footer
    %s13 = sadd.s32 1, %s9
  $region7: #{psa_forward.4} parent=0 // loop_footer_branch
    %8 = sbr.rel target = $region3
  $region8: #{psa_forward.4} parent=0 // loop_exit
    _

</llo_original>
